<compile_context>
chip_gen: v5e
topology: v5e:2x2
jax: 0.10.0
libtpu: 0.0.40
codegen_flags: <defaults>
</compile_context>

<pallas_src>
import math
from functools import partial

import jax
import jax.numpy as jnp
from jax.experimental import pallas as pl
from jax.experimental.pallas import tpu as pltpu

NEG_INF = -1e9   # finite stand-in for PyTorch's -inf masking (fully-masked rows
                 # give uniform attention instead of NaN)
LN_EPS = 1e-5
VMEM_LIMIT = 32 * 1024 * 1024   # explicit scoped-VMEM budget (helps v5e's 16 MiB default)


def _fit(dim, target, align):
    """Largest tile <= target that is a multiple of `align` and divides `dim`
    (or the full dim when dim is small / nothing divides)."""
    if dim <= target:
        return dim
    t = (target // align) * align
    while t >= align:
        if dim % t == 0:
            return t
        t -= align
    return dim


def _pad_to(n, m):
    return ((n + m - 1) // m) * m


# ----------------------------- tiled linear -----------------------------

def _linear_acc_kernel(x_ref, w_ref, b_ref, o_ref, acc_ref):
    @pl.when(pl.program_id(2) == 0)
    def _():
        acc_ref[...] = jnp.zeros_like(acc_ref)

    acc_ref[...] += jnp.dot(x_ref[...], w_ref[...],
                            preferred_element_type=jnp.float32)

    @pl.when(pl.program_id(2) == pl.num_programs(2) - 1)
    def _():
        o_ref[...] = (acc_ref[...] + b_ref[...]).astype(o_ref.dtype)


def _linear_1k_kernel(x_ref, w_ref, b_ref, o_ref):
    # Single K step: write output directly, no f32 scratch round-trip / zero-init.
    o_ref[...] = (jnp.dot(x_ref[...], w_ref[...],
                          preferred_element_type=jnp.float32)
                  + b_ref[...]).astype(o_ref.dtype)


def linear(x, w, b, *, out_dtype=jnp.bfloat16, tm=256, tn=512, tk=512):
    """x: (M, K) bf16 @ w: (K, N) bf16 + b: (N,) f32 -> (M, N), tiled/pipelined."""
    M, K = x.shape
    N = w.shape[1]
    x = x.astype(jnp.bfloat16)
    tm = _fit(M, tm, 8)
    tn = _fit(N, tn, 128)
    tk = _fit(K, tk, 128)

    if K // tk == 1:                     # K fits one tile (QKV proj, generator)
        return pl.pallas_call(
            _linear_1k_kernel,
            out_shape=jax.ShapeDtypeStruct((M, N), out_dtype),
            grid=(M // tm, N // tn),
            in_specs=[pl.BlockSpec((tm, tk), lambda i, j: (i, 0)),
                      pl.BlockSpec((tk, tn), lambda i, j: (0, j)),
                      pl.BlockSpec((1, tn), lambda i, j: (0, j))],
            out_specs=pl.BlockSpec((tm, tn), lambda i, j: (i, j)),
            compiler_params=pltpu.CompilerParams(
                dimension_semantics=("parallel", "parallel"),
                vmem_limit_bytes=VMEM_LIMIT),
        )(x, w, b.reshape(1, N))

    return pl.pallas_call(
        _linear_acc_kernel,
        out_shape=jax.ShapeDtypeStruct((M, N), out_dtype),
        grid=(M // tm, N // tn, K // tk),
        in_specs=[pl.BlockSpec((tm, tk), lambda i, j, k: (i, k)),
                  pl.BlockSpec((tk, tn), lambda i, j, k: (k, j)),
                  pl.BlockSpec((1, tn), lambda i, j, k: (0, j))],
        out_specs=pl.BlockSpec((tm, tn), lambda i, j, k: (i, j)),
        scratch_shapes=[pltpu.VMEM((tm, tn), jnp.float32)],
        compiler_params=pltpu.CompilerParams(
            dimension_semantics=("parallel", "parallel", "arbitrary"),
            vmem_limit_bytes=VMEM_LIMIT),
    )(x, w, b.reshape(1, N))


# ------------------------------ attention -------------------------------

def _attn_kernel(q_ref, k_ref, v_ref, mask_ref, pad_ref, o_ref, *, heads, dh):
    """q/k/v: (1, S, heads*dh) bf16. mask: (S, S) f32 additive. pad: (1, 1, S) f32."""
    bias = mask_ref[...] + pad_ref[0]                          # (S, S) f32
    q = q_ref[0]
    k = k_ref[0]
    v = v_ref[0]

    outs = []
    for h in range(heads):                                     # small static unroll
        lo, hi = h * dh, (h + 1) * dh
        # 1/sqrt(dh) is pre-folded into the Q projection weights.
        s = jax.lax.dot_general(q[:, lo:hi], k[:, lo:hi],
                                (((1,), (1,)), ((), ())),
                                preferred_element_type=jnp.float32)   # (S, S)
        s = s + bias
        s = s - jnp.max(s, axis=-1, keepdims=True)
        p = jnp.exp(s)
        p = p * pl.reciprocal(jnp.sum(p, axis=-1, keepdims=True), approx=True)
        outs.append(jnp.dot(p.astype(jnp.bfloat16), v[:, lo:hi],
                            preferred_element_type=jnp.float32))      # (S, dh)

    out = outs[0] if heads == 1 else jnp.concatenate(outs, axis=-1)
    o_ref[0] = out.astype(o_ref.dtype)                         # lane-dense store


def attention(qkv, src_mask_add, pad_add, nhead):
    """qkv: (B, S, 3E) bf16; src_mask_add: (S, S) f32; pad_add: (B, 1, S) f32 -> (B, S, E) bf16."""
    B, S, E3 = qkv.shape
    E = E3 // 3
    Dh = E // nhead

    # Smallest head group g (divisor of nhead) whose lane width g*Dh is a
    # multiple of 128: keeps Q/K/V/output blocks 128-lane dense and bounds the
    # number of live (S, S) score tiles per grid step.
    g = None
    for cand in range(1, nhead + 1):
        if nhead % cand == 0 and (cand * Dh) % 128 == 0:
            g = cand
            break

    if g is not None:
        NG = nhead // g
        W = g * Dh
        return pl.pallas_call(
            partial(_attn_kernel, heads=g, dh=Dh),
            out_shape=jax.ShapeDtypeStruct((B, S, E), jnp.bfloat16),
            grid=(B, NG),
            in_specs=[pl.BlockSpec((1, S, W), lambda b, hg: (b, 0, hg)),
                      pl.BlockSpec((1, S, W), lambda b, hg: (b, 0, NG + hg)),
                      pl.BlockSpec((1, S, W), lambda b, hg: (b, 0, 2 * NG + hg)),
                      pl.BlockSpec((S, S), lambda b, hg: (0, 0)),
                      pl.BlockSpec((1, 1, S), lambda b, hg: (b, 0, 0))],
            out_specs=pl.BlockSpec((1, S, W), lambda b, hg: (b, 0, hg)),
            compiler_params=pltpu.CompilerParams(
                dimension_semantics=("parallel", "parallel")),
        )(qkv, qkv, qkv, src_mask_add, pad_add)

    # Fallback for tiny-E configs where no 128-lane head group exists:
    # split the slab in XLA so every block is full-width (layout-rule safe).
    q, k, v = jnp.split(qkv, 3, axis=-1)
    return pl.pallas_call(
        partial(_attn_kernel, heads=nhead, dh=Dh),
        out_shape=jax.ShapeDtypeStruct((B, S, E), jnp.bfloat16),
        grid=(B,),
        in_specs=[pl.BlockSpec((1, S, E), lambda b: (b, 0, 0)),
                  pl.BlockSpec((1, S, E), lambda b: (b, 0, 0)),
                  pl.BlockSpec((1, S, E), lambda b: (b, 0, 0)),
                  pl.BlockSpec((S, S), lambda b: (0, 0)),
                  pl.BlockSpec((1, 1, S), lambda b: (b, 0, 0))],
        out_specs=pl.BlockSpec((1, S, E), lambda b: (b, 0, 0)),
        compiler_params=pltpu.CompilerParams(dimension_semantics=("parallel",)),
    )(q, k, v, src_mask_add, pad_add)


# ----------------- fused out_proj / FFN + residual + LayerNorm -----------------

def _layernorm(y, g, b, eps):
    mu = jnp.mean(y, axis=-1, keepdims=True)
    var = jnp.mean(jnp.square(y - mu), axis=-1, keepdims=True)
    return (y - mu) * jax.lax.rsqrt(var + eps) * g + b


def _matmul_res_ln_kernel(x_ref, w_ref, b_ref, r_ref, g_ref, bt_ref, o_ref, *, eps):
    acc = jnp.dot(x_ref[...], w_ref[...], preferred_element_type=jnp.float32)
    y = acc + b_ref[...] + r_ref[...].astype(jnp.float32)
    o_ref[...] = _layernorm(y, g_ref[...], bt_ref[...], eps).astype(o_ref.dtype)


def matmul_res_ln(x, w, b, residual, gamma, beta, *, eps=LN_EPS, tm=512):
    """LayerNorm(residual + x @ w + b), fused; x/residual bf16, stats in f32."""
    M, K = x.shape
    N = w.shape[1]
    x = x.astype(jnp.bfloat16)
    residual = residual.astype(jnp.bfloat16)
    tm = _fit(M, tm, 8)
    return pl.pallas_call(
        partial(_matmul_res_ln_kernel, eps=eps),
        out_shape=jax.ShapeDtypeStruct((M, N), jnp.bfloat16),
        grid=(M // tm,),
        in_specs=[pl.BlockSpec((tm, K), lambda i: (i, 0)),
                  pl.BlockSpec((K, N), lambda i: (0, 0)),
                  pl.BlockSpec((1, N), lambda i: (0, 0)),
                  pl.BlockSpec((tm, N), lambda i: (i, 0)),
                  pl.BlockSpec((1, N), lambda i: (0, 0)),
                  pl.BlockSpec((1, N), lambda i: (0, 0))],
        out_specs=pl.BlockSpec((tm, N), lambda i: (i, 0)),
        compiler_params=pltpu.CompilerParams(
            dimension_semantics=("parallel",),
            vmem_limit_bytes=VMEM_LIMIT),
    )(x, w, b.reshape(1, N), residual, gamma.reshape(1, N), beta.reshape(1, N))


def _ffn_ln_kernel(x_ref, w1_ref, b1_ref, w2_ref, b2_ref, g_ref, bt_ref, o_ref, *, eps):
    x = x_ref[...]                                                     # (tm, E) bf16
    h = jnp.dot(x, w1_ref[...], preferred_element_type=jnp.float32) + b1_ref[...]
    h = jnp.maximum(h, 0.0).astype(jnp.bfloat16)
    y = jnp.dot(h, w2_ref[...], preferred_element_type=jnp.float32) + b2_ref[...]
    y = y + x.astype(jnp.float32)
    o_ref[...] = _layernorm(y, g_ref[...], bt_ref[...], eps).astype(o_ref.dtype)


def ffn_ln(x, w1, b1, w2, b2, gamma, beta, *, eps=LN_EPS, tm=512):
    """LayerNorm(x + relu(x @ w1 + b1) @ w2 + b2), fused; the (tm, FF)
    intermediate never leaves VMEM."""
    M, E = x.shape
    F = w1.shape[1]
    x = x.astype(jnp.bfloat16)
    tm = _fit(M, tm, 8)
    return pl.pallas_call(
        partial(_ffn_ln_kernel, eps=eps),
        out_shape=jax.ShapeDtypeStruct((M, E), jnp.bfloat16),
        grid=(M // tm,),
        in_specs=[pl.BlockSpec((tm, E), lambda i: (i, 0)),
                  pl.BlockSpec((E, F), lambda i: (0, 0)),
                  pl.BlockSpec((1, F), lambda i: (0, 0)),
                  pl.BlockSpec((F, E), lambda i: (0, 0)),
                  pl.BlockSpec((1, E), lambda i: (0, 0)),
                  pl.BlockSpec((1, E), lambda i: (0, 0)),
                  pl.BlockSpec((1, E), lambda i: (0, 0))],
        out_specs=pl.BlockSpec((tm, E), lambda i: (i, 0)),
        compiler_params=pltpu.CompilerParams(
            dimension_semantics=("parallel",),
            vmem_limit_bytes=VMEM_LIMIT),
    )(x, w1, b1.reshape(1, F), w2, b2.reshape(1, E),
      gamma.reshape(1, E), beta.reshape(1, E))


# ------------------------------ model glue ------------------------------

def encoder_layer(x, p, src_mask_add, pad_add, nhead, B, S):
    """One post-LN TransformerEncoderLayer (ReLU, eval mode). x: (B*S, E) bf16."""
    E = x.shape[-1]
    qkv = linear(x, p["in_proj_w"], p["in_proj_b"])                       # (B*S, 3E) bf16
    attn = attention(qkv.reshape(B, S, 3 * E), src_mask_add, pad_add, nhead)  # (B, S, E) bf16
    x = matmul_res_ln(attn.reshape(B * S, E), p["out_proj_w"], p["out_proj_b"],
                      x, p["norm1_g"], p["norm1_b"])                      # out-proj + norm1
    x = ffn_ln(x, p["lin1_w"], p["lin1_b"], p["lin2_w"], p["lin2_b"],
               p["norm2_g"], p["norm2_b"])                                # FFN + norm2
    return x


def poetry_model_forward(params, src, src_mask, src_padding_mask, nhead):
    S, B = src.shape
    E = params["pos_embedding"].shape[-1]
    V = params["emb_scaled"].shape[0]       # true (unpadded) vocab size, static

    # TokenEmbedding (sqrt(E) pre-folded) + PositionalEncoding; dropout = identity.
    # TODO(synk): embedding gather + positional add stay in XLA (pure glue, no tiled access pattern).
    tok = params["emb_scaled"][src]                                       # (S, B, E) f32
    src_emb = tok + params["pos_embedding"][:S]                           # (S, B, E) f32

    # Switch to batch-major once; layers work on the flat bf16 (B*S, E) token axis.
    x = jnp.transpose(src_emb, (1, 0, 2)).reshape(B * S, E).astype(jnp.bfloat16)

    # Additive attention mask; accept either float (additive) or bool (True = masked).
    if src_mask.dtype == jnp.bool_:
        mask = jnp.where(src_mask, NEG_INF, 0.0).astype(jnp.float32)
    else:
        mask = src_mask.astype(jnp.float32)                               # (S, S)
    if src_padding_mask.dtype == jnp.bool_:
        pad_add = jnp.where(src_padding_mask, NEG_INF, 0.0).astype(jnp.float32)
    else:
        pad_add = src_padding_mask.astype(jnp.float32)
    pad_add = pad_add.reshape(B, 1, S)                                    # broadcast over queries in-kernel

    for lp in params["layers"]:
        x = encoder_layer(x, lp, mask, pad_add, nhead, B, S)

    memory = jnp.transpose(x.reshape(B, S, E), (1, 0, 2)).astype(jnp.float32)  # (S, B, E)

    # Generator: row tile covers all B*S rows (capped) so the padded (E, Vpad)
    # weight streams from HBM exactly once.  f32 logits for parity with nn.Linear.
    # TODO(synk): emit bf16 logits here if the downstream consumer tolerates it.
    logit = linear(x, params["gen_w"], params["gen_b"],
                   out_dtype=jnp.float32, tm=min(B * S, 1024))            # (B*S, Vpad)
    logit = logit[:, :V]
    logit = jnp.transpose(logit.reshape(B, S, V), (1, 0, 2))              # (S, B, V)
    return memory, logit


# ---------------------------- parameter init ----------------------------

def xavier_uniform(key, shape):
    fan_out, fan_in = shape[0], shape[1]
    a = math.sqrt(6.0 / (fan_in + fan_out))
    return jax.random.uniform(key, shape, jnp.float32, minval=-a, maxval=a)


def make_pos_embedding(emb_size, maxlen=200):
    den = jnp.exp(-jnp.arange(0, emb_size, 2, dtype=jnp.float32)
                  * math.log(100) / emb_size)        # log(100), maxlen=200 per the reference module
    pos = jnp.arange(0, maxlen, dtype=jnp.float32).reshape(maxlen, 1)
    pe = jnp.zeros((maxlen, emb_size), jnp.float32)
    pe = pe.at[:, 0::2].set(jnp.sin(pos * den))
    pe = pe.at[:, 1::2].set(jnp.cos(pos * den))
    return pe[:, None, :]                            # (maxlen, 1, E)


def init_params(key, vocab_size, num_layers, emb_size, nhead, dim_feedforward):
    keys = iter(jax.random.split(key, 2 + 4 * num_layers))
    E = emb_size
    Dh = E // nhead
    qscale = 1.0 / math.sqrt(Dh)
    v_pad = _pad_to(vocab_size, 128)                 # lane-dense generator tiles

    gen_w = xavier_uniform(next(keys), (vocab_size, E)).T                 # (E, V)
    gen_w = jnp.pad(gen_w, ((0, 0), (0, v_pad - vocab_size)))             # (E, Vpad)

    params = {
        # sqrt(E) of TokenEmbedding folded into the table.
        "emb_scaled": xavier_uniform(next(keys), (vocab_size, E)) * math.sqrt(E),
        "pos_embedding": make_pos_embedding(E),
        # all matmul weights stored pre-transposed (K, N) and pre-cast to bf16
        "gen_w": gen_w.astype(jnp.bfloat16),
        "gen_b": jnp.zeros((v_pad,), jnp.float32),
        "layers": [],
    }
    for _ in range(num_layers):
        in_w = xavier_uniform(next(keys), (3 * E, E)).T                   # (E, 3E)
        in_w = in_w.at[:, :E].multiply(qscale)                            # fold 1/sqrt(Dh) into Q
        in_b = jnp.zeros((3 * E,), jnp.float32).at[:E].multiply(qscale)
        lp = {
            "in_proj_w": in_w.astype(jnp.bfloat16),
            "in_proj_b": in_b,
            "out_proj_w": xavier_uniform(next(keys), (E, E)).T.astype(jnp.bfloat16),
            "out_proj_b": jnp.zeros((E,), jnp.float32),
            "lin1_w": xavier_uniform(next(keys), (dim_feedforward, E)).T.astype(jnp.bfloat16),
            "lin1_b": jnp.zeros((dim_feedforward,), jnp.float32),
            "lin2_w": xavier_uniform(next(keys), (E, dim_feedforward)).T.astype(jnp.bfloat16),
            "lin2_b": jnp.zeros((E,), jnp.float32),
            "norm1_g": jnp.ones((E,), jnp.float32),
            "norm1_b": jnp.zeros((E,), jnp.float32),
            "norm2_g": jnp.ones((E,), jnp.float32),
            "norm2_b": jnp.zeros((E,), jnp.float32),
        }
        params["layers"].append(lp)
    return params


# --------------------------------- main ---------------------------------

if __name__ == "__main__":
    # Small, shape-consistent configuration (module defaults are 4 layers / 512 / 1024 / nhead 8).
    # EMB=256 with nhead=8 exercises the 128-lane head-group attention path (g=4);
    # VOCAB=100 exercises the 128-multiple vocab padding for the generator.
    VOCAB, EMB, NHEAD, FF, LAYERS = 100, 256, 8, 512, 2
    S, B = 8, 2

    key = jax.random.PRNGKey(0)
    k_params, k_src = jax.random.split(key)
    params = init_params(k_params, VOCAB, LAYERS, EMB, NHEAD, FF)

    src = jax.random.randint(k_src, (S, B), 0, VOCAB, dtype=jnp.int32)      # (S, B)
    src_mask = jnp.zeros((S, S), jnp.float32)                               # additive attn mask
    src_padding_mask = jnp.zeros((B, S), bool).at[1, S - 2:].set(True)      # (B, S) key padding

    # TODO(synk): dropout layers are identity here (eval-mode semantics).
    fwd = jax.jit(partial(poetry_model_forward, nhead=NHEAD))
    memory, logit = fwd(params, src, src_mask, src_padding_mask)
    jax.block_until_ready((memory, logit))

    assert memory.shape == (S, B, EMB) and logit.shape == (S, B, VOCAB)
    assert bool(jnp.all(jnp.isfinite(memory))) and bool(jnp.all(jnp.isfinite(logit)))
    print("KERNEL_OK")
</pallas_src>

<mosaic_0001>
module attributes {stable_mosaic.version = 11 : i64} {
  func.func @_matmul_res_ln_kernel(%arg0: i32, %arg1: memref<16x256xbf16, #tpu.memory_space<vmem>>, %arg2: memref<256x256xbf16, #tpu.memory_space<vmem>>, %arg3: memref<1x256xf32, #tpu.memory_space<vmem>>, %arg4: memref<16x256xbf16, #tpu.memory_space<vmem>>, %arg5: memref<1x256xf32, #tpu.memory_space<vmem>>, %arg6: memref<1x256xf32, #tpu.memory_space<vmem>>, %arg7: memref<16x256xbf16, #tpu.memory_space<vmem>>) attributes {dimension_semantics = [#tpu.dimension_semantics<parallel>], iteration_bounds = array<i64: 1>, scalar_prefetch = 0 : i64, scratch_operands = 0 : i64, tpu.core_type = #tpu.core_type<tc>, window_params = [{transform_indices = @transform_0, window_bounds = array<i64: 16, 256>}, {pipeline_mode = #tpu.pipeline_mode<synchronous>, transform_indices = @transform_1, window_bounds = array<i64: 256, 256>}, {pipeline_mode = #tpu.pipeline_mode<synchronous>, transform_indices = @transform_2, window_bounds = array<i64: 1, 256>}, {transform_indices = @transform_3, window_bounds = array<i64: 16, 256>}, {pipeline_mode = #tpu.pipeline_mode<synchronous>, transform_indices = @transform_4, window_bounds = array<i64: 1, 256>}, {pipeline_mode = #tpu.pipeline_mode<synchronous>, transform_indices = @transform_5, window_bounds = array<i64: 1, 256>}, {transform_indices = @transform_6, window_bounds = array<i64: 16, 256>}]} {
    %c0 = arith.constant 0 : index
    %c0_0 = arith.constant 0 : index
    %0 = vector.load %arg1[%c0, %c0_0] : memref<16x256xbf16, #tpu.memory_space<vmem>>, vector<16x256xbf16>
    %c0_1 = arith.constant 0 : index
    %c0_2 = arith.constant 0 : index
    %1 = vector.load %arg2[%c0_1, %c0_2] : memref<256x256xbf16, #tpu.memory_space<vmem>>, vector<256x256xbf16>
    %cst = arith.constant dense<0.000000e+00> : vector<16x256xf32>
    %2 = tpu.matmul %0, %1, %cst {dimension_numbers = #tpu.dot_dimension_numbers<[1], [0], [0], [1], [0, 0, 1, 1], [], []>} : vector<16x256xbf16>, vector<256x256xbf16>, vector<16x256xf32> -> vector<16x256xf32>
    %c0_3 = arith.constant 0 : index
    %c0_4 = arith.constant 0 : index
    %3 = vector.load %arg3[%c0_3, %c0_4] : memref<1x256xf32, #tpu.memory_space<vmem>>, vector<1x256xf32>
    %4 = vector.broadcast %3 : vector<1x256xf32> to vector<16x256xf32>
    %5 = arith.addf %2, %4 : vector<16x256xf32>
    %c0_5 = arith.constant 0 : index
    %c0_6 = arith.constant 0 : index
    %6 = vector.load %arg4[%c0_5, %c0_6] : memref<16x256xbf16, #tpu.memory_space<vmem>>, vector<16x256xbf16>
    %7 = arith.extf %6 : vector<16x256xbf16> to vector<16x256xf32>
    %8 = arith.addf %5, %7 : vector<16x256xf32>
    %c0_7 = arith.constant 0 : index
    %c0_8 = arith.constant 0 : index
    %9 = vector.load %arg5[%c0_7, %c0_8] : memref<1x256xf32, #tpu.memory_space<vmem>>, vector<1x256xf32>
    %c0_9 = arith.constant 0 : index
    %c0_10 = arith.constant 0 : index
    %10 = vector.load %arg6[%c0_9, %c0_10] : memref<1x256xf32, #tpu.memory_space<vmem>>, vector<1x256xf32>
    %cst_11 = arith.constant dense<0.000000e+00> : vector<16xf32>
    %11 = vector.multi_reduction <add>, %8, %cst_11 [1] : vector<16x256xf32> to vector<16xf32>
    %12 = vector.shape_cast %11 : vector<16xf32> to vector<16x1xf32>
    %cst_12 = arith.constant 2.560000e+02 : f32
    %13 = vector.broadcast %cst_12 : f32 to vector<16x1xf32>
    %14 = arith.divf %12, %13 : vector<16x1xf32>
    %15 = vector.broadcast %14 : vector<16x1xf32> to vector<16x256xf32>
    %16 = arith.subf %8, %15 : vector<16x256xf32>
    %17 = arith.mulf %16, %16 : vector<16x256xf32>
    %cst_13 = arith.constant dense<0.000000e+00> : vector<16xf32>
    %18 = vector.multi_reduction <add>, %17, %cst_13 [1] : vector<16x256xf32> to vector<16xf32>
    %19 = vector.shape_cast %18 : vector<16xf32> to vector<16x1xf32>
    %cst_14 = arith.constant 2.560000e+02 : f32
    %20 = vector.broadcast %cst_14 : f32 to vector<16x1xf32>
    %21 = arith.divf %19, %20 : vector<16x1xf32>
    %22 = vector.broadcast %14 : vector<16x1xf32> to vector<16x256xf32>
    %23 = arith.subf %8, %22 : vector<16x256xf32>
    %cst_15 = arith.constant 9.99999974E-6 : f32
    %24 = vector.broadcast %cst_15 : f32 to vector<16x1xf32>
    %25 = arith.addf %21, %24 : vector<16x1xf32>
    %26 = math.rsqrt %25 : vector<16x1xf32>
    %27 = vector.broadcast %26 : vector<16x1xf32> to vector<16x256xf32>
    %28 = arith.mulf %23, %27 : vector<16x256xf32>
    %29 = vector.broadcast %9 : vector<1x256xf32> to vector<16x256xf32>
    %30 = arith.mulf %28, %29 : vector<16x256xf32>
    %31 = vector.broadcast %10 : vector<1x256xf32> to vector<16x256xf32>
    %32 = arith.addf %30, %31 : vector<16x256xf32>
    %33 = arith.truncf %32 : vector<16x256xf32> to vector<16x256xbf16>
    %c0_16 = arith.constant 0 : index
    %c0_17 = arith.constant 0 : index
    %34 = vector.load %arg7[%c0_16, %c0_17] : memref<16x256xbf16, #tpu.memory_space<vmem>>, vector<16x256xbf16>
    tpu.vector_store %arg7[%c0_16, %c0_17], %33 {strides = array<i32>} : memref<16x256xbf16, #tpu.memory_space<vmem>>, vector<16x256xbf16>,
    return
  }
  func.func @transform_0(%arg0: i32) -> (i32, i32) {
    %c0_i32 = arith.constant 0 : i32
    %c0_i32_0 = arith.constant 0 : i32
    return %arg0, %c0_i32 : i32, i32
  }
  func.func @transform_1(%arg0: i32) -> (i32, i32) {
    %c0_i32 = arith.constant 0 : i32
    %c0_i32_0 = arith.constant 0 : i32
    %c0_i32_1 = arith.constant 0 : i32
    return %c0_i32, %c0_i32_0 : i32, i32
  }
  func.func @transform_2(%arg0: i32) -> (i32, i32) {
    %c0_i32 = arith.constant 0 : i32
    %c0_i32_0 = arith.constant 0 : i32
    %c0_i32_1 = arith.constant 0 : i32
    return %c0_i32, %c0_i32_0 : i32, i32
  }
  func.func @transform_3(%arg0: i32) -> (i32, i32) {
    %c0_i32 = arith.constant 0 : i32
    %c0_i32_0 = arith.constant 0 : i32
    return %arg0, %c0_i32 : i32, i32
  }
  func.func @transform_4(%arg0: i32) -> (i32, i32) {
    %c0_i32 = arith.constant 0 : i32
    %c0_i32_0 = arith.constant 0 : i32
    %c0_i32_1 = arith.constant 0 : i32
    return %c0_i32, %c0_i32_0 : i32, i32
  }
  func.func @transform_5(%arg0: i32) -> (i32, i32) {
    %c0_i32 = arith.constant 0 : i32
    %c0_i32_0 = arith.constant 0 : i32
    %c0_i32_1 = arith.constant 0 : i32
    return %c0_i32, %c0_i32_0 : i32, i32
  }
  func.func @transform_6(%arg0: i32) -> (i32, i32) {
    %c0_i32 = arith.constant 0 : i32
    %c0_i32_0 = arith.constant 0 : i32
    return %arg0, %c0_i32 : i32, i32
  }
}

module attributes {stable_mosaic.version = 11 : i64} {
  func.func @_ffn_ln_kernel(%arg0: i32, %arg1: memref<16x256xbf16, #tpu.memory_space<vmem>>, %arg2: memref<256x512xbf16, #tpu.memory_space<vmem>>, %arg3: memref<1x512xf32, #tpu.memory_space<vmem>>, %arg4: memref<512x256xbf16, #tpu.memory_space<vmem>>, %arg5: memref<1x256xf32, #tpu.memory_space<vmem>>, %arg6: memref<1x256xf32, #tpu.memory_space<vmem>>, %arg7: memref<1x256xf32, #tpu.memory_space<vmem>>, %arg8: memref<16x256xbf16, #tpu.memory_space<vmem>>) attributes {dimension_semantics = [#tpu.dimension_semantics<parallel>], iteration_bounds = array<i64: 1>, scalar_prefetch = 0 : i64, scratch_operands = 0 : i64, tpu.core_type = #tpu.core_type<tc>, window_params = [{transform_indices = @transform_0, window_bounds = array<i64: 16, 256>}, {pipeline_mode = #tpu.pipeline_mode<synchronous>, transform_indices = @transform_1, window_bounds = array<i64: 256, 512>}, {pipeline_mode = #tpu.pipeline_mode<synchronous>, transform_indices = @transform_2, window_bounds = array<i64: 1, 512>}, {pipeline_mode = #tpu.pipeline_mode<synchronous>, transform_indices = @transform_3, window_bounds = array<i64: 512, 256>}, {pipeline_mode = #tpu.pipeline_mode<synchronous>, transform_indices = @transform_4, window_bounds = array<i64: 1, 256>}, {pipeline_mode = #tpu.pipeline_mode<synchronous>, transform_indices = @transform_5, window_bounds = array<i64: 1, 256>}, {pipeline_mode = #tpu.pipeline_mode<synchronous>, transform_indices = @transform_6, window_bounds = array<i64: 1, 256>}, {transform_indices = @transform_7, window_bounds = array<i64: 16, 256>}]} {
    %c0 = arith.constant 0 : index
    %c0_0 = arith.constant 0 : index
    %0 = vector.load %arg1[%c0, %c0_0] : memref<16x256xbf16, #tpu.memory_space<vmem>>, vector<16x256xbf16>
    %c0_1 = arith.constant 0 : index
    %c0_2 = arith.constant 0 : index
    %1 = vector.load %arg2[%c0_1, %c0_2] : memref<256x512xbf16, #tpu.memory_space<vmem>>, vector<256x512xbf16>
    %cst = arith.constant dense<0.000000e+00> : vector<16x512xf32>
    %2 = tpu.matmul %0, %1, %cst {dimension_numbers = #tpu.dot_dimension_numbers<[1], [0], [0], [1], [0, 0, 1, 1], [], []>} : vector<16x256xbf16>, vector<256x512xbf16>, vector<16x512xf32> -> vector<16x512xf32>
    %c0_3 = arith.constant 0 : index
    %c0_4 = arith.constant 0 : index
    %3 = vector.load %arg3[%c0_3, %c0_4] : memref<1x512xf32, #tpu.memory_space<vmem>>, vector<1x512xf32>
    %4 = vector.broadcast %3 : vector<1x512xf32> to vector<16x512xf32>
    %5 = arith.addf %2, %4 : vector<16x512xf32>
    %cst_5 = arith.constant 0.000000e+00 : f32
    %6 = vector.broadcast %cst_5 : f32 to vector<16x512xf32>
    %7 = arith.maximumf %5, %6 : vector<16x512xf32>
    %8 = arith.truncf %7 : vector<16x512xf32> to vector<16x512xbf16>
    %c0_6 = arith.constant 0 : index
    %c0_7 = arith.constant 0 : index
    %9 = vector.load %arg4[%c0_6, %c0_7] : memref<512x256xbf16, #tpu.memory_space<vmem>>, vector<512x256xbf16>
    %cst_8 = arith.constant dense<0.000000e+00> : vector<16x256xf32>
    %10 = tpu.matmul %8, %9, %cst_8 {dimension_numbers = #tpu.dot_dimension_numbers<[1], [0], [0], [1], [0, 0, 1, 1], [], []>} : vector<16x512xbf16>, vector<512x256xbf16>, vector<16x256xf32> -> vector<16x256xf32>
    %c0_9 = arith.constant 0 : index
    %c0_10 = arith.constant 0 : index
    %11 = vector.load %arg5[%c0_9, %c0_10] : memref<1x256xf32, #tpu.memory_space<vmem>>, vector<1x256xf32>
    %12 = vector.broadcast %11 : vector<1x256xf32> to vector<16x256xf32>
    %13 = arith.addf %10, %12 : vector<16x256xf32>
    %14 = arith.extf %0 : vector<16x256xbf16> to vector<16x256xf32>
    %15 = arith.addf %13, %14 : vector<16x256xf32>
    %c0_11 = arith.constant 0 : index
    %c0_12 = arith.constant 0 : index
    %16 = vector.load %arg6[%c0_11, %c0_12] : memref<1x256xf32, #tpu.memory_space<vmem>>, vector<1x256xf32>
    %c0_13 = arith.constant 0 : index
    %c0_14 = arith.constant 0 : index
    %17 = vector.load %arg7[%c0_13, %c0_14] : memref<1x256xf32, #tpu.memory_space<vmem>>, vector<1x256xf32>
    %cst_15 = arith.constant dense<0.000000e+00> : vector<16xf32>
    %18 = vector.multi_reduction <add>, %15, %cst_15 [1] : vector<16x256xf32> to vector<16xf32>
    %19 = vector.shape_cast %18 : vector<16xf32> to vector<16x1xf32>
    %cst_16 = arith.constant 2.560000e+02 : f32
    %20 = vector.broadcast %cst_16 : f32 to vector<16x1xf32>
    %21 = arith.divf %19, %20 : vector<16x1xf32>
    %22 = vector.broadcast %21 : vector<16x1xf32> to vector<16x256xf32>
    %23 = arith.subf %15, %22 : vector<16x256xf32>
    %24 = arith.mulf %23, %23 : vector<16x256xf32>
    %cst_17 = arith.constant dense<0.000000e+00> : vector<16xf32>
    %25 = vector.multi_reduction <add>, %24, %cst_17 [1] : vector<16x256xf32> to vector<16xf32>
    %26 = vector.shape_cast %25 : vector<16xf32> to vector<16x1xf32>
    %cst_18 = arith.constant 2.560000e+02 : f32
    %27 = vector.broadcast %cst_18 : f32 to vector<16x1xf32>
    %28 = arith.divf %26, %27 : vector<16x1xf32>
    %29 = vector.broadcast %21 : vector<16x1xf32> to vector<16x256xf32>
    %30 = arith.subf %15, %29 : vector<16x256xf32>
    %cst_19 = arith.constant 9.99999974E-6 : f32
    %31 = vector.broadcast %cst_19 : f32 to vector<16x1xf32>
    %32 = arith.addf %28, %31 : vector<16x1xf32>
    %33 = math.rsqrt %32 : vector<16x1xf32>
    %34 = vector.broadcast %33 : vector<16x1xf32> to vector<16x256xf32>
    %35 = arith.mulf %30, %34 : vector<16x256xf32>
    %36 = vector.broadcast %16 : vector<1x256xf32> to vector<16x256xf32>
    %37 = arith.mulf %35, %36 : vector<16x256xf32>
    %38 = vector.broadcast %17 : vector<1x256xf32> to vector<16x256xf32>
    %39 = arith.addf %37, %38 : vector<16x256xf32>
    %40 = arith.truncf %39 : vector<16x256xf32> to vector<16x256xbf16>
    %c0_20 = arith.constant 0 : index
    %c0_21 = arith.constant 0 : index
    %41 = vector.load %arg8[%c0_20, %c0_21] : memref<16x256xbf16, #tpu.memory_space<vmem>>, vector<16x256xbf16>
    tpu.vector_store %arg8[%c0_20, %c0_21], %40 {strides = array<i32>} : memref<16x256xbf16, #tpu.memory_space<vmem>>, vector<16x256xbf16>,
    return
  }
  func.func @transform_0(%arg0: i32) -> (i32, i32) {
    %c0_i32 = arith.constant 0 : i32
    %c0_i32_0 = arith.constant 0 : i32
    return %arg0, %c0_i32 : i32, i32
  }
  func.func @transform_1(%arg0: i32) -> (i32, i32) {
    %c0_i32 = arith.constant 0 : i32
    %c0_i32_0 = arith.constant 0 : i32
    %c0_i32_1 = arith.constant 0 : i32
    return %c0_i32, %c0_i32_0 : i32, i32
  }
  func.func @transform_2(%arg0: i32) -> (i32, i32) {
    %c0_i32 = arith.constant 0 : i32
    %c0_i32_0 = arith.constant 0 : i32
    %c0_i32_1 = arith.constant 0 : i32
    return %c0_i32, %c0_i32_0 : i32, i32
  }
  func.func @transform_3(%arg0: i32) -> (i32, i32) {
    %c0_i32 = arith.constant 0 : i32
    %c0_i32_0 = arith.constant 0 : i32
    %c0_i32_1 = arith.constant 0 : i32
    return %c0_i32, %c0_i32_0 : i32, i32
  }
  func.func @transform_4(%arg0: i32) -> (i32, i32) {
    %c0_i32 = arith.constant 0 : i32
    %c0_i32_0 = arith.constant 0 : i32
    %c0_i32_1 = arith.constant 0 : i32
    return %c0_i32, %c0_i32_0 : i32, i32
  }
  func.func @transform_5(%arg0: i32) -> (i32, i32) {
    %c0_i32 = arith.constant 0 : i32
    %c0_i32_0 = arith.constant 0 : i32
    %c0_i32_1 = arith.constant 0 : i32
    return %c0_i32, %c0_i32_0 : i32, i32
  }
  func.func @transform_6(%arg0: i32) -> (i32, i32) {
    %c0_i32 = arith.constant 0 : i32
    %c0_i32_0 = arith.constant 0 : i32
    %c0_i32_1 = arith.constant 0 : i32
    return %c0_i32, %c0_i32_0 : i32, i32
  }
  func.func @transform_7(%arg0: i32) -> (i32, i32) {
    %c0_i32 = arith.constant 0 : i32
    %c0_i32_0 = arith.constant 0 : i32
    return %arg0, %c0_i32 : i32, i32
  }
}

module attributes {stable_mosaic.version = 11 : i64} {
  func.func @_linear_1k_kernel(%arg0: i32, %arg1: i32, %arg2: memref<16x256xbf16, #tpu.memory_space<vmem>>, %arg3: memref<256x384xbf16, #tpu.memory_space<vmem>>, %arg4: memref<1x384xf32, #tpu.memory_space<vmem>>, %arg5: memref<16x384xbf16, #tpu.memory_space<vmem>>) attributes {dimension_semantics = [#tpu.dimension_semantics<parallel>, #tpu.dimension_semantics<parallel>], iteration_bounds = array<i64: 1, 2>, scalar_prefetch = 0 : i64, scratch_operands = 0 : i64, tpu.core_type = #tpu.core_type<tc>, window_params = [{transform_indices = @transform_0, window_bounds = array<i64: 16, 256>}, {transform_indices = @transform_1, window_bounds = array<i64: 256, 384>}, {transform_indices = @transform_2, window_bounds = array<i64: 1, 384>}, {transform_indices = @transform_3, window_bounds = array<i64: 16, 384>}]} {
    %c0 = arith.constant 0 : index
    %c0_0 = arith.constant 0 : index
    %0 = vector.load %arg2[%c0, %c0_0] : memref<16x256xbf16, #tpu.memory_space<vmem>>, vector<16x256xbf16>
    %c0_1 = arith.constant 0 : index
    %c0_2 = arith.constant 0 : index
    %1 = vector.load %arg3[%c0_1, %c0_2] : memref<256x384xbf16, #tpu.memory_space<vmem>>, vector<256x384xbf16>
    %cst = arith.constant dense<0.000000e+00> : vector<16x384xf32>
    %2 = tpu.matmul %0, %1, %cst {dimension_numbers = #tpu.dot_dimension_numbers<[1], [0], [0], [1], [0, 0, 1, 1], [], []>} : vector<16x256xbf16>, vector<256x384xbf16>, vector<16x384xf32> -> vector<16x384xf32>
    %c0_3 = arith.constant 0 : index
    %c0_4 = arith.constant 0 : index
    %3 = vector.load %arg4[%c0_3, %c0_4] : memref<1x384xf32, #tpu.memory_space<vmem>>, vector<1x384xf32>
    %4 = vector.broadcast %3 : vector<1x384xf32> to vector<16x384xf32>
    %5 = arith.addf %2, %4 : vector<16x384xf32>
    %6 = arith.truncf %5 : vector<16x384xf32> to vector<16x384xbf16>
    %c0_5 = arith.constant 0 : index
    %c0_6 = arith.constant 0 : index
    %7 = vector.load %arg5[%c0_5, %c0_6] : memref<16x384xbf16, #tpu.memory_space<vmem>>, vector<16x384xbf16>
    tpu.vector_store %arg5[%c0_5, %c0_6], %6 {strides = array<i32>} : memref<16x384xbf16, #tpu.memory_space<vmem>>, vector<16x384xbf16>,
    return
  }
  func.func @transform_0(%arg0: i32, %arg1: i32) -> (i32, i32) {
    %c0_i32 = arith.constant 0 : i32
    %c0_i32_0 = arith.constant 0 : i32
    return %arg0, %c0_i32 : i32, i32
  }
  func.func @transform_1(%arg0: i32, %arg1: i32) -> (i32, i32) {
    %c0_i32 = arith.constant 0 : i32
    %c0_i32_0 = arith.constant 0 : i32
    return %c0_i32, %arg1 : i32, i32
  }
  func.func @transform_2(%arg0: i32, %arg1: i32) -> (i32, i32) {
    %c0_i32 = arith.constant 0 : i32
    %c0_i32_0 = arith.constant 0 : i32
    return %c0_i32, %arg1 : i32, i32
  }
  func.func @transform_3(%arg0: i32, %arg1: i32) -> (i32, i32) {
    %c0_i32 = arith.constant 0 : i32
    return %arg0, %arg1 : i32, i32
  }
}

module attributes {stable_mosaic.version = 11 : i64} {
  func.func @_attn_kernel(%arg0: i32, %arg1: i32, %arg2: memref<1x8x128xbf16, #tpu.memory_space<vmem>>, %arg3: memref<1x8x128xbf16, #tpu.memory_space<vmem>>, %arg4: memref<1x8x128xbf16, #tpu.memory_space<vmem>>, %arg5: memref<8x8xf32, #tpu.memory_space<vmem>>, %arg6: memref<1x1x8xf32, #tpu.memory_space<vmem>>, %arg7: memref<1x8x128xbf16, #tpu.memory_space<vmem>>) attributes {dimension_semantics = [#tpu.dimension_semantics<parallel>, #tpu.dimension_semantics<parallel>], iteration_bounds = array<i64: 2, 2>, scalar_prefetch = 0 : i64, scratch_operands = 0 : i64, tpu.core_type = #tpu.core_type<tc>, window_params = [{transform_indices = @transform_0, window_bounds = array<i64: 1, 8, 128>}, {transform_indices = @transform_1, window_bounds = array<i64: 1, 8, 128>}, {transform_indices = @transform_2, window_bounds = array<i64: 1, 8, 128>}, {pipeline_mode = #tpu.pipeline_mode<synchronous>, transform_indices = @transform_3, window_bounds = array<i64: 8, 8>}, {transform_indices = @transform_4, window_bounds = array<i64: 1, 1, 8>}, {transform_indices = @transform_5, window_bounds = array<i64: 1, 8, 128>}]} {
    %c0 = arith.constant 0 : index
    %c0_0 = arith.constant 0 : index
    %0 = vector.load %arg5[%c0, %c0_0] : memref<8x8xf32, #tpu.memory_space<vmem>>, vector<8x8xf32>
    %c0_1 = arith.constant 0 : index
    %c0_2 = arith.constant 0 : index
    %c0_3 = arith.constant 0 : index
    %1 = vector.load %arg6[%c0_1, %c0_2, %c0_3] : memref<1x1x8xf32, #tpu.memory_space<vmem>>, vector<1x1x8xf32>
    %2 = vector.shape_cast %1 : vector<1x1x8xf32> to vector<1x8xf32>
    %3 = vector.broadcast %2 : vector<1x8xf32> to vector<8x8xf32>
    %4 = arith.addf %0, %3 : vector<8x8xf32>
    %c0_4 = arith.constant 0 : index
    %c0_5 = arith.constant 0 : index
    %c0_6 = arith.constant 0 : index
    %5 = vector.load %arg2[%c0_4, %c0_5, %c0_6] : memref<1x8x128xbf16, #tpu.memory_space<vmem>>, vector<1x8x128xbf16>
    %6 = vector.shape_cast %5 : vector<1x8x128xbf16> to vector<8x128xbf16>
    %c0_7 = arith.constant 0 : index
    %c0_8 = arith.constant 0 : index
    %c0_9 = arith.constant 0 : index
    %7 = vector.load %arg3[%c0_7, %c0_8, %c0_9] : memref<1x8x128xbf16, #tpu.memory_space<vmem>>, vector<1x8x128xbf16>
    %8 = vector.shape_cast %7 : vector<1x8x128xbf16> to vector<8x128xbf16>
    %c0_10 = arith.constant 0 : index
    %c0_11 = arith.constant 0 : index
    %c0_12 = arith.constant 0 : index
    %9 = vector.load %arg4[%c0_10, %c0_11, %c0_12] : memref<1x8x128xbf16, #tpu.memory_space<vmem>>, vector<1x8x128xbf16>
    %10 = vector.shape_cast %9 : vector<1x8x128xbf16> to vector<8x128xbf16>
    %11 = vector.extract_strided_slice %6 {offsets = [0, 0], sizes = [8, 32], strides = [1, 1]} : vector<8x128xbf16> to vector<8x32xbf16>
    %12 = vector.extract_strided_slice %8 {offsets = [0, 0], sizes = [8, 32], strides = [1, 1]} : vector<8x128xbf16> to vector<8x32xbf16>
    %cst = arith.constant dense<0.000000e+00> : vector<8x8xf32>
    %13 = tpu.matmul %11, %12, %cst {dimension_numbers = #tpu.dot_dimension_numbers<[1], [1], [0], [0], [0, 0, 1, 0], [], []>} : vector<8x32xbf16>, vector<8x32xbf16>, vector<8x8xf32> -> vector<8x8xf32>
    %14 = arith.addf %13, %4 : vector<8x8xf32>
    %cst_13 = arith.constant dense<0xFF800000> : vector<8xf32>
    %15 = vector.multi_reduction <maximumf>, %14, %cst_13 [1] : vector<8x8xf32> to vector<8xf32>
    %16 = vector.shape_cast %15 : vector<8xf32> to vector<8x1xf32>
    %17 = vector.broadcast %16 : vector<8x1xf32> to vector<8x8xf32>
    %18 = arith.subf %14, %17 : vector<8x8xf32>
    %19 = math.exp %18 : vector<8x8xf32>
    %cst_14 = arith.constant dense<0.000000e+00> : vector<8xf32>
    %20 = vector.multi_reduction <add>, %19, %cst_14 [1] : vector<8x8xf32> to vector<8xf32>
    %21 = vector.shape_cast %20 : vector<8xf32> to vector<8x1xf32>
    %22 = tpu.reciprocal %21 {approx = true} : vector<8x1xf32> -> vector<8x1xf32>
    %23 = vector.broadcast %22 : vector<8x1xf32> to vector<8x8xf32>
    %24 = arith.mulf %19, %23 : vector<8x8xf32>
    %25 = arith.truncf %24 : vector<8x8xf32> to vector<8x8xbf16>
    %26 = vector.extract_strided_slice %10 {offsets = [0, 0], sizes = [8, 32], strides = [1, 1]} : vector<8x128xbf16> to vector<8x32xbf16>
    %cst_15 = arith.constant dense<0.000000e+00> : vector<8x32xf32>
    %27 = tpu.matmul %25, %26, %cst_15 {dimension_numbers = #tpu.dot_dimension_numbers<[1], [0], [0], [1], [0, 0, 1, 1], [], []>} : vector<8x8xbf16>, vector<8x32xbf16>, vector<8x32xf32> -> vector<8x32xf32>
    %28 = vector.extract_strided_slice %6 {offsets = [0, 32], sizes = [8, 32], strides = [1, 1]} : vector<8x128xbf16> to vector<8x32xbf16>
    %29 = vector.extract_strided_slice %8 {offsets = [0, 32], sizes = [8, 32], strides = [1, 1]} : vector<8x128xbf16> to vector<8x32xbf16>
    %cst_16 = arith.constant dense<0.000000e+00> : vector<8x8xf32>
    %30 = tpu.matmul %28, %29, %cst_16 {dimension_numbers = #tpu.dot_dimension_numbers<[1], [1], [0], [0], [0, 0, 1, 0], [], []>} : vector<8x32xbf16>, vector<8x32xbf16>, vector<8x8xf32> -> vector<8x8xf32>
    %31 = arith.addf %30, %4 : vector<8x8xf32>
    %cst_17 = arith.constant dense<0xFF800000> : vector<8xf32>
    %32 = vector.multi_reduction <maximumf>, %31, %cst_17 [1] : vector<8x8xf32> to vector<8xf32>
    %33 = vector.shape_cast %32 : vector<8xf32> to vector<8x1xf32>
    %34 = vector.broadcast %33 : vector<8x1xf32> to vector<8x8xf32>
    %35 = arith.subf %31, %34 : vector<8x8xf32>
    %36 = math.exp %35 : vector<8x8xf32>
    %cst_18 = arith.constant dense<0.000000e+00> : vector<8xf32>
    %37 = vector.multi_reduction <add>, %36, %cst_18 [1] : vector<8x8xf32> to vector<8xf32>
    %38 = vector.shape_cast %37 : vector<8xf32> to vector<8x1xf32>
    %39 = tpu.reciprocal %38 {approx = true} : vector<8x1xf32> -> vector<8x1xf32>
    %40 = vector.broadcast %39 : vector<8x1xf32> to vector<8x8xf32>
    %41 = arith.mulf %36, %40 : vector<8x8xf32>
    %42 = arith.truncf %41 : vector<8x8xf32> to vector<8x8xbf16>
    %43 = vector.extract_strided_slice %10 {offsets = [0, 32], sizes = [8, 32], strides = [1, 1]} : vector<8x128xbf16> to vector<8x32xbf16>
    %cst_19 = arith.constant dense<0.000000e+00> : vector<8x32xf32>
    %44 = tpu.matmul %42, %43, %cst_19 {dimension_numbers = #tpu.dot_dimension_numbers<[1], [0], [0], [1], [0, 0, 1, 1], [], []>} : vector<8x8xbf16>, vector<8x32xbf16>, vector<8x32xf32> -> vector<8x32xf32>
    %45 = vector.extract_strided_slice %6 {offsets = [0, 64], sizes = [8, 32], strides = [1, 1]} : vector<8x128xbf16> to vector<8x32xbf16>
    %46 = vector.extract_strided_slice %8 {offsets = [0, 64], sizes = [8, 32], strides = [1, 1]} : vector<8x128xbf16> to vector<8x32xbf16>
    %cst_20 = arith.constant dense<0.000000e+00> : vector<8x8xf32>
    %47 = tpu.matmul %45, %46, %cst_20 {dimension_numbers = #tpu.dot_dimension_numbers<[1], [1], [0], [0], [0, 0, 1, 0], [], []>} : vector<8x32xbf16>, vector<8x32xbf16>, vector<8x8xf32> -> vector<8x8xf32>
    %48 = arith.addf %47, %4 : vector<8x8xf32>
    %cst_21 = arith.constant dense<0xFF800000> : vector<8xf32>
    %49 = vector.multi_reduction <maximumf>, %48, %cst_21 [1] : vector<8x8xf32> to vector<8xf32>
    %50 = vector.shape_cast %49 : vector<8xf32> to vector<8x1xf32>
    %51 = vector.broadcast %50 : vector<8x1xf32> to vector<8x8xf32>
    %52 = arith.subf %48, %51 : vector<8x8xf32>
    %53 = math.exp %52 : vector<8x8xf32>
    %cst_22 = arith.constant dense<0.000000e+00> : vector<8xf32>
    %54 = vector.multi_reduction <add>, %53, %cst_22 [1] : vector<8x8xf32> to vector<8xf32>
    %55 = vector.shape_cast %54 : vector<8xf32> to vector<8x1xf32>
    %56 = tpu.reciprocal %55 {approx = true} : vector<8x1xf32> -> vector<8x1xf32>
    %57 = vector.broadcast %56 : vector<8x1xf32> to vector<8x8xf32>
    %58 = arith.mulf %53, %57 : vector<8x8xf32>
    %59 = arith.truncf %58 : vector<8x8xf32> to vector<8x8xbf16>
    %60 = vector.extract_strided_slice %10 {offsets = [0, 64], sizes = [8, 32], strides = [1, 1]} : vector<8x128xbf16> to vector<8x32xbf16>
    %cst_23 = arith.constant dense<0.000000e+00> : vector<8x32xf32>
    %61 = tpu.matmul %59, %60, %cst_23 {dimension_numbers = #tpu.dot_dimension_numbers<[1], [0], [0], [1], [0, 0, 1, 1], [], []>} : vector<8x8xbf16>, vector<8x32xbf16>, vector<8x32xf32> -> vector<8x32xf32>
    %62 = vector.extract_strided_slice %6 {offsets = [0, 96], sizes = [8, 32], strides = [1, 1]} : vector<8x128xbf16> to vector<8x32xbf16>
    %63 = vector.extract_strided_slice %8 {offsets = [0, 96], sizes = [8, 32], strides = [1, 1]} : vector<8x128xbf16> to vector<8x32xbf16>
    %cst_24 = arith.constant dense<0.000000e+00> : vector<8x8xf32>
    %64 = tpu.matmul %62, %63, %cst_24 {dimension_numbers = #tpu.dot_dimension_numbers<[1], [1], [0], [0], [0, 0, 1, 0], [], []>} : vector<8x32xbf16>, vector<8x32xbf16>, vector<8x8xf32> -> vector<8x8xf32>
    %65 = arith.addf %64, %4 : vector<8x8xf32>
    %cst_25 = arith.constant dense<0xFF800000> : vector<8xf32>
    %66 = vector.multi_reduction <maximumf>, %65, %cst_25 [1] : vector<8x8xf32> to vector<8xf32>
    %67 = vector.shape_cast %66 : vector<8xf32> to vector<8x1xf32>
    %68 = vector.broadcast %67 : vector<8x1xf32> to vector<8x8xf32>
    %69 = arith.subf %65, %68 : vector<8x8xf32>
    %70 = math.exp %69 : vector<8x8xf32>
    %cst_26 = arith.constant dense<0.000000e+00> : vector<8xf32>
    %71 = vector.multi_reduction <add>, %70, %cst_26 [1] : vector<8x8xf32> to vector<8xf32>
    %72 = vector.shape_cast %71 : vector<8xf32> to vector<8x1xf32>
    %73 = tpu.reciprocal %72 {approx = true} : vector<8x1xf32> -> vector<8x1xf32>
    %74 = vector.broadcast %73 : vector<8x1xf32> to vector<8x8xf32>
    %75 = arith.mulf %70, %74 : vector<8x8xf32>
    %76 = arith.truncf %75 : vector<8x8xf32> to vector<8x8xbf16>
    %77 = vector.extract_strided_slice %10 {offsets = [0, 96], sizes = [8, 32], strides = [1, 1]} : vector<8x128xbf16> to vector<8x32xbf16>
    %cst_27 = arith.constant dense<0.000000e+00> : vector<8x32xf32>
    %78 = tpu.matmul %76, %77, %cst_27 {dimension_numbers = #tpu.dot_dimension_numbers<[1], [0], [0], [1], [0, 0, 1, 1], [], []>} : vector<8x8xbf16>, vector<8x32xbf16>, vector<8x32xf32> -> vector<8x32xf32>
    %79 = tpu.concatenate %27, %44, %61, %78 in 1 : vector<8x32xf32>, vector<8x32xf32>, vector<8x32xf32>, vector<8x32xf32> -> vector<8x128xf32>
    %80 = arith.truncf %79 : vector<8x128xf32> to vector<8x128xbf16>
    %c0_28 = arith.constant 0 : index
    %c0_29 = arith.constant 0 : index
    %c0_30 = arith.constant 0 : index
    %81 = vector.load %arg7[%c0_28, %c0_29, %c0_30] : memref<1x8x128xbf16, #tpu.memory_space<vmem>>, vector<1x8x128xbf16>
    %82 = vector.shape_cast %81 : vector<1x8x128xbf16> to vector<8x128xbf16>
    %83 = vector.shape_cast %80 : vector<8x128xbf16> to vector<1x8x128xbf16>
    tpu.vector_store %arg7[%c0_28, %c0_29, %c0_30], %83 {strides = array<i32>} : memref<1x8x128xbf16, #tpu.memory_space<vmem>>, vector<1x8x128xbf16>,
    return
  }
  func.func @transform_0(%arg0: i32, %arg1: i32) -> (i32, i32, i32) {
    %c0_i32 = arith.constant 0 : i32
    %c0_i32_0 = arith.constant 0 : i32
    return %arg0, %c0_i32, %arg1 : i32, i32, i32
  }
  func.func @transform_1(%arg0: i32, %arg1: i32) -> (i32, i32, i32) {
    %c2_i32 = arith.constant 2 : i32
    %0 = arith.addi %c2_i32, %arg1 : i32
    %c0_i32 = arith.constant 0 : i32
    %c0_i32_0 = arith.constant 0 : i32
    return %arg0, %c0_i32, %0 : i32, i32, i32
  }
  func.func @transform_2(%arg0: i32, %arg1: i32) -> (i32, i32, i32) {
    %c4_i32 = arith.constant 4 : i32
    %0 = arith.addi %c4_i32, %arg1 : i32
    %c0_i32 = arith.constant 0 : i32
    %c0_i32_0 = arith.constant 0 : i32
    return %arg0, %c0_i32, %0 : i32, i32, i32
  }
  func.func @transform_3(%arg0: i32, %arg1: i32) -> (i32, i32) {
    %c0_i32 = arith.constant 0 : i32
    %c0_i32_0 = arith.constant 0 : i32
    %c0_i32_1 = arith.constant 0 : i32
    return %c0_i32, %c0_i32_0 : i32, i32
  }
  func.func @transform_4(%arg0: i32, %arg1: i32) -> (i32, i32, i32) {
    %c0_i32 = arith.constant 0 : i32
    %c0_i32_0 = arith.constant 0 : i32
    %c0_i32_1 = arith.constant 0 : i32
    return %arg0, %c0_i32, %c0_i32_0 : i32, i32, i32
  }
  func.func @transform_5(%arg0: i32, %arg1: i32) -> (i32, i32, i32) {
    %c0_i32 = arith.constant 0 : i32
    %c0_i32_0 = arith.constant 0 : i32
    return %arg0, %c0_i32, %arg1 : i32, i32, i32
  }
}

module attributes {stable_mosaic.version = 11 : i64} {
  func.func @_matmul_res_ln_kernel(%arg0: i32, %arg1: memref<16x256xbf16, #tpu.memory_space<vmem>>, %arg2: memref<256x256xbf16, #tpu.memory_space<vmem>>, %arg3: memref<1x256xf32, #tpu.memory_space<vmem>>, %arg4: memref<16x256xbf16, #tpu.memory_space<vmem>>, %arg5: memref<1x256xf32, #tpu.memory_space<vmem>>, %arg6: memref<1x256xf32, #tpu.memory_space<vmem>>, %arg7: memref<16x256xbf16, #tpu.memory_space<vmem>>) attributes {dimension_semantics = [#tpu.dimension_semantics<parallel>], iteration_bounds = array<i64: 1>, scalar_prefetch = 0 : i64, scratch_operands = 0 : i64, tpu.core_type = #tpu.core_type<tc>, window_params = [{transform_indices = @transform_0, window_bounds = array<i64: 16, 256>}, {pipeline_mode = #tpu.pipeline_mode<synchronous>, transform_indices = @transform_1, window_bounds = array<i64: 256, 256>}, {pipeline_mode = #tpu.pipeline_mode<synchronous>, transform_indices = @transform_2, window_bounds = array<i64: 1, 256>}, {transform_indices = @transform_3, window_bounds = array<i64: 16, 256>}, {pipeline_mode = #tpu.pipeline_mode<synchronous>, transform_indices = @transform_4, window_bounds = array<i64: 1, 256>}, {pipeline_mode = #tpu.pipeline_mode<synchronous>, transform_indices = @transform_5, window_bounds = array<i64: 1, 256>}, {transform_indices = @transform_6, window_bounds = array<i64: 16, 256>}]} {
    %c0 = arith.constant 0 : index
    %c0_0 = arith.constant 0 : index
    %0 = vector.load %arg1[%c0, %c0_0] : memref<16x256xbf16, #tpu.memory_space<vmem>>, vector<16x256xbf16>
    %c0_1 = arith.constant 0 : index
    %c0_2 = arith.constant 0 : index
    %1 = vector.load %arg2[%c0_1, %c0_2] : memref<256x256xbf16, #tpu.memory_space<vmem>>, vector<256x256xbf16>
    %cst = arith.constant dense<0.000000e+00> : vector<16x256xf32>
    %2 = tpu.matmul %0, %1, %cst {dimension_numbers = #tpu.dot_dimension_numbers<[1], [0], [0], [1], [0, 0, 1, 1], [], []>} : vector<16x256xbf16>, vector<256x256xbf16>, vector<16x256xf32> -> vector<16x256xf32>
    %c0_3 = arith.constant 0 : index
    %c0_4 = arith.constant 0 : index
    %3 = vector.load %arg3[%c0_3, %c0_4] : memref<1x256xf32, #tpu.memory_space<vmem>>, vector<1x256xf32>
    %4 = vector.broadcast %3 : vector<1x256xf32> to vector<16x256xf32>
    %5 = arith.addf %2, %4 : vector<16x256xf32>
    %c0_5 = arith.constant 0 : index
    %c0_6 = arith.constant 0 : index
    %6 = vector.load %arg4[%c0_5, %c0_6] : memref<16x256xbf16, #tpu.memory_space<vmem>>, vector<16x256xbf16>
    %7 = arith.extf %6 : vector<16x256xbf16> to vector<16x256xf32>
    %8 = arith.addf %5, %7 : vector<16x256xf32>
    %c0_7 = arith.constant 0 : index
    %c0_8 = arith.constant 0 : index
    %9 = vector.load %arg5[%c0_7, %c0_8] : memref<1x256xf32, #tpu.memory_space<vmem>>, vector<1x256xf32>
    %c0_9 = arith.constant 0 : index
    %c0_10 = arith.constant 0 : index
    %10 = vector.load %arg6[%c0_9, %c0_10] : memref<1x256xf32, #tpu.memory_space<vmem>>, vector<1x256xf32>
    %cst_11 = arith.constant dense<0.000000e+00> : vector<16xf32>
    %11 = vector.multi_reduction <add>, %8, %cst_11 [1] : vector<16x256xf32> to vector<16xf32>
    %12 = vector.shape_cast %11 : vector<16xf32> to vector<16x1xf32>
    %cst_12 = arith.constant 2.560000e+02 : f32
    %13 = vector.broadcast %cst_12 : f32 to vector<16x1xf32>
    %14 = arith.divf %12, %13 : vector<16x1xf32>
    %15 = vector.broadcast %14 : vector<16x1xf32> to vector<16x256xf32>
    %16 = arith.subf %8, %15 : vector<16x256xf32>
    %17 = arith.mulf %16, %16 : vector<16x256xf32>
    %cst_13 = arith.constant dense<0.000000e+00> : vector<16xf32>
    %18 = vector.multi_reduction <add>, %17, %cst_13 [1] : vector<16x256xf32> to vector<16xf32>
    %19 = vector.shape_cast %18 : vector<16xf32> to vector<16x1xf32>
    %cst_14 = arith.constant 2.560000e+02 : f32
    %20 = vector.broadcast %cst_14 : f32 to vector<16x1xf32>
    %21 = arith.divf %19, %20 : vector<16x1xf32>
    %22 = vector.broadcast %14 : vector<16x1xf32> to vector<16x256xf32>
    %23 = arith.subf %8, %22 : vector<16x256xf32>
    %cst_15 = arith.constant 9.99999974E-6 : f32
    %24 = vector.broadcast %cst_15 : f32 to vector<16x1xf32>
    %25 = arith.addf %21, %24 : vector<16x1xf32>
    %26 = math.rsqrt %25 : vector<16x1xf32>
    %27 = vector.broadcast %26 : vector<16x1xf32> to vector<16x256xf32>
    %28 = arith.mulf %23, %27 : vector<16x256xf32>
    %29 = vector.broadcast %9 : vector<1x256xf32> to vector<16x256xf32>
    %30 = arith.mulf %28, %29 : vector<16x256xf32>
    %31 = vector.broadcast %10 : vector<1x256xf32> to vector<16x256xf32>
    %32 = arith.addf %30, %31 : vector<16x256xf32>
    %33 = arith.truncf %32 : vector<16x256xf32> to vector<16x256xbf16>
    %c0_16 = arith.constant 0 : index
    %c0_17 = arith.constant 0 : index
    %34 = vector.load %arg7[%c0_16, %c0_17] : memref<16x256xbf16, #tpu.memory_space<vmem>>, vector<16x256xbf16>
    tpu.vector_store %arg7[%c0_16, %c0_17], %33 {strides = array<i32>} : memref<16x256xbf16, #tpu.memory_space<vmem>>, vector<16x256xbf16>,
    return
  }
  func.func @transform_0(%arg0: i32) -> (i32, i32) {
    %c0_i32 = arith.constant 0 : i32
    %c0_i32_0 = arith.constant 0 : i32
    return %arg0, %c0_i32 : i32, i32
  }
  func.func @transform_1(%arg0: i32) -> (i32, i32) {
    %c0_i32 = arith.constant 0 : i32
    %c0_i32_0 = arith.constant 0 : i32
    %c0_i32_1 = arith.constant 0 : i32
    return %c0_i32, %c0_i32_0 : i32, i32
  }
  func.func @transform_2(%arg0: i32) -> (i32, i32) {
    %c0_i32 = arith.constant 0 : i32
    %c0_i32_0 = arith.constant 0 : i32
    %c0_i32_1 = arith.constant 0 : i32
    return %c0_i32, %c0_i32_0 : i32, i32
  }
  func.func @transform_3(%arg0: i32) -> (i32, i32) {
    %c0_i32 = arith.constant 0 : i32
    %c0_i32_0 = arith.constant 0 : i32
    return %arg0, %c0_i32 : i32, i32
  }
  func.func @transform_4(%arg0: i32) -> (i32, i32) {
    %c0_i32 = arith.constant 0 : i32
    %c0_i32_0 = arith.constant 0 : i32
    %c0_i32_1 = arith.constant 0 : i32
    return %c0_i32, %c0_i32_0 : i32, i32
  }
  func.func @transform_5(%arg0: i32) -> (i32, i32) {
    %c0_i32 = arith.constant 0 : i32
    %c0_i32_0 = arith.constant 0 : i32
    %c0_i32_1 = arith.constant 0 : i32
    return %c0_i32, %c0_i32_0 : i32, i32
  }
  func.func @transform_6(%arg0: i32) -> (i32, i32) {
    %c0_i32 = arith.constant 0 : i32
    %c0_i32_0 = arith.constant 0 : i32
    return %arg0, %c0_i32 : i32, i32
  }
}

module attributes {stable_mosaic.version = 11 : i64} {
  func.func @_linear_1k_kernel(%arg0: i32, %arg1: i32, %arg2: memref<16x256xbf16, #tpu.memory_space<vmem>>, %arg3: memref<256x128xbf16, #tpu.memory_space<vmem>>, %arg4: memref<1x128xf32, #tpu.memory_space<vmem>>, %arg5: memref<16x128xf32, #tpu.memory_space<vmem>>) attributes {dimension_semantics = [#tpu.dimension_semantics<parallel>, #tpu.dimension_semantics<parallel>], iteration_bounds = array<i64: 1, 1>, scalar_prefetch = 0 : i64, scratch_operands = 0 : i64, tpu.core_type = #tpu.core_type<tc>, window_params = [{transform_indices = @transform_0, window_bounds = array<i64: 16, 256>}, {transform_indices = @transform_1, window_bounds = array<i64: 256, 128>}, {transform_indices = @transform_2, window_bounds = array<i64: 1, 128>}, {transform_indices = @transform_3, window_bounds = array<i64: 16, 128>}]} {
    %c0 = arith.constant 0 : index
    %c0_0 = arith.constant 0 : index
    %0 = vector.load %arg2[%c0, %c0_0] : memref<16x256xbf16, #tpu.memory_space<vmem>>, vector<16x256xbf16>
    %c0_1 = arith.constant 0 : index
    %c0_2 = arith.constant 0 : index
    %1 = vector.load %arg3[%c0_1, %c0_2] : memref<256x128xbf16, #tpu.memory_space<vmem>>, vector<256x128xbf16>
    %cst = arith.constant dense<0.000000e+00> : vector<16x128xf32>
    %2 = tpu.matmul %0, %1, %cst {dimension_numbers = #tpu.dot_dimension_numbers<[1], [0], [0], [1], [0, 0, 1, 1], [], []>} : vector<16x256xbf16>, vector<256x128xbf16>, vector<16x128xf32> -> vector<16x128xf32>
    %c0_3 = arith.constant 0 : index
    %c0_4 = arith.constant 0 : index
    %3 = vector.load %arg4[%c0_3, %c0_4] : memref<1x128xf32, #tpu.memory_space<vmem>>, vector<1x128xf32>
    %4 = vector.broadcast %3 : vector<1x128xf32> to vector<16x128xf32>
    %5 = arith.addf %2, %4 : vector<16x128xf32>
    %c0_5 = arith.constant 0 : index
    %c0_6 = arith.constant 0 : index
    %6 = vector.load %arg5[%c0_5, %c0_6] : memref<16x128xf32, #tpu.memory_space<vmem>>, vector<16x128xf32>
    tpu.vector_store %arg5[%c0_5, %c0_6], %5 {strides = array<i32>} : memref<16x128xf32, #tpu.memory_space<vmem>>, vector<16x128xf32>,
    return
  }
  func.func @transform_0(%arg0: i32, %arg1: i32) -> (i32, i32) {
    %c0_i32 = arith.constant 0 : i32
    %c0_i32_0 = arith.constant 0 : i32
    return %arg0, %c0_i32 : i32, i32
  }
  func.func @transform_1(%arg0: i32, %arg1: i32) -> (i32, i32) {
    %c0_i32 = arith.constant 0 : i32
    %c0_i32_0 = arith.constant 0 : i32
    return %c0_i32, %arg1 : i32, i32
  }
  func.func @transform_2(%arg0: i32, %arg1: i32) -> (i32, i32) {
    %c0_i32 = arith.constant 0 : i32
    %c0_i32_0 = arith.constant 0 : i32
    return %c0_i32, %arg1 : i32, i32
  }
  func.func @transform_3(%arg0: i32, %arg1: i32) -> (i32, i32) {
    %c0_i32 = arith.constant 0 : i32
    return %arg0, %arg1 : i32, i32
  }
}

</mosaic_0001>

<llo_original>
// kernel: poetry_model_forward.10
$region0: #{poetry_model_forward.10}
  #allocation0 [shape = 'u32[]', space=smem, size = 0x4, offset = 0x4, fixed_abs, tag = 'smem constant byte address 0x4 - core index']
  #allocation1 [shape = 'u32[72,128]{1,0:T(1,128)}', space=vmem, size = 0x9000, scoped, tag = 'internal scratch']
  %s0 = inlined_call_operand.vmem [shape: bf16[2,8,768], index: 0, kind: input, shape index: {}, may-alias: {0,1,2}]
  %s1 = inlined_call_operand.vmem [shape: bf16[2,8,768], index: 1, kind: input, shape index: {}, may-alias: {0,1,2}]
  %s2 = inlined_call_operand.vmem [shape: bf16[2,8,768], index: 2, kind: input, shape index: {}, may-alias: {0,1,2}]
  %s3 = inlined_call_operand.vmem [shape: f32[8,8], index: 3, kind: input, shape index: {}]
  %s4 = inlined_call_operand.vmem [shape: f32[2,1,8], index: 4, kind: input, shape index: {}]
  %s5 = inlined_call_operand.vmem [shape: bf16[2,8,256], index: 5, kind: output, shape index: {}]
  %s6 = sld [smem:[#allocation0]]
  $region53: #{poetry_model_forward.10} parent=0
    _
  %s8 = ssub.s32 1, %s6
  %s9 = scalar_select 0, %s8, %s6
  loop: start=0, step=1, limit=6
  $region2: #{poetry_model_forward.10} parent=0 // loop_pre_header
    _
  $region3: #{poetry_model_forward.10} parent=0 // loop_header
    %s11 = sphi 0, %s15
    %p12 = scmp.ge.s32.totalorder %s11, 6
    %s18 = sphi 0, %s30
    %s19 = sphi 0, %s26
    %s20 = sphi 0, %s18
    %s21 = sphi 0, %s19
    %s22 = sphi 0, %s20
    %s23 = sphi 0, %s21
    %s35 = sphi 0, %s37
    %s38 = sphi 0, %s35
    %s39 = sphi 0, %s38
    %s55 = sphi 0, %s39
    %s65 = sphi 0, %s67
    %s68 = sphi 0, %s65
    %s69 = sphi 0, %s68
    %s85 = sphi 0, %s69
    %s95 = sphi 0, %s97
    %s98 = sphi 0, %s95
    %s99 = sphi 0, %s98
    %s115 = sphi 0, %s99
    %s119 = sphi 0, %s119
    %s121 = sphi 0, %s119
    %s122 = sphi 0, %s121
    %s136 = sphi 0, %s122
    %s142 = sphi 0, %s144
    %s145 = sphi 0, %s142
    %s146 = sphi 0, %s145
    %s162 = sphi 0, %s146
    %s170 = sphi 0, %s172
    %s173 = sphi 0, %s170
    %s174 = sphi 0, %s173
    %s190 = sphi 0, %s174
  $region4: #{poetry_model_forward.10} parent=0 // loop_header_branch
    %14 = sbr.rel (%p12) target = $region8
  $region5: #{poetry_model_forward.10} parent=0 // loop_body
    %s16 = ssub.s32 %s11, 1
    %s17 = ssub.s32 %s11, 2
    %s24 = sadd.s32 1, %s19
    %p25 = scmp.ge.s32.totalorder %s24, 2
    %s26 = scalar_select %p25, 0, %s24
    %s27 = sadd.s32 1, %s18
    %s28 = scalar_select %p25, %s27, %s18
    %p29 = scmp.ge.s32.totalorder %s28, 2
    %s30 = scalar_select %p29, 0, %s28
    %s31 = ssub.s32 %s18, %s30
    %s32 = ssub.s32 %s19, %s26
    %s33 = sor.u32 %s31, %s32
    %p34 = scmp.eq.s32.totalorder %s33, 0
    %s36 = sadd.s32 %s35, 1
    %s37 = scalar_select %p34, %s35, %s36
    %p40 = pneg %p34
    %p41 = scmp.eq.s32.totalorder %s11, 3
    %p42 = por %p40, %p41
    %p43 = scmp.ne.s32.totalorder %s35, %s38
    %p44 = scmp.eq.s32.totalorder %s11, 0
    %p45 = por %p43, %p44
    %p46 = scmp.ne.s32.totalorder %s35, %s38
    %p47 = scmp.eq.s32.totalorder %s16, 3
    %p48 = por %p46, %p47
    %p49 = scmp.ne.s32.totalorder %s38, %s39
    %p50 = scmp.eq.s32.totalorder %s16, 0
    %p51 = por %p49, %p50
    %p52 = scmp.ne.s32.totalorder %s38, %s39
    %p53 = scmp.eq.s32.totalorder %s17, 3
    %p54 = por %p52, %p53
    %p56 = scmp.ne.s32.totalorder %s39, %s55
    %p57 = scmp.eq.s32.totalorder %s17, 0
    %p58 = por %p56, %p57
    %s59 = sadd.s32 %s19, 2
    %s60 = sadd.s32 %s26, 2
    %s61 = ssub.s32 %s18, %s30
    %s62 = ssub.s32 %s59, %s60
    %s63 = sor.u32 %s61, %s62
    %p64 = scmp.eq.s32.totalorder %s63, 0
    %s66 = sadd.s32 %s65, 1
    %s67 = scalar_select %p64, %s65, %s66
    %p70 = pneg %p64
    %p71 = scmp.eq.s32.totalorder %s11, 3
    %p72 = por %p70, %p71
    %p73 = scmp.ne.s32.totalorder %s65, %s68
    %p74 = scmp.eq.s32.totalorder %s11, 0
    %p75 = por %p73, %p74
    %p76 = scmp.ne.s32.totalorder %s65, %s68
    %p77 = scmp.eq.s32.totalorder %s16, 3
    %p78 = por %p76, %p77
    %p79 = scmp.ne.s32.totalorder %s68, %s69
    %p80 = scmp.eq.s32.totalorder %s16, 0
    %p81 = por %p79, %p80
    %p82 = scmp.ne.s32.totalorder %s68, %s69
    %p83 = scmp.eq.s32.totalorder %s17, 3
    %p84 = por %p82, %p83
    %p86 = scmp.ne.s32.totalorder %s69, %s85
    %p87 = scmp.eq.s32.totalorder %s17, 0
    %p88 = por %p86, %p87
    %s89 = sadd.s32 %s19, 4
    %s90 = sadd.s32 %s26, 4
    %s91 = ssub.s32 %s18, %s30
    %s92 = ssub.s32 %s89, %s90
    %s93 = sor.u32 %s91, %s92
    %p94 = scmp.eq.s32.totalorder %s93, 0
    %s96 = sadd.s32 %s95, 1
    %s97 = scalar_select %p94, %s95, %s96
    %p100 = pneg %p94
    %p101 = scmp.eq.s32.totalorder %s11, 3
    %p102 = por %p100, %p101
    %p103 = scmp.ne.s32.totalorder %s95, %s98
    %p104 = scmp.eq.s32.totalorder %s11, 0
    %p105 = por %p103, %p104
    %p106 = scmp.ne.s32.totalorder %s95, %s98
    %p107 = scmp.eq.s32.totalorder %s16, 3
    %p108 = por %p106, %p107
    %p109 = scmp.ne.s32.totalorder %s98, %s99
    %p110 = scmp.eq.s32.totalorder %s16, 0
    %p111 = por %p109, %p110
    %p112 = scmp.ne.s32.totalorder %s98, %s99
    %p113 = scmp.eq.s32.totalorder %s17, 3
    %p114 = por %p112, %p113
    %p116 = scmp.ne.s32.totalorder %s99, %s115
    %p117 = scmp.eq.s32.totalorder %s17, 0
    %p118 = por %p116, %p117
    %s120 = sadd.s32 %s119, 1
    %p123 = scmp.eq.s32.totalorder %s11, 3
    %p124 = scmp.ne.s32.totalorder %s119, %s121
    %p125 = scmp.eq.s32.totalorder %s11, 0
    %p126 = por %p124, %p125
    %p127 = scmp.ne.s32.totalorder %s119, %s121
    %p128 = scmp.eq.s32.totalorder %s16, 3
    %p129 = por %p127, %p128
    %p130 = scmp.ne.s32.totalorder %s121, %s122
    %p131 = scmp.eq.s32.totalorder %s16, 0
    %p132 = por %p130, %p131
    %p133 = scmp.ne.s32.totalorder %s121, %s122
    %p134 = scmp.eq.s32.totalorder %s17, 3
    %p135 = por %p133, %p134
    %p137 = scmp.ne.s32.totalorder %s122, %s136
    %p138 = scmp.eq.s32.totalorder %s17, 0
    %p139 = por %p137, %p138
    %s140 = ssub.s32 %s18, %s30
    %p141 = scmp.eq.s32.totalorder %s140, 0
    %s143 = sadd.s32 %s142, 1
    %s144 = scalar_select %p141, %s142, %s143
    %p147 = pneg %p141
    %p148 = scmp.eq.s32.totalorder %s11, 3
    %p149 = por %p147, %p148
    %p150 = scmp.ne.s32.totalorder %s142, %s145
    %p151 = scmp.eq.s32.totalorder %s11, 0
    %p152 = por %p150, %p151
    %p153 = scmp.ne.s32.totalorder %s142, %s145
    %p154 = scmp.eq.s32.totalorder %s16, 3
    %p155 = por %p153, %p154
    %p156 = scmp.ne.s32.totalorder %s145, %s146
    %p157 = scmp.eq.s32.totalorder %s16, 0
    %p158 = por %p156, %p157
    %p159 = scmp.ne.s32.totalorder %s145, %s146
    %p160 = scmp.eq.s32.totalorder %s17, 3
    %p161 = por %p159, %p160
    %p163 = scmp.ne.s32.totalorder %s146, %s162
    %p164 = scmp.eq.s32.totalorder %s17, 0
    %p165 = por %p163, %p164
    %s166 = ssub.s32 %s18, %s30
    %s167 = ssub.s32 %s19, %s26
    %s168 = sor.u32 %s166, %s167
    %p169 = scmp.eq.s32.totalorder %s168, 0
    %s171 = sadd.s32 %s170, 1
    %s172 = scalar_select %p169, %s170, %s171
    %p175 = pneg %p169
    %p176 = scmp.eq.s32.totalorder %s11, 3
    %p177 = por %p175, %p176
    %p178 = scmp.ne.s32.totalorder %s170, %s173
    %p179 = scmp.eq.s32.totalorder %s11, 0
    %p180 = por %p178, %p179
    %p181 = scmp.ne.s32.totalorder %s170, %s173
    %p182 = scmp.eq.s32.totalorder %s16, 3
    %p183 = por %p181, %p182
    %p184 = scmp.ne.s32.totalorder %s173, %s174
    %p185 = scmp.eq.s32.totalorder %s16, 0
    %p186 = por %p184, %p185
    %p187 = scmp.ne.s32.totalorder %s173, %s174
    %p188 = scmp.eq.s32.totalorder %s17, 3
    %p189 = por %p187, %p188
    %p191 = scmp.ne.s32.totalorder %s174, %s190
    %p192 = scmp.eq.s32.totalorder %s17, 0
    %p193 = por %p191, %p192
    %p194 = scmp.le.s32.totalorder 1, %s11
    %p195 = scmp.lt.s32.totalorder %s11, 5
    %p196 = pnand %p194, %p195
    %p197 = pneg %p196
    // Predicated region
    $region9: #{poetry_model_forward.10} parent=5 // pred_check
      _
    $region10: #{poetry_model_forward.10} parent=5 // pred_check_branch
      %199 = sbr.rel (%p196) target = $region12
    $region11: #{poetry_model_forward.10} parent=5 // pred_region
      %s200 = ssub.s32 %s11, 1
      // Predicated region
      $region13: #{poetry_model_forward.10} parent=11 // pred_check
        %p201 = pneg %p132
      $region14: #{poetry_model_forward.10} parent=11 // pred_check_branch
        %203 = sbr.rel (%p201) target = $region16
      $region15: #{poetry_model_forward.10} parent=11 // pred_region
        _
      $region16: #{poetry_model_forward.10} parent=11 // pred_fallthru
        _
    $region12: #{poetry_model_forward.10} parent=5 // pred_fallthru
      _
    %p204 = scmp.lt.s32.totalorder %s11, 4
    // Predicated region
    $region17: #{poetry_model_forward.10} parent=5 // pred_check
      %p205 = pneg %p204
    $region18: #{poetry_model_forward.10} parent=5 // pred_check_branch
      %207 = sbr.rel (%p205) target = $region20
    $region19: #{poetry_model_forward.10} parent=5 // pred_region
      // Predicated region
      $region21: #{poetry_model_forward.10} parent=19 // pred_check
        %p208 = pneg %p45
      $region22: #{poetry_model_forward.10} parent=19 // pred_check_branch
        %210 = sbr.rel (%p208) target = $region24
      $region23: #{poetry_model_forward.10} parent=19 // pred_region
        %p211 = scmp.lt.s32.totalorder %s18, 1
        %s212 = scalar_select %p211, %s18, 1
        %p213 = scmp.lt.s32.totalorder %s19, 5
        %s214 = scalar_select %p213, %s19, 5
        %s215 = smul.addr %s212, 6
        %s216 = sadd.s32 %s214, %s215
        %s217 = smul.addr %s216, 4
        %s218 = scalar_lea.vmem %s0, %s217
      $region24: #{poetry_model_forward.10} parent=19 // pred_fallthru
        _
      // Predicated region
      $region25: #{poetry_model_forward.10} parent=19 // pred_check
        %p219 = pneg %p75
      $region26: #{poetry_model_forward.10} parent=19 // pred_check_branch
        %221 = sbr.rel (%p219) target = $region28
      $region27: #{poetry_model_forward.10} parent=19 // pred_region
        %s222 = sadd.s32 %s19, 2
        %p223 = scmp.lt.s32.totalorder %s18, 1
        %s224 = scalar_select %p223, %s18, 1
        %p225 = scmp.lt.s32.totalorder %s222, 5
        %s226 = scalar_select %p225, %s222, 5
        %s227 = smul.addr %s224, 6
        %s228 = sadd.s32 %s226, %s227
        %s229 = smul.addr %s228, 4
        %s230 = scalar_lea.vmem %s1, %s229
        %s231 = sadd.s32 %s19, 2
      $region28: #{poetry_model_forward.10} parent=19 // pred_fallthru
        _
      // Predicated region
      $region29: #{poetry_model_forward.10} parent=19 // pred_check
        %p232 = pneg %p105
      $region30: #{poetry_model_forward.10} parent=19 // pred_check_branch
        %234 = sbr.rel (%p232) target = $region32
      $region31: #{poetry_model_forward.10} parent=19 // pred_region
        %s235 = sadd.s32 %s19, 4
        %p236 = scmp.lt.s32.totalorder %s18, 1
        %s237 = scalar_select %p236, %s18, 1
        %p238 = scmp.lt.s32.totalorder %s235, 5
        %s239 = scalar_select %p238, %s235, 5
        %s240 = smul.addr %s237, 6
        %s241 = sadd.s32 %s239, %s240
        %s242 = smul.addr %s241, 4
        %s243 = scalar_lea.vmem %s2, %s242
        %s244 = sadd.s32 %s19, 4
      $region32: #{poetry_model_forward.10} parent=19 // pred_fallthru
        _
      // Predicated region
      $region33: #{poetry_model_forward.10} parent=19 // pred_check
        %p245 = pneg %p152
      $region34: #{poetry_model_forward.10} parent=19 // pred_check_branch
        %247 = sbr.rel (%p245) target = $region36
      $region35: #{poetry_model_forward.10} parent=19 // pred_region
        %p248 = scmp.lt.s32.totalorder %s18, 1
        %s249 = scalar_select %p248, %s18, 1
        %s250 = scalar_lea.vmem %s4, %s249
      $region36: #{poetry_model_forward.10} parent=19 // pred_fallthru
        _
    $region20: #{poetry_model_forward.10} parent=5 // pred_fallthru
      _
    %p251 = scmp.le.s32.totalorder 1, %s11
    %p252 = scmp.lt.s32.totalorder %s11, 5
    %p253 = pnand %p251, %p252
    %p254 = pneg %p253
    // Predicated region
    $region37: #{poetry_model_forward.10} parent=5 // pred_check
      _
    $region38: #{poetry_model_forward.10} parent=5 // pred_check_branch
      %256 = sbr.rel (%p253) target = $region40
    $region39: #{poetry_model_forward.10} parent=5 // pred_region
      %s257 = ssub.s32 %s11, 1
      %p258 = scmp.lt.s32.totalorder %s20, 1
      %s259 = scalar_select %p258, %s20, 1
      %p260 = scmp.lt.s32.totalorder %s21, 5
      %s261 = scalar_select %p260, %s21, 5
      %s262 = smul.addr %s259, 6
      %s263 = sadd.s32 %s261, %s262
      %s264 = smul.addr %s263, 4
      %s265 = scalar_lea.vmem %s0, %s264
      %p266 = pneg %p51
      %p267 = pneg %p48
      %s268 = sadd.s32 %s21, 2
      %p269 = scmp.lt.s32.totalorder %s20, 1
      %s270 = scalar_select %p269, %s20, 1
      %p271 = scmp.lt.s32.totalorder %s268, 5
      %s272 = scalar_select %p271, %s268, 5
      %s273 = smul.addr %s270, 6
      %s274 = sadd.s32 %s272, %s273
      %s275 = smul.addr %s274, 4
      %s276 = scalar_lea.vmem %s1, %s275
      %p277 = pneg %p81
      %p278 = pneg %p78
      %s279 = sadd.s32 %s21, 4
      %p280 = scmp.lt.s32.totalorder %s20, 1
      %s281 = scalar_select %p280, %s20, 1
      %p282 = scmp.lt.s32.totalorder %s279, 5
      %s283 = scalar_select %p282, %s279, 5
      %s284 = smul.addr %s281, 6
      %s285 = sadd.s32 %s283, %s284
      %s286 = smul.addr %s285, 4
      %s287 = scalar_lea.vmem %s2, %s286
      %p288 = pneg %p111
      %p289 = pneg %p108
      %p290 = pneg %p132
      %p291 = pneg %p129
      %p292 = scmp.lt.s32.totalorder %s20, 1
      %s293 = scalar_select %p292, %s20, 1
      %s294 = scalar_lea.vmem %s4, %s293
      %p295 = pneg %p158
      %p296 = pneg %p155
      %p297 = pneg %p186
      %p298 = pneg %p183
      %p299 = scmp.lt.s32.totalorder %s20, 1
      %s300 = scalar_select %p299, %s20, 1
      %p301 = scmp.lt.s32.totalorder %s21, 1
      %s302 = scalar_select %p301, %s21, 1
      %s303 = smul.addr %s300, 2
      %s304 = sadd.s32 %s302, %s303
      %s305 = smul.addr %s304, 4
      %s306 = scalar_lea.vmem %s5, %s305
      %p307 = scmp.lt.s32.totalorder %s20, 1
      %s308 = scalar_select %p307, %s20, 1
      %p309 = scmp.lt.s32.totalorder %s21, 5
      %s310 = scalar_select %p309, %s21, 5
      %s311 = smul.addr %s308, 6
      %s312 = sadd.s32 %s310, %s311
      %s313 = smul.addr %s312, 4
      %s314 = scalar_lea.vmem %s0, %s313
      %s315 = sadd.s32 %s21, 2
      %p316 = scmp.lt.s32.totalorder %s20, 1
      %s317 = scalar_select %p316, %s20, 1
      %p318 = scmp.lt.s32.totalorder %s315, 5
      %s319 = scalar_select %p318, %s315, 5
      %s320 = smul.addr %s317, 6
      %s321 = sadd.s32 %s319, %s320
      %s322 = smul.addr %s321, 4
      %s323 = scalar_lea.vmem %s1, %s322
      %s324 = sadd.s32 %s21, 2
      %s325 = sadd.s32 %s21, 4
      %p326 = scmp.lt.s32.totalorder %s20, 1
      %s327 = scalar_select %p326, %s20, 1
      %p328 = scmp.lt.s32.totalorder %s325, 5
      %s329 = scalar_select %p328, %s325, 5
      %s330 = smul.addr %s327, 6
      %s331 = sadd.s32 %s329, %s330
      %s332 = smul.addr %s331, 4
      %s333 = scalar_lea.vmem %s2, %s332
      %s334 = sadd.s32 %s21, 4
      %p335 = scmp.lt.s32.totalorder %s20, 1
      %s336 = scalar_select %p335, %s20, 1
      %s337 = scalar_lea.vmem %s4, %s336
      %p338 = scmp.lt.s32.totalorder %s20, 1
      %s339 = scalar_select %p338, %s20, 1
      %p340 = scmp.lt.s32.totalorder %s21, 1
      %s341 = scalar_select %p340, %s21, 1
      %s342 = smul.addr %s339, 2
      %s343 = sadd.s32 %s341, %s342
      %s344 = smul.addr %s343, 4
      %s345 = scalar_lea.vmem %s5, %s344
      %v347 = vld [vmem:[%s3] sm:$0xff]
      %v348 = vld [vmem:[%s337] sm:$0x1]
      %v350 = vperm.slane %v348, 0
      %v352 = vadd.f32 %v347, %v350
      %v353 = vld [vmem:[%s314] sm:$0xf]
      %v354 = vld [vmem:[%s323] sm:$0xf]
      %v355 = vld [vmem:[%s333] sm:$0xf]
      %vm356 = vcmask 261120
      %v358 = vsel %vm356, %v353, 0
      %v361 = vsel %vm356, %v354, 0
      %363 = vmatpush.bf16.xpose.msra.mxu0 0
      %364 = vmatpush.bf16.xpose.msra.mxu0 0
      %365 = vmatpush.bf16.xpose.msra.mxu0 0
      %366 = vmatpush.bf16.xpose.msra.mxu0 0
      %367 = vmatpush.bf16.xpose.msra.mxu0 0
      %368 = vmatpush.bf16.xpose.msra.mxu0 0
      %369 = vmatpush.bf16.xpose.msra.mxu0 0
      %370 = vmatpush.bf16.xpose.msra.mxu0 %v361
      %371 = vmatmul.bf16.gmra.mxu0 %v358
      %v372 = vpop.f32.mrf.mxu0
      %v373 = vadd.f32 %v352, %v372
      %v374 = vpop.f32.mrf.mxu0
      %375 = vdwg.mxu0
      %vm376 = vcmask 64512
      %v377 = vsel %vm376, %v373, -inf
      %378 = vmax.xlane.f32.xlu0 %v377
      %v379 = vpop.xlane.xlu0 %378
      %v380 = vsub.f32 %v373, %v379
      %v381 = vmul.f32 %v380, 1.442695
      %v382 = vpow.pop %v381
      %v383 = vsel %vm376, %v382, 0.0
      %384 = vadd.xlane.f32.xlu0 %v383
      %v385 = vpop.xlane.xlu0 %384
      %v386 = vrcp.pop %v385
      %v387 = vmul.f32 %v382, %v386
      %v388 = vpack.c.bf16 %v387, %v387
      %v390 = vsel %vm376, %v388, 0
      %vm392 = vcmask 1043456
      %v394 = vsel %vm392, %v355, 0
      %396 = vmatpush.bf16.msra.mxu0 0
      %397 = vmatpush.bf16.msra.mxu0 0
      %398 = vmatpush.bf16.msra.mxu0 0
      %399 = vmatpush.bf16.msra.mxu0 0
      %400 = vmatpush.bf16.msra.mxu0 0
      %401 = vmatpush.bf16.msra.mxu0 0
      %402 = vmatpush.bf16.msra.mxu0 0
      %403 = vmatpush.bf16.msra.mxu0 %v394
      %404 = vmatmul.bf16.gmra.mxu0 %v390
      %v405 = vpop.f32.mrf.mxu0
      %v406 = vadd.f32 0.0, %v405
      %v407 = vpop.f32.mrf.mxu0
      %408 = vdwg.mxu0
      %v410 = vunpack.c.l.b16 %v353
      %v411 = vpack.c.b16 %v410, %v410
      %412 = vrot.lane.b32.xlu0 %v411, 96
      %v413 = vpop.permute.xlu0 %412
      %v415 = vunpack.c.l.b16 %v354
      %v416 = vpack.c.b16 %v415, %v415
      %417 = vrot.lane.b32.xlu0 %v416, 96
      %v418 = vpop.permute.xlu0 %417
      %v420 = vsel %vm356, %v413, 0
      %v423 = vsel %vm356, %v418, 0
      %425 = vmatpush.bf16.xpose.msra.mxu0 0
      %426 = vmatpush.bf16.xpose.msra.mxu0 0
      %427 = vmatpush.bf16.xpose.msra.mxu0 0
      %428 = vmatpush.bf16.xpose.msra.mxu0 0
      %429 = vmatpush.bf16.xpose.msra.mxu0 0
      %430 = vmatpush.bf16.xpose.msra.mxu0 0
      %431 = vmatpush.bf16.xpose.msra.mxu0 0
      %432 = vmatpush.bf16.xpose.msra.mxu0 %v423
      %433 = vmatmul.bf16.gmra.mxu0 %v420
      %v434 = vpop.f32.mrf.mxu0
      %v435 = vadd.f32 %v352, %v434
      %v436 = vpop.f32.mrf.mxu0
      %437 = vdwg.mxu0
      %v438 = vsel %vm376, %v435, -inf
      %439 = vmax.xlane.f32.xlu0 %v438
      %v440 = vpop.xlane.xlu0 %439
      %v441 = vsub.f32 %v435, %v440
      %v442 = vmul.f32 %v441, 1.442695
      %v443 = vpow.pop %v442
      %v444 = vsel %vm376, %v443, 0.0
      %445 = vadd.xlane.f32.xlu0 %v444
      %v446 = vpop.xlane.xlu0 %445
      %v447 = vrcp.pop %v446
      %v448 = vmul.f32 %v443, %v447
      %v449 = vpack.c.bf16 %v448, %v448
      %v451 = vunpack.c.l.b16 %v355
      %v452 = vpack.c.b16 %v451, %v451
      %453 = vrot.lane.b32.xlu0 %v452, 96
      %v454 = vpop.permute.xlu0 %453
      %v456 = vsel %vm376, %v449, 0
      %v459 = vsel %vm392, %v454, 0
      %461 = vmatpush.bf16.msra.mxu0 0
      %462 = vmatpush.bf16.msra.mxu0 0
      %463 = vmatpush.bf16.msra.mxu0 0
      %464 = vmatpush.bf16.msra.mxu0 0
      %465 = vmatpush.bf16.msra.mxu0 0
      %466 = vmatpush.bf16.msra.mxu0 0
      %467 = vmatpush.bf16.msra.mxu0 0
      %468 = vmatpush.bf16.msra.mxu0 %v459
      %469 = vmatmul.bf16.gmra.mxu0 %v456
      %v470 = vpop.f32.mrf.mxu0
      %v471 = vadd.f32 0.0, %v470
      %v472 = vpop.f32.mrf.mxu0
      %473 = vdwg.mxu0
      %474 = vrot.lane.b32.xlu0 %v411, 64
      %v475 = vpop.permute.xlu0 %474
      %476 = vrot.lane.b32.xlu0 %v416, 64
      %v477 = vpop.permute.xlu0 %476
      %v479 = vsel %vm356, %v475, 0
      %v482 = vsel %vm356, %v477, 0
      %484 = vmatpush.bf16.xpose.msra.mxu0 0
      %485 = vmatpush.bf16.xpose.msra.mxu0 0
      %486 = vmatpush.bf16.xpose.msra.mxu0 0
      %487 = vmatpush.bf16.xpose.msra.mxu0 0
      %488 = vmatpush.bf16.xpose.msra.mxu0 0
      %489 = vmatpush.bf16.xpose.msra.mxu0 0
      %490 = vmatpush.bf16.xpose.msra.mxu0 0
      %491 = vmatpush.bf16.xpose.msra.mxu0 %v482
      %492 = vmatmul.bf16.gmra.mxu0 %v479
      %v493 = vpop.f32.mrf.mxu0
      %v494 = vadd.f32 %v352, %v493
      %v495 = vpop.f32.mrf.mxu0
      %496 = vdwg.mxu0
      %v497 = vsel %vm376, %v494, -inf
      %498 = vmax.xlane.f32.xlu0 %v497
      %v499 = vpop.xlane.xlu0 %498
      %v500 = vsub.f32 %v494, %v499
      %v501 = vmul.f32 %v500, 1.442695
      %v502 = vpow.pop %v501
      %v503 = vsel %vm376, %v502, 0.0
      %504 = vadd.xlane.f32.xlu0 %v503
      %v505 = vpop.xlane.xlu0 %504
      %v506 = vrcp.pop %v505
      %v507 = vmul.f32 %v502, %v506
      %v508 = vpack.c.bf16 %v507, %v507
      %509 = vrot.lane.b32.xlu0 %v452, 64
      %v510 = vpop.permute.xlu0 %509
      %v512 = vsel %vm376, %v508, 0
      %v515 = vsel %vm392, %v510, 0
      %517 = vmatpush.bf16.msra.mxu0 0
      %518 = vmatpush.bf16.msra.mxu0 0
      %519 = vmatpush.bf16.msra.mxu0 0
      %520 = vmatpush.bf16.msra.mxu0 0
      %521 = vmatpush.bf16.msra.mxu0 0
      %522 = vmatpush.bf16.msra.mxu0 0
      %523 = vmatpush.bf16.msra.mxu0 0
      %524 = vmatpush.bf16.msra.mxu0 %v515
      %525 = vmatmul.bf16.gmra.mxu0 %v512
      %v526 = vpop.f32.mrf.mxu0
      %v527 = vadd.f32 0.0, %v526
      %v528 = vpop.f32.mrf.mxu0
      %529 = vdwg.mxu0
      %530 = vrot.lane.b32.xlu0 %v411, 32
      %v531 = vpop.permute.xlu0 %530
      %532 = vrot.lane.b32.xlu0 %v416, 32
      %v533 = vpop.permute.xlu0 %532
      %v535 = vsel %vm356, %v531, 0
      %v538 = vsel %vm356, %v533, 0
      %540 = vmatpush.bf16.xpose.msra.mxu0 0
      %541 = vmatpush.bf16.xpose.msra.mxu0 0
      %542 = vmatpush.bf16.xpose.msra.mxu0 0
      %543 = vmatpush.bf16.xpose.msra.mxu0 0
      %544 = vmatpush.bf16.xpose.msra.mxu0 0
      %545 = vmatpush.bf16.xpose.msra.mxu0 0
      %546 = vmatpush.bf16.xpose.msra.mxu0 0
      %547 = vmatpush.bf16.xpose.msra.mxu0 %v538
      %548 = vmatmul.bf16.gmra.mxu0 %v535
      %v549 = vpop.f32.mrf.mxu0
      %v550 = vadd.f32 %v352, %v549
      %v551 = vpop.f32.mrf.mxu0
      %552 = vdwg.mxu0
      %v553 = vsel %vm376, %v550, -inf
      %554 = vmax.xlane.f32.xlu0 %v553
      %v555 = vpop.xlane.xlu0 %554
      %v556 = vsub.f32 %v550, %v555
      %v557 = vmul.f32 %v556, 1.442695
      %v558 = vpow.pop %v557
      %v559 = vsel %vm376, %v558, 0.0
      %560 = vadd.xlane.f32.xlu0 %v559
      %v561 = vpop.xlane.xlu0 %560
      %v562 = vrcp.pop %v561
      %v563 = vmul.f32 %v558, %v562
      %v564 = vpack.c.bf16 %v563, %v563
      %565 = vrot.lane.b32.xlu0 %v452, 32
      %v566 = vpop.permute.xlu0 %565
      %v568 = vsel %vm376, %v564, 0
      %v571 = vsel %vm392, %v566, 0
      %573 = vmatpush.bf16.msra.mxu0 0
      %574 = vmatpush.bf16.msra.mxu0 0
      %575 = vmatpush.bf16.msra.mxu0 0
      %576 = vmatpush.bf16.msra.mxu0 0
      %577 = vmatpush.bf16.msra.mxu0 0
      %578 = vmatpush.bf16.msra.mxu0 0
      %579 = vmatpush.bf16.msra.mxu0 0
      %580 = vmatpush.bf16.msra.mxu0 %v571
      %581 = vmatmul.bf16.gmra.mxu0 %v568
      %v582 = vpop.f32.mrf.mxu0
      %v583 = vadd.f32 0.0, %v582
      %v584 = vpop.f32.mrf.mxu0
      %585 = vdwg.mxu0
      %587 = vrot.lane.b32.xlu0 %v471, 32
      %v588 = vpop.permute.xlu0 %587
      %591 = vrot.lane.b32.xlu0 %v527, 64
      %v592 = vpop.permute.xlu0 %591
      %595 = vrot.lane.b32.xlu0 %v583, 96
      %v596 = vpop.permute.xlu0 %595
      %v598 = vsel %vm356, %v406, %v588
      %vm599 = vcmask 523264
      %v600 = vsel %vm599, %v598, %v592
      %vm601 = vcmask 785408
      %v602 = vsel %vm601, %v600, %v596
      %v603 = vpack.c.bf16 %v602, %v602
      %604 = vst [vmem:[%s345] sm:$0xf] %v603
      %p605 = scmp.lt.s32.totalorder %s20, 1
      %s606 = scalar_select %p605, %s20, 1
      %p607 = scmp.lt.s32.totalorder %s21, 1
      %s608 = scalar_select %p607, %s21, 1
      %s609 = smul.addr %s606, 2
      %s610 = sadd.s32 %s608, %s609
      %s611 = smul.addr %s610, 4
      %s612 = scalar_lea.vmem %s5, %s611
      // Predicated region
      $region41: #{poetry_model_forward.10} parent=39 // pred_check
        %p613 = pneg %p183
      $region42: #{poetry_model_forward.10} parent=39 // pred_check_branch
        %615 = sbr.rel (%p613) target = $region44
      $region43: #{poetry_model_forward.10} parent=39 // pred_region
        _
      $region44: #{poetry_model_forward.10} parent=39 // pred_fallthru
        _
    $region40: #{poetry_model_forward.10} parent=5 // pred_fallthru
      _
    %p616 = scmp.le.s32.totalorder 2, %s11
    // Predicated region
    $region45: #{poetry_model_forward.10} parent=5 // pred_check
      %p617 = pneg %p616
    $region46: #{poetry_model_forward.10} parent=5 // pred_check_branch
      %619 = sbr.rel (%p617) target = $region48
    $region47: #{poetry_model_forward.10} parent=5 // pred_region
      %s620 = ssub.s32 %s11, 2
      // Predicated region
      $region49: #{poetry_model_forward.10} parent=47 // pred_check
        %p621 = pneg %p189
      $region50: #{poetry_model_forward.10} parent=47 // pred_check_branch
        %623 = sbr.rel (%p621) target = $region52
      $region51: #{poetry_model_forward.10} parent=47 // pred_region
        %p624 = scmp.lt.s32.totalorder %s22, 1
        %s625 = scalar_select %p624, %s22, 1
        %p626 = scmp.lt.s32.totalorder %s23, 1
        %s627 = scalar_select %p626, %s23, 1
        %s628 = smul.addr %s625, 2
        %s629 = sadd.s32 %s627, %s628
        %s630 = smul.addr %s629, 4
        %s631 = scalar_lea.vmem %s5, %s630
      $region52: #{poetry_model_forward.10} parent=47 // pred_fallthru
        _
    $region48: #{poetry_model_forward.10} parent=5 // pred_fallthru
      _
  $region6: #{poetry_model_forward.10} parent=0 // loop_footer
    %s15 = sadd.s32 1, %s11
  $region7: #{poetry_model_forward.10} parent=0 // loop_footer_branch
    %10 = sbr.rel target = $region3
  $region8: #{poetry_model_forward.10} parent=0 // loop_exit
    _

// kernel: poetry_model_forward.11
$region0: #{poetry_model_forward.11}
  #allocation0 [shape = 'u32[]', space=smem, size = 0x4, offset = 0x4, fixed_abs, tag = 'smem constant byte address 0x4 - core index']
  #allocation1 [shape = 'u32[72,128]{1,0:T(1,128)}', space=vmem, size = 0x9000, scoped, tag = 'internal scratch']
  %s0 = inlined_call_operand.vmem [shape: bf16[16,256], index: 0, kind: input, shape index: {}]
  %s1 = inlined_call_operand.vmem [shape: bf16[256,256], index: 1, kind: input, shape index: {}]
  %s2 = inlined_call_operand.vmem [shape: f32[1,256], index: 2, kind: input, shape index: {}]
  %s3 = inlined_call_operand.vmem [shape: bf16[16,256], index: 3, kind: input, shape index: {}]
  %s4 = inlined_call_operand.vmem [shape: f32[1,256], index: 4, kind: input, shape index: {}]
  %s5 = inlined_call_operand.vmem [shape: f32[1,256], index: 5, kind: input, shape index: {}]
  %s6 = inlined_call_operand.vmem [shape: bf16[16,256], index: 6, kind: output, shape index: {}]
  %s7 = sld [smem:[#allocation0]]
  $region34: #{poetry_model_forward.11} parent=0
    _
  %s9 = ssub.s32 1, %s7
  %s10 = scalar_select 0, %s9, %s7
  // Predicated region
  $region2: #{poetry_model_forward.11} parent=0 // pred_check
    _
  $region3: #{poetry_model_forward.11} parent=0 // pred_check_branch
    %12 = sbr.rel (0) target = $region5
  $region4: #{poetry_model_forward.11} parent=0 // pred_region
    _
  $region5: #{poetry_model_forward.11} parent=0 // pred_fallthru
    _
  // Predicated region
  $region6: #{poetry_model_forward.11} parent=0 // pred_check
    _
  $region7: #{poetry_model_forward.11} parent=0 // pred_check_branch
    %14 = sbr.rel (0) target = $region9
  $region8: #{poetry_model_forward.11} parent=0 // pred_region
    _
  $region9: #{poetry_model_forward.11} parent=0 // pred_fallthru
    _
  // Predicated region
  $region10: #{poetry_model_forward.11} parent=0 // pred_check
    _
  $region11: #{poetry_model_forward.11} parent=0 // pred_check_branch
    %16 = sbr.rel (0) target = $region13
  $region12: #{poetry_model_forward.11} parent=0 // pred_region
    _
  $region13: #{poetry_model_forward.11} parent=0 // pred_fallthru
    _
  // Predicated region
  $region14: #{poetry_model_forward.11} parent=0 // pred_check
    _
  $region15: #{poetry_model_forward.11} parent=0 // pred_check_branch
    %18 = sbr.rel (0) target = $region17
  $region16: #{poetry_model_forward.11} parent=0 // pred_region
    _
  $region17: #{poetry_model_forward.11} parent=0 // pred_fallthru
    _
  // Predicated region
  $region18: #{poetry_model_forward.11} parent=0 // pred_check
    _
  $region19: #{poetry_model_forward.11} parent=0 // pred_check_branch
    %20 = sbr.rel (0) target = $region21
  $region20: #{poetry_model_forward.11} parent=0 // pred_region
    _
  $region21: #{poetry_model_forward.11} parent=0 // pred_fallthru
    _
  // Predicated region
  $region22: #{poetry_model_forward.11} parent=0 // pred_check
    _
  $region23: #{poetry_model_forward.11} parent=0 // pred_check_branch
    %22 = sbr.rel (0) target = $region25
  $region24: #{poetry_model_forward.11} parent=0 // pred_region
    _
  $region25: #{poetry_model_forward.11} parent=0 // pred_fallthru
    _
  %v23 = vld [vmem:[%s0] sm:$0xff]
  %v24 = vld [vmem:[%s0 + $0x8] sm:$0xff]
  %v25 = vld [vmem:[%s1] sm:$0xff]
  %v26 = vld [vmem:[%s1 + $0x8] sm:$0xff]
  %v27 = vld [vmem:[%s1 + $0x10] sm:$0xff]
  %v28 = vld [vmem:[%s1 + $0x18] sm:$0xff]
  %v29 = vld [vmem:[%s1 + $0x20] sm:$0xff]
  %v30 = vld [vmem:[%s1 + $0x28] sm:$0xff]
  %v31 = vld [vmem:[%s1 + $0x30] sm:$0xff]
  %v32 = vld [vmem:[%s1 + $0x38] sm:$0xff]
  %v33 = vld [vmem:[%s1 + $0x40] sm:$0xff]
  %v34 = vld [vmem:[%s1 + $0x48] sm:$0xff]
  %v35 = vld [vmem:[%s1 + $0x50] sm:$0xff]
  %v36 = vld [vmem:[%s1 + $0x58] sm:$0xff]
  %v37 = vld [vmem:[%s1 + $0x60] sm:$0xff]
  %v38 = vld [vmem:[%s1 + $0x68] sm:$0xff]
  %v39 = vld [vmem:[%s1 + $0x70] sm:$0xff]
  %v40 = vld [vmem:[%s1 + $0x78] sm:$0xff]
  %v41 = vld [vmem:[%s1 + $0x80] sm:$0xff]
  %v42 = vld [vmem:[%s1 + $0x88] sm:$0xff]
  %v43 = vld [vmem:[%s1 + $0x90] sm:$0xff]
  %v44 = vld [vmem:[%s1 + $0x98] sm:$0xff]
  %v45 = vld [vmem:[%s1 + $0xa0] sm:$0xff]
  %v46 = vld [vmem:[%s1 + $0xa8] sm:$0xff]
  %v47 = vld [vmem:[%s1 + $0xb0] sm:$0xff]
  %v48 = vld [vmem:[%s1 + $0xb8] sm:$0xff]
  %v49 = vld [vmem:[%s1 + $0xc0] sm:$0xff]
  %v50 = vld [vmem:[%s1 + $0xc8] sm:$0xff]
  %v51 = vld [vmem:[%s1 + $0xd0] sm:$0xff]
  %v52 = vld [vmem:[%s1 + $0xd8] sm:$0xff]
  %v53 = vld [vmem:[%s1 + $0xe0] sm:$0xff]
  %v54 = vld [vmem:[%s1 + $0xe8] sm:$0xff]
  %v55 = vld [vmem:[%s1 + $0xf0] sm:$0xff]
  %v56 = vld [vmem:[%s1 + $0xf8] sm:$0xff]
  %v57 = vld [vmem:[%s2] sm:$0x3]
  %v59 = vperm.slane %v57, 0
  %v60 = vperm.slane %v57, 1
  %v65 = vunpack.c.l.b16 %v23
  %v66 = vunpack.c.h.b16 %v23
  %v67 = vunpack.c.l.b16 %v24
  %v68 = vunpack.c.h.b16 %v24
  %v69 = vpack.c.b16 %v67, %v65
  %v70 = vpack.c.b16 %v68, %v66
  %v105 = vunpack.c.l.b16 %v25
  %v106 = vunpack.c.h.b16 %v25
  %v107 = vunpack.c.l.b16 %v26
  %v108 = vunpack.c.h.b16 %v26
  %v109 = vunpack.c.l.b16 %v27
  %v110 = vunpack.c.h.b16 %v27
  %v111 = vunpack.c.l.b16 %v28
  %v112 = vunpack.c.h.b16 %v28
  %v113 = vunpack.c.l.b16 %v29
  %v114 = vunpack.c.h.b16 %v29
  %v115 = vunpack.c.l.b16 %v30
  %v116 = vunpack.c.h.b16 %v30
  %v117 = vunpack.c.l.b16 %v31
  %v118 = vunpack.c.h.b16 %v31
  %v119 = vunpack.c.l.b16 %v32
  %v120 = vunpack.c.h.b16 %v32
  %v121 = vunpack.c.l.b16 %v33
  %v122 = vunpack.c.h.b16 %v33
  %v123 = vunpack.c.l.b16 %v34
  %v124 = vunpack.c.h.b16 %v34
  %v125 = vunpack.c.l.b16 %v35
  %v126 = vunpack.c.h.b16 %v35
  %v127 = vunpack.c.l.b16 %v36
  %v128 = vunpack.c.h.b16 %v36
  %v129 = vunpack.c.l.b16 %v37
  %v130 = vunpack.c.h.b16 %v37
  %v131 = vunpack.c.l.b16 %v38
  %v132 = vunpack.c.h.b16 %v38
  %v133 = vunpack.c.l.b16 %v39
  %v134 = vunpack.c.h.b16 %v39
  %v135 = vunpack.c.l.b16 %v40
  %v136 = vunpack.c.h.b16 %v40
  %v137 = vunpack.c.l.b16 %v41
  %v138 = vunpack.c.h.b16 %v41
  %v139 = vunpack.c.l.b16 %v42
  %v140 = vunpack.c.h.b16 %v42
  %v141 = vunpack.c.l.b16 %v43
  %v142 = vunpack.c.h.b16 %v43
  %v143 = vunpack.c.l.b16 %v44
  %v144 = vunpack.c.h.b16 %v44
  %v145 = vunpack.c.l.b16 %v45
  %v146 = vunpack.c.h.b16 %v45
  %v147 = vunpack.c.l.b16 %v46
  %v148 = vunpack.c.h.b16 %v46
  %v149 = vunpack.c.l.b16 %v47
  %v150 = vunpack.c.h.b16 %v47
  %v151 = vunpack.c.l.b16 %v48
  %v152 = vunpack.c.h.b16 %v48
  %v153 = vunpack.c.l.b16 %v49
  %v154 = vunpack.c.h.b16 %v49
  %v155 = vunpack.c.l.b16 %v50
  %v156 = vunpack.c.h.b16 %v50
  %v157 = vunpack.c.l.b16 %v51
  %v158 = vunpack.c.h.b16 %v51
  %v159 = vunpack.c.l.b16 %v52
  %v160 = vunpack.c.h.b16 %v52
  %v161 = vunpack.c.l.b16 %v53
  %v162 = vunpack.c.h.b16 %v53
  %v163 = vunpack.c.l.b16 %v54
  %v164 = vunpack.c.h.b16 %v54
  %v165 = vunpack.c.l.b16 %v55
  %v166 = vunpack.c.h.b16 %v55
  %v167 = vunpack.c.l.b16 %v56
  %v168 = vunpack.c.h.b16 %v56
  %v169 = vpack.c.b16 %v107, %v105
  %v170 = vpack.c.b16 %v108, %v106
  %v171 = vpack.c.b16 %v111, %v109
  %v172 = vpack.c.b16 %v112, %v110
  %v173 = vpack.c.b16 %v115, %v113
  %v174 = vpack.c.b16 %v116, %v114
  %v175 = vpack.c.b16 %v119, %v117
  %v176 = vpack.c.b16 %v120, %v118
  %v177 = vpack.c.b16 %v123, %v121
  %v178 = vpack.c.b16 %v124, %v122
  %v179 = vpack.c.b16 %v127, %v125
  %v180 = vpack.c.b16 %v128, %v126
  %v181 = vpack.c.b16 %v131, %v129
  %v182 = vpack.c.b16 %v132, %v130
  %v183 = vpack.c.b16 %v135, %v133
  %v184 = vpack.c.b16 %v136, %v134
  %v185 = vpack.c.b16 %v139, %v137
  %v186 = vpack.c.b16 %v140, %v138
  %v187 = vpack.c.b16 %v143, %v141
  %v188 = vpack.c.b16 %v144, %v142
  %v189 = vpack.c.b16 %v147, %v145
  %v190 = vpack.c.b16 %v148, %v146
  %v191 = vpack.c.b16 %v151, %v149
  %v192 = vpack.c.b16 %v152, %v150
  %v193 = vpack.c.b16 %v155, %v153
  %v194 = vpack.c.b16 %v156, %v154
  %v195 = vpack.c.b16 %v159, %v157
  %v196 = vpack.c.b16 %v160, %v158
  %v197 = vpack.c.b16 %v163, %v161
  %v198 = vpack.c.b16 %v164, %v162
  %v199 = vpack.c.b16 %v167, %v165
  %v200 = vpack.c.b16 %v168, %v166
  %233 = vmatpush.bf16.msra.mxu0 %v183
  %234 = vmatpush.bf16.msra.mxu0 %v181
  %235 = vmatpush.bf16.msra.mxu0 %v179
  %236 = vmatpush.bf16.msra.mxu0 %v177
  %237 = vmatpush.bf16.msra.mxu0 %v175
  %238 = vmatpush.bf16.msra.mxu0 %v173
  %239 = vmatpush.bf16.msra.mxu0 %v171
  %240 = vmatpush.bf16.msra.mxu0 %v169
  %241 = vmatmul.bf16.gmra.mxu0 %v69
  %v242 = vpop.f32.mrf.mxu0
  %v243 = vadd.f32 %v59, %v242
  %v244 = vpop.f32.mrf.mxu0
  %v245 = vadd.f32 %v59, %v244
  %246 = vdwg.mxu0
  %247 = vmatpush.bf16.msra.mxu0 %v199
  %248 = vmatpush.bf16.msra.mxu0 %v197
  %249 = vmatpush.bf16.msra.mxu0 %v195
  %250 = vmatpush.bf16.msra.mxu0 %v193
  %251 = vmatpush.bf16.msra.mxu0 %v191
  %252 = vmatpush.bf16.msra.mxu0 %v189
  %253 = vmatpush.bf16.msra.mxu0 %v187
  %254 = vmatpush.bf16.msra.mxu0 %v185
  %255 = vmatmul.bf16.gmra.mxu0 %v70
  %v256 = vpop.f32.mrf.mxu0
  %v257 = vadd.f32 %v243, %v256
  %v258 = vpop.f32.mrf.mxu0
  %v259 = vadd.f32 %v245, %v258
  %260 = vdwg.mxu0
  %261 = vmatpush.bf16.msra.mxu0 %v184
  %262 = vmatpush.bf16.msra.mxu0 %v182
  %263 = vmatpush.bf16.msra.mxu0 %v180
  %264 = vmatpush.bf16.msra.mxu0 %v178
  %265 = vmatpush.bf16.msra.mxu0 %v176
  %266 = vmatpush.bf16.msra.mxu0 %v174
  %267 = vmatpush.bf16.msra.mxu0 %v172
  %268 = vmatpush.bf16.msra.mxu0 %v170
  %269 = vmatmul.bf16.gmra.mxu0 %v69
  %v270 = vpop.f32.mrf.mxu0
  %v271 = vadd.f32 %v60, %v270
  %v272 = vpop.f32.mrf.mxu0
  %v273 = vadd.f32 %v60, %v272
  %274 = vdwg.mxu0
  %275 = vmatpush.bf16.msra.mxu0 %v200
  %276 = vmatpush.bf16.msra.mxu0 %v198
  %277 = vmatpush.bf16.msra.mxu0 %v196
  %278 = vmatpush.bf16.msra.mxu0 %v194
  %279 = vmatpush.bf16.msra.mxu0 %v192
  %280 = vmatpush.bf16.msra.mxu0 %v190
  %281 = vmatpush.bf16.msra.mxu0 %v188
  %282 = vmatpush.bf16.msra.mxu0 %v186
  %283 = vmatmul.bf16.gmra.mxu0 %v70
  %v284 = vpop.f32.mrf.mxu0
  %v285 = vadd.f32 %v271, %v284
  %v286 = vpop.f32.mrf.mxu0
  %v287 = vadd.f32 %v273, %v286
  %288 = vdwg.mxu0
  %v289 = vld [vmem:[%s3] sm:$0xff]
  %v290 = vld [vmem:[%s3 + $0x8] sm:$0xff]
  %v291 = vunpack.c.l.bf16 %v289
  %v292 = vunpack.c.h.bf16 %v289
  %v293 = vunpack.c.l.bf16 %v290
  %v294 = vunpack.c.h.bf16 %v290
  %v295 = vadd.f32 %v257, %v291
  %v296 = vadd.f32 %v285, %v292
  %v297 = vadd.f32 %v259, %v293
  %v298 = vadd.f32 %v287, %v294
  %v299 = vld [vmem:[%s4] sm:$0x3]
  %v300 = vld [vmem:[%s5] sm:$0x3]
  %v301 = vadd.f32 %v295, %v296
  %302 = vadd.xlane.f32.xlu0 %v301
  %v303 = vpop.xlane.xlu0 %302
  %v304 = vadd.f32 %v297, %v298
  %305 = vadd.xlane.f32.xlu0 %v304
  %v306 = vpop.xlane.xlu0 %305
  %v307 = vrcp.pop 256.0
  %v308 = vmul.f32 256.0, %v307
  %v309 = vsub.f32 1.0, %v308
  %v310 = vmul.f32 %v307, %v309
  %v311 = vadd.f32 %v307, %v310
  %vm312 = vweird.f32 %v307
  %v313 = vsel %vm312, %v307, %v311
  %v314 = vmul.f32 %v303, %v313
  %v315 = vmul.f32 %v306, %v313
  %v316 = vsub.f32 %v295, %v314
  %v317 = vsub.f32 %v296, %v314
  %v318 = vsub.f32 %v297, %v315
  %v319 = vsub.f32 %v298, %v315
  %v320 = vmul.f32 %v316, %v316
  %v321 = vmul.f32 %v317, %v317
  %v322 = vmul.f32 %v318, %v318
  %v323 = vmul.f32 %v319, %v319
  %v324 = vadd.f32 %v320, %v321
  %325 = vadd.xlane.f32.xlu0 %v324
  %v326 = vpop.xlane.xlu0 %325
  %v327 = vadd.f32 %v322, %v323
  %328 = vadd.xlane.f32.xlu0 %v327
  %v329 = vpop.xlane.xlu0 %328
  %v330 = vmul.f32 %v326, %v313
  %v331 = vmul.f32 %v329, %v313
  %v332 = vadd.f32 %v330, 1e-05
  %v333 = vadd.f32 %v331, 1e-05
  %v334 = vrsqrt.pop %v332
  %v335 = vmul.f32 %v334, %v332
  %v336 = vmul.f32 %v335, %v334
  %v337 = vmul.f32 0.5, %v336
  %v338 = vsub.f32 1.5, %v337
  %v339 = vmul.f32 %v334, %v338
  %vm340 = vweird.f32 %v332
  %vm341 = vweird.f32 %v334
  %vm342 = vmor %vm340, %vm341
  %v343 = vsel %vm342, %v334, %v339
  %v344 = vrsqrt.pop %v333
  %v345 = vmul.f32 %v344, %v333
  %v346 = vmul.f32 %v345, %v344
  %v347 = vmul.f32 0.5, %v346
  %v348 = vsub.f32 1.5, %v347
  %v349 = vmul.f32 %v344, %v348
  %vm350 = vweird.f32 %v333
  %vm351 = vweird.f32 %v344
  %vm352 = vmor %vm350, %vm351
  %v353 = vsel %vm352, %v344, %v349
  %v354 = vmul.f32 %v316, %v343
  %v355 = vmul.f32 %v317, %v343
  %v356 = vmul.f32 %v318, %v353
  %v357 = vmul.f32 %v319, %v353
  %v359 = vperm.slane %v299, 0
  %v360 = vperm.slane %v299, 1
  %v363 = vmul.f32 %v354, %v359
  %v364 = vmul.f32 %v355, %v360
  %v365 = vmul.f32 %v356, %v359
  %v366 = vmul.f32 %v357, %v360
  %v368 = vperm.slane %v300, 0
  %v369 = vperm.slane %v300, 1
  %v372 = vadd.f32 %v363, %v368
  %v373 = vadd.f32 %v364, %v369
  %v374 = vadd.f32 %v365, %v368
  %v375 = vadd.f32 %v366, %v369
  %v376 = vpack.c.bf16 %v373, %v372
  %v377 = vpack.c.bf16 %v375, %v374
  %378 = vst [vmem:[%s6] sm:$0xff] %v376
  %379 = vst [vmem:[%s6 + $0x8] sm:$0xff] %v377
  // Predicated region
  $region26: #{poetry_model_forward.11} parent=0 // pred_check
    _
  $region27: #{poetry_model_forward.11} parent=0 // pred_check_branch
    %381 = sbr.rel (0) target = $region29
  $region28: #{poetry_model_forward.11} parent=0 // pred_region
    _
  $region29: #{poetry_model_forward.11} parent=0 // pred_fallthru
    _
  // Predicated region
  $region30: #{poetry_model_forward.11} parent=0 // pred_check
    _
  $region31: #{poetry_model_forward.11} parent=0 // pred_check_branch
    %383 = sbr.rel (0) target = $region33
  $region32: #{poetry_model_forward.11} parent=0 // pred_region
    _
  $region33: #{poetry_model_forward.11} parent=0 // pred_fallthru
    _

// kernel: poetry_model_forward.9
$region0: #{poetry_model_forward.9}
  #allocation0 [shape = 'u32[]', space=smem, size = 0x4, offset = 0x4, fixed_abs, tag = 'smem constant byte address 0x4 - core index']
  #allocation1 [shape = 'u32[72,128]{1,0:T(1,128)}', space=vmem, size = 0x9000, scoped, tag = 'internal scratch']
  %s0 = inlined_call_operand.vmem [shape: bf16[16,256], index: 0, kind: input, shape index: {}]
  %s1 = inlined_call_operand.hbm [shape: bf16[256,768], index: 1, kind: input, shape index: {}]
  %s2 = inlined_call_operand.vmem [shape: f32[1,768], index: 2, kind: input, shape index: {}]
  %s3 = inlined_call_operand.vmem [shape: bf16[16,768], index: 3, kind: output, shape index: {}]
  %s4 = sld [smem:[#allocation0]]
  $region71: #{poetry_model_forward.9} parent=0
    _
  %s6 = ssub.s32 1, %s4
  %s7 = scalar_select 0, %s6, %s4
  $region1: #{poetry_model_forward.9} parent=0
    #allocation2 [shape = 'u8[393216]{0}', space=vmem, size = 0x60000, scoped, tag = 'input window, operand 1']
    #allocation3 [shape = 's32[2]{0}', space=sflag, size = 0x8, scoped, tag = 'scoped memory for poetry_model_forward.9']
    #allocation4 [shape = 'u8[24576]{0}', space=vmem, size = 0x6000, scoped, tag = 'output window, operand 0']
    %8 = vsyncpa [#allocation3], 0
    %s9 = scalar_lea.sflag [#allocation3], 1
    %10 = vsyncpa %s9, 0
    loop: start=0, step=1, limit=4
    $region2: #{poetry_model_forward.9} parent=1 // loop_pre_header
      _
    $region3: #{poetry_model_forward.9} parent=1 // loop_header
      %s12 = sphi 0, %s16
      %p13 = scmp.ge.s32.totalorder %s12, 4
      %s19 = sphi 0, %s31
      %s20 = sphi 0, %s27
      %s21 = sphi 0, %s19
      %s22 = sphi 0, %s20
      %s23 = sphi 0, %s21
      %s24 = sphi 0, %s22
      %s34 = sphi 0, %s36
      %s37 = sphi 0, %s34
      %s38 = sphi 0, %s37
      %s54 = sphi 0, %s38
      %s60 = sphi 0, %s62
      %s63 = sphi 0, %s60
      %s64 = sphi 0, %s63
      %s80 = sphi 0, %s64
      %s86 = sphi 0, %s88
      %s89 = sphi 0, %s86
      %s90 = sphi 0, %s89
      %s106 = sphi 0, %s90
      %s114 = sphi 0, %s116
      %s117 = sphi 0, %s114
      %s118 = sphi 0, %s117
      %s134 = sphi 0, %s118
    $region4: #{poetry_model_forward.9} parent=1 // loop_header_branch
      %15 = sbr.rel (%p13) target = $region8
    $region5: #{poetry_model_forward.9} parent=1 // loop_body
      %s17 = ssub.s32 %s12, 1
      %s18 = ssub.s32 %s12, 2
      %s25 = sadd.s32 1, %s20
      %p26 = scmp.ge.s32.totalorder %s25, 2
      %s27 = scalar_select %p26, 0, %s25
      %s28 = sadd.s32 1, %s19
      %s29 = scalar_select %p26, %s28, %s19
      %p30 = scmp.ge.s32.totalorder %s29, 1
      %s31 = scalar_select %p30, 0, %s29
      %s32 = ssub.s32 %s19, %s31
      %p33 = scmp.eq.s32.totalorder %s32, 0
      %s35 = sadd.s32 %s34, 1
      %s36 = scalar_select %p33, %s34, %s35
      %p39 = pneg %p33
      %p40 = scmp.eq.s32.totalorder %s12, 1
      %p41 = por %p39, %p40
      %p42 = scmp.ne.s32.totalorder %s34, %s37
      %p43 = scmp.eq.s32.totalorder %s12, 0
      %p44 = por %p42, %p43
      %p45 = scmp.ne.s32.totalorder %s34, %s37
      %p46 = scmp.eq.s32.totalorder %s17, 1
      %p47 = por %p45, %p46
      %p48 = scmp.ne.s32.totalorder %s37, %s38
      %p49 = scmp.eq.s32.totalorder %s17, 0
      %p50 = por %p48, %p49
      %p51 = scmp.ne.s32.totalorder %s37, %s38
      %p52 = scmp.eq.s32.totalorder %s18, 1
      %p53 = por %p51, %p52
      %p55 = scmp.ne.s32.totalorder %s38, %s54
      %p56 = scmp.eq.s32.totalorder %s18, 0
      %p57 = por %p55, %p56
      %s58 = ssub.s32 %s20, %s27
      %p59 = scmp.eq.s32.totalorder %s58, 0
      %s61 = sadd.s32 %s60, 1
      %s62 = scalar_select %p59, %s60, %s61
      %p65 = pneg %p59
      %p66 = scmp.eq.s32.totalorder %s12, 1
      %p67 = por %p65, %p66
      %p68 = scmp.ne.s32.totalorder %s60, %s63
      %p69 = scmp.eq.s32.totalorder %s12, 0
      %p70 = por %p68, %p69
      %p71 = scmp.ne.s32.totalorder %s60, %s63
      %p72 = scmp.eq.s32.totalorder %s17, 1
      %p73 = por %p71, %p72
      %p74 = scmp.ne.s32.totalorder %s63, %s64
      %p75 = scmp.eq.s32.totalorder %s17, 0
      %p76 = por %p74, %p75
      %p77 = scmp.ne.s32.totalorder %s63, %s64
      %p78 = scmp.eq.s32.totalorder %s18, 1
      %p79 = por %p77, %p78
      %p81 = scmp.ne.s32.totalorder %s64, %s80
      %p82 = scmp.eq.s32.totalorder %s18, 0
      %p83 = por %p81, %p82
      %s84 = ssub.s32 %s20, %s27
      %p85 = scmp.eq.s32.totalorder %s84, 0
      %s87 = sadd.s32 %s86, 1
      %s88 = scalar_select %p85, %s86, %s87
      %p91 = pneg %p85
      %p92 = scmp.eq.s32.totalorder %s12, 1
      %p93 = por %p91, %p92
      %p94 = scmp.ne.s32.totalorder %s86, %s89
      %p95 = scmp.eq.s32.totalorder %s12, 0
      %p96 = por %p94, %p95
      %p97 = scmp.ne.s32.totalorder %s86, %s89
      %p98 = scmp.eq.s32.totalorder %s17, 1
      %p99 = por %p97, %p98
      %p100 = scmp.ne.s32.totalorder %s89, %s90
      %p101 = scmp.eq.s32.totalorder %s17, 0
      %p102 = por %p100, %p101
      %p103 = scmp.ne.s32.totalorder %s89, %s90
      %p104 = scmp.eq.s32.totalorder %s18, 1
      %p105 = por %p103, %p104
      %p107 = scmp.ne.s32.totalorder %s90, %s106
      %p108 = scmp.eq.s32.totalorder %s18, 0
      %p109 = por %p107, %p108
      %s110 = ssub.s32 %s19, %s31
      %s111 = ssub.s32 %s20, %s27
      %s112 = sor.u32 %s110, %s111
      %p113 = scmp.eq.s32.totalorder %s112, 0
      %s115 = sadd.s32 %s114, 1
      %s116 = scalar_select %p113, %s114, %s115
      %p119 = pneg %p113
      %p120 = scmp.eq.s32.totalorder %s12, 1
      %p121 = por %p119, %p120
      %p122 = scmp.ne.s32.totalorder %s114, %s117
      %p123 = scmp.eq.s32.totalorder %s12, 0
      %p124 = por %p122, %p123
      %p125 = scmp.ne.s32.totalorder %s114, %s117
      %p126 = scmp.eq.s32.totalorder %s17, 1
      %p127 = por %p125, %p126
      %p128 = scmp.ne.s32.totalorder %s117, %s118
      %p129 = scmp.eq.s32.totalorder %s17, 0
      %p130 = por %p128, %p129
      %p131 = scmp.ne.s32.totalorder %s117, %s118
      %p132 = scmp.eq.s32.totalorder %s18, 1
      %p133 = por %p131, %p132
      %p135 = scmp.ne.s32.totalorder %s118, %s134
      %p136 = scmp.eq.s32.totalorder %s18, 0
      %p137 = por %p135, %p136
      %p138 = scmp.le.s32.totalorder 1, %s12
      %p139 = scmp.lt.s32.totalorder %s12, 3
      %p140 = pnand %p138, %p139
      %p141 = pneg %p140
      // Predicated region
      $region9: #{poetry_model_forward.9} parent=5 // pred_check
        _
      $region10: #{poetry_model_forward.9} parent=5 // pred_check_branch
        %143 = sbr.rel (%p140) target = $region12
      $region11: #{poetry_model_forward.9} parent=5 // pred_region
        %s144 = ssub.s32 %s12, 1
        // Predicated region
        $region13: #{poetry_model_forward.9} parent=11 // pred_check
          %p145 = pneg %p50
        $region14: #{poetry_model_forward.9} parent=11 // pred_check_branch
          %147 = sbr.rel (%p145) target = $region16
        $region15: #{poetry_model_forward.9} parent=11 // pred_region
          %s148 = smul.u32 2, %s21
          %p149 = scmp.lt.s32.totalorder %s148, 1
          %s150 = scalar_select %p149, %s148, 1
          %s151 = smul.addr %s150, 2
          %s152 = smul.addr %s151, 4
          %s153 = scalar_lea.vmem %s0, %s152
          %s154 = smul.u32 2, %s21
        $region16: #{poetry_model_forward.9} parent=11 // pred_fallthru
          _
      $region12: #{poetry_model_forward.9} parent=5 // pred_fallthru
        _
      %p155 = scmp.lt.s32.totalorder %s12, 2
      // Predicated region
      $region17: #{poetry_model_forward.9} parent=5 // pred_check
        %p156 = pneg %p155
      $region18: #{poetry_model_forward.9} parent=5 // pred_check_branch
        %158 = sbr.rel (%p156) target = $region20
      $region19: #{poetry_model_forward.9} parent=5 // pred_region
        // Predicated region
        $region21: #{poetry_model_forward.9} parent=19 // pred_check
          %p159 = pneg %p70
        $region22: #{poetry_model_forward.9} parent=19 // pred_check_branch
          %161 = sbr.rel (%p159) target = $region24
        $region23: #{poetry_model_forward.9} parent=19 // pred_region
          %s162 = sand.u32 %s60, 1
          %s163 = scalar_lea.sflag [#allocation3], %s162
          %s164 = sand.u32 %s60, 1
          %s165 = smul.addr %s164, 384
          %s166 = scalar_lea.vmem [#allocation2], %s165
          %s167 = smul.u32 3, %s20
          %169 = vsyncadd %s163, 0
          %s170 = smul.addr %s167, 4
          %s171 = scalar_lea.hbm %s1, %s170
          %s172 = sshll.u32 %s171, 4
          %s173 = int_to_ptr.hbm [resolvable:$true] %s172
          %s174 = sshll.u32 %s166, 4
          %s175 = int_to_ptr.vmem [resolvable:$true] %s174
          %180 = dma.hbm_to_vmem [thread:$0]  %s173, 6144, %s175, %s163, 384, 192, 12
        $region24: #{poetry_model_forward.9} parent=19 // pred_fallthru
          _
        // Predicated region
        $region25: #{poetry_model_forward.9} parent=19 // pred_check
          %p181 = pneg %p96
        $region26: #{poetry_model_forward.9} parent=19 // pred_check_branch
          %183 = sbr.rel (%p181) target = $region28
        $region27: #{poetry_model_forward.9} parent=19 // pred_region
          %s184 = smul.u32 3, %s20
          %p185 = scmp.lt.s32.totalorder %s184, 5
          %s186 = scalar_select %p185, %s184, 5
          %s187 = scalar_lea.vmem %s2, %s186
          %s188 = smul.u32 3, %s20
        $region28: #{poetry_model_forward.9} parent=19 // pred_fallthru
          _
      $region20: #{poetry_model_forward.9} parent=5 // pred_fallthru
        _
      %p189 = scmp.le.s32.totalorder 1, %s12
      %p190 = scmp.lt.s32.totalorder %s12, 3
      %p191 = pnand %p189, %p190
      %p192 = pneg %p191
      // Predicated region
      $region29: #{poetry_model_forward.9} parent=5 // pred_check
        _
      $region30: #{poetry_model_forward.9} parent=5 // pred_check_branch
        %194 = sbr.rel (%p191) target = $region32
      $region31: #{poetry_model_forward.9} parent=5 // pred_region
        %s195 = ssub.s32 %s12, 1
        %s196 = sand.u32 %s63, 1
        %s197 = scalar_lea.sflag [#allocation3], %s196
        %s198 = sand.u32 %s63, 1
        %s199 = smul.addr %s198, 384
        %s200 = scalar_lea.vmem [#allocation2], %s199
        // Predicated region
        $region33: #{poetry_model_forward.9} parent=31 // pred_check
          %p201 = pneg %p76
        $region34: #{poetry_model_forward.9} parent=31 // pred_check_branch
          %203 = sbr.rel (%p201) target = $region36
        $region35: #{poetry_model_forward.9} parent=31 // pred_region
          %205 = dma.done %s197, 6144
        $region36: #{poetry_model_forward.9} parent=31 // pred_fallthru
          _
        %s206 = smul.u32 2, %s21
        %p207 = scmp.lt.s32.totalorder %s206, 1
        %s208 = scalar_select %p207, %s206, 1
        %s209 = smul.addr %s208, 2
        %s210 = smul.addr %s209, 4
        %s211 = scalar_lea.vmem %s0, %s210
        %p212 = pneg %p50
        %p213 = pneg %p47
        %s214 = sand.u32 %s63, 1
        %s215 = scalar_lea.sflag [#allocation3], %s214
        %s216 = sand.u32 %s63, 1
        %s217 = smul.addr %s216, 384
        %s218 = scalar_lea.vmem [#allocation2], %s217
        %p219 = pneg %p76
        %p220 = pneg %p73
        %s221 = smul.u32 3, %s22
        %p222 = scmp.lt.s32.totalorder %s221, 5
        %s223 = scalar_select %p222, %s221, 5
        %s224 = scalar_lea.vmem %s2, %s223
        %p225 = pneg %p102
        %p226 = pneg %p99
        %p227 = pneg %p130
        %p228 = pneg %p127
        %s229 = sand.u32 %s117, 1
        %s230 = sand.u32 %s117, 1
        %s231 = smul.addr %s230, 24
        %s232 = scalar_lea.vmem [#allocation4], %s231
        %s233 = smul.u32 2, %s21
        %p234 = scmp.lt.s32.totalorder %s233, 1
        %s235 = scalar_select %p234, %s233, 1
        %s236 = smul.addr %s235, 2
        %s237 = smul.addr %s236, 4
        %s238 = scalar_lea.vmem %s0, %s237
        %s239 = smul.u32 2, %s21
        %s240 = smul.u32 3, %s22
        %s241 = smul.u32 3, %s22
        %p242 = scmp.lt.s32.totalorder %s241, 5
        %s243 = scalar_select %p242, %s241, 5
        %s244 = scalar_lea.vmem %s2, %s243
        %s245 = smul.u32 3, %s22
        %s246 = smul.u32 2, %s21
        %s247 = smul.u32 3, %s22
        %v248 = vld [vmem:[%s238] sm:$0xff]
        %v249 = vld [vmem:[%s238 + $0x8] sm:$0xff]
        %v250 = vld [vmem:[%s200] sm:$0xff]
        %v251 = vld [vmem:[%s200 + $0x8] sm:$0xf]
        %v252 = vld [vmem:[%s200 + $0xc] sm:$0xff]
        %v253 = vld [vmem:[%s200 + $0x14] sm:$0xf]
        %v254 = vld [vmem:[%s200 + $0x18] sm:$0xff]
        %v255 = vld [vmem:[%s200 + $0x20] sm:$0xf]
        %v256 = vld [vmem:[%s200 + $0x24] sm:$0xff]
        %v257 = vld [vmem:[%s200 + $0x2c] sm:$0xf]
        %v258 = vld [vmem:[%s200 + $0x30] sm:$0xff]
        %v259 = vld [vmem:[%s200 + $0x38] sm:$0xf]
        %v260 = vld [vmem:[%s200 + $0x3c] sm:$0xff]
        %v261 = vld [vmem:[%s200 + $0x44] sm:$0xf]
        %v262 = vld [vmem:[%s200 + $0x48] sm:$0xff]
        %v263 = vld [vmem:[%s200 + $0x50] sm:$0xf]
        %v264 = vld [vmem:[%s200 + $0x54] sm:$0xff]
        %v265 = vld [vmem:[%s200 + $0x5c] sm:$0xf]
        %v266 = vld [vmem:[%s200 + $0x60] sm:$0xff]
        %v267 = vld [vmem:[%s200 + $0x68] sm:$0xf]
        %v268 = vld [vmem:[%s200 + $0x6c] sm:$0xff]
        %v269 = vld [vmem:[%s200 + $0x74] sm:$0xf]
        %v270 = vld [vmem:[%s200 + $0x78] sm:$0xff]
        %v271 = vld [vmem:[%s200 + $0x80] sm:$0xf]
        %v272 = vld [vmem:[%s200 + $0x84] sm:$0xff]
        %v273 = vld [vmem:[%s200 + $0x8c] sm:$0xf]
        %v274 = vld [vmem:[%s200 + $0x90] sm:$0xff]
        %v275 = vld [vmem:[%s200 + $0x98] sm:$0xf]
        %v276 = vld [vmem:[%s200 + $0x9c] sm:$0xff]
        %v277 = vld [vmem:[%s200 + $0xa4] sm:$0xf]
        %v278 = vld [vmem:[%s200 + $0xa8] sm:$0xff]
        %v279 = vld [vmem:[%s200 + $0xb0] sm:$0xf]
        %v280 = vld [vmem:[%s200 + $0xb4] sm:$0xff]
        %v281 = vld [vmem:[%s200 + $0xbc] sm:$0xf]
        %v282 = vld [vmem:[%s200 + $0xc0] sm:$0xff]
        %v283 = vld [vmem:[%s200 + $0xc8] sm:$0xf]
        %v284 = vld [vmem:[%s200 + $0xcc] sm:$0xff]
        %v285 = vld [vmem:[%s200 + $0xd4] sm:$0xf]
        %v286 = vld [vmem:[%s200 + $0xd8] sm:$0xff]
        %v287 = vld [vmem:[%s200 + $0xe0] sm:$0xf]
        %v288 = vld [vmem:[%s200 + $0xe4] sm:$0xff]
        %v289 = vld [vmem:[%s200 + $0xec] sm:$0xf]
        %v290 = vld [vmem:[%s200 + $0xf0] sm:$0xff]
        %v291 = vld [vmem:[%s200 + $0xf8] sm:$0xf]
        %v292 = vld [vmem:[%s200 + $0xfc] sm:$0xff]
        %v293 = vld [vmem:[%s200 + $0x104] sm:$0xf]
        %v294 = vld [vmem:[%s200 + $0x108] sm:$0xff]
        %v295 = vld [vmem:[%s200 + $0x110] sm:$0xf]
        %v296 = vld [vmem:[%s200 + $0x114] sm:$0xff]
        %v297 = vld [vmem:[%s200 + $0x11c] sm:$0xf]
        %v298 = vld [vmem:[%s200 + $0x120] sm:$0xff]
        %v299 = vld [vmem:[%s200 + $0x128] sm:$0xf]
        %v300 = vld [vmem:[%s200 + $0x12c] sm:$0xff]
        %v301 = vld [vmem:[%s200 + $0x134] sm:$0xf]
        %v302 = vld [vmem:[%s200 + $0x138] sm:$0xff]
        %v303 = vld [vmem:[%s200 + $0x140] sm:$0xf]
        %v304 = vld [vmem:[%s200 + $0x144] sm:$0xff]
        %v305 = vld [vmem:[%s200 + $0x14c] sm:$0xf]
        %v306 = vld [vmem:[%s200 + $0x150] sm:$0xff]
        %v307 = vld [vmem:[%s200 + $0x158] sm:$0xf]
        %v308 = vld [vmem:[%s200 + $0x15c] sm:$0xff]
        %v309 = vld [vmem:[%s200 + $0x164] sm:$0xf]
        %v310 = vld [vmem:[%s200 + $0x168] sm:$0xff]
        %v311 = vld [vmem:[%s200 + $0x170] sm:$0xf]
        %v312 = vld [vmem:[%s200 + $0x174] sm:$0xff]
        %v313 = vld [vmem:[%s200 + $0x17c] sm:$0xf]
        %v314 = vld [vmem:[%s244] sm:$0x7]
        %v316 = vperm.slane %v314, 0
        %v317 = vperm.slane %v314, 1
        %v318 = vperm.slane %v314, 2
        %v324 = vunpack.c.l.b16 %v248
        %v325 = vunpack.c.h.b16 %v248
        %v326 = vunpack.c.l.b16 %v249
        %v327 = vunpack.c.h.b16 %v249
        %v328 = vpack.c.b16 %v326, %v324
        %v329 = vpack.c.b16 %v327, %v325
        %v396 = vunpack.c.l.b16 %v250
        %v397 = vunpack.c.h.b16 %v250
        %v398 = vunpack.c.l.b16 %v251
        %v399 = vunpack.c.l.b16 %v252
        %v400 = vunpack.c.h.b16 %v252
        %v401 = vunpack.c.l.b16 %v253
        %v402 = vunpack.c.l.b16 %v254
        %v403 = vunpack.c.h.b16 %v254
        %v404 = vunpack.c.l.b16 %v255
        %v405 = vunpack.c.l.b16 %v256
        %v406 = vunpack.c.h.b16 %v256
        %v407 = vunpack.c.l.b16 %v257
        %v408 = vunpack.c.l.b16 %v258
        %v409 = vunpack.c.h.b16 %v258
        %v410 = vunpack.c.l.b16 %v259
        %v411 = vunpack.c.l.b16 %v260
        %v412 = vunpack.c.h.b16 %v260
        %v413 = vunpack.c.l.b16 %v261
        %v414 = vunpack.c.l.b16 %v262
        %v415 = vunpack.c.h.b16 %v262
        %v416 = vunpack.c.l.b16 %v263
        %v417 = vunpack.c.l.b16 %v264
        %v418 = vunpack.c.h.b16 %v264
        %v419 = vunpack.c.l.b16 %v265
        %v420 = vunpack.c.l.b16 %v266
        %v421 = vunpack.c.h.b16 %v266
        %v422 = vunpack.c.l.b16 %v267
        %v423 = vunpack.c.l.b16 %v268
        %v424 = vunpack.c.h.b16 %v268
        %v425 = vunpack.c.l.b16 %v269
        %v426 = vunpack.c.l.b16 %v270
        %v427 = vunpack.c.h.b16 %v270
        %v428 = vunpack.c.l.b16 %v271
        %v429 = vunpack.c.l.b16 %v272
        %v430 = vunpack.c.h.b16 %v272
        %v431 = vunpack.c.l.b16 %v273
        %v432 = vunpack.c.l.b16 %v274
        %v433 = vunpack.c.h.b16 %v274
        %v434 = vunpack.c.l.b16 %v275
        %v435 = vunpack.c.l.b16 %v276
        %v436 = vunpack.c.h.b16 %v276
        %v437 = vunpack.c.l.b16 %v277
        %v438 = vunpack.c.l.b16 %v278
        %v439 = vunpack.c.h.b16 %v278
        %v440 = vunpack.c.l.b16 %v279
        %v441 = vunpack.c.l.b16 %v280
        %v442 = vunpack.c.h.b16 %v280
        %v443 = vunpack.c.l.b16 %v281
        %v444 = vunpack.c.l.b16 %v282
        %v445 = vunpack.c.h.b16 %v282
        %v446 = vunpack.c.l.b16 %v283
        %v447 = vunpack.c.l.b16 %v284
        %v448 = vunpack.c.h.b16 %v284
        %v449 = vunpack.c.l.b16 %v285
        %v450 = vunpack.c.l.b16 %v286
        %v451 = vunpack.c.h.b16 %v286
        %v452 = vunpack.c.l.b16 %v287
        %v453 = vunpack.c.l.b16 %v288
        %v454 = vunpack.c.h.b16 %v288
        %v455 = vunpack.c.l.b16 %v289
        %v456 = vunpack.c.l.b16 %v290
        %v457 = vunpack.c.h.b16 %v290
        %v458 = vunpack.c.l.b16 %v291
        %v459 = vunpack.c.l.b16 %v292
        %v460 = vunpack.c.h.b16 %v292
        %v461 = vunpack.c.l.b16 %v293
        %v462 = vunpack.c.l.b16 %v294
        %v463 = vunpack.c.h.b16 %v294
        %v464 = vunpack.c.l.b16 %v295
        %v465 = vunpack.c.l.b16 %v296
        %v466 = vunpack.c.h.b16 %v296
        %v467 = vunpack.c.l.b16 %v297
        %v468 = vunpack.c.l.b16 %v298
        %v469 = vunpack.c.h.b16 %v298
        %v470 = vunpack.c.l.b16 %v299
        %v471 = vunpack.c.l.b16 %v300
        %v472 = vunpack.c.h.b16 %v300
        %v473 = vunpack.c.l.b16 %v301
        %v474 = vunpack.c.l.b16 %v302
        %v475 = vunpack.c.h.b16 %v302
        %v476 = vunpack.c.l.b16 %v303
        %v477 = vunpack.c.l.b16 %v304
        %v478 = vunpack.c.h.b16 %v304
        %v479 = vunpack.c.l.b16 %v305
        %v480 = vunpack.c.l.b16 %v306
        %v481 = vunpack.c.h.b16 %v306
        %v482 = vunpack.c.l.b16 %v307
        %v483 = vunpack.c.l.b16 %v308
        %v484 = vunpack.c.h.b16 %v308
        %v485 = vunpack.c.l.b16 %v309
        %v486 = vunpack.c.l.b16 %v310
        %v487 = vunpack.c.h.b16 %v310
        %v488 = vunpack.c.l.b16 %v311
        %v489 = vunpack.c.l.b16 %v312
        %v490 = vunpack.c.h.b16 %v312
        %v491 = vunpack.c.l.b16 %v313
        %v492 = vpack.c.b16 %v399, %v396
        %v493 = vpack.c.b16 %v400, %v397
        %v494 = vpack.c.b16 %v401, %v398
        %v495 = vpack.c.b16 %v405, %v402
        %v496 = vpack.c.b16 %v406, %v403
        %v497 = vpack.c.b16 %v407, %v404
        %v498 = vpack.c.b16 %v411, %v408
        %v499 = vpack.c.b16 %v412, %v409
        %v500 = vpack.c.b16 %v413, %v410
        %v501 = vpack.c.b16 %v417, %v414
        %v502 = vpack.c.b16 %v418, %v415
        %v503 = vpack.c.b16 %v419, %v416
        %v504 = vpack.c.b16 %v423, %v420
        %v505 = vpack.c.b16 %v424, %v421
        %v506 = vpack.c.b16 %v425, %v422
        %v507 = vpack.c.b16 %v429, %v426
        %v508 = vpack.c.b16 %v430, %v427
        %v509 = vpack.c.b16 %v431, %v428
        %v510 = vpack.c.b16 %v435, %v432
        %v511 = vpack.c.b16 %v436, %v433
        %v512 = vpack.c.b16 %v437, %v434
        %v513 = vpack.c.b16 %v441, %v438
        %v514 = vpack.c.b16 %v442, %v439
        %v515 = vpack.c.b16 %v443, %v440
        %v516 = vpack.c.b16 %v447, %v444
        %v517 = vpack.c.b16 %v448, %v445
        %v518 = vpack.c.b16 %v449, %v446
        %v519 = vpack.c.b16 %v453, %v450
        %v520 = vpack.c.b16 %v454, %v451
        %v521 = vpack.c.b16 %v455, %v452
        %v522 = vpack.c.b16 %v459, %v456
        %v523 = vpack.c.b16 %v460, %v457
        %v524 = vpack.c.b16 %v461, %v458
        %v525 = vpack.c.b16 %v465, %v462
        %v526 = vpack.c.b16 %v466, %v463
        %v527 = vpack.c.b16 %v467, %v464
        %v528 = vpack.c.b16 %v471, %v468
        %v529 = vpack.c.b16 %v472, %v469
        %v530 = vpack.c.b16 %v473, %v470
        %v531 = vpack.c.b16 %v477, %v474
        %v532 = vpack.c.b16 %v478, %v475
        %v533 = vpack.c.b16 %v479, %v476
        %v534 = vpack.c.b16 %v483, %v480
        %v535 = vpack.c.b16 %v484, %v481
        %v536 = vpack.c.b16 %v485, %v482
        %v537 = vpack.c.b16 %v489, %v486
        %v538 = vpack.c.b16 %v490, %v487
        %v539 = vpack.c.b16 %v491, %v488
        %588 = vmatpush.bf16.msra.mxu0 %v513
        %589 = vmatpush.bf16.msra.mxu0 %v510
        %590 = vmatpush.bf16.msra.mxu0 %v507
        %591 = vmatpush.bf16.msra.mxu0 %v504
        %592 = vmatpush.bf16.msra.mxu0 %v501
        %593 = vmatpush.bf16.msra.mxu0 %v498
        %594 = vmatpush.bf16.msra.mxu0 %v495
        %595 = vmatpush.bf16.msra.mxu0 %v492
        %596 = vmatmul.bf16.gmra.mxu0 %v328
        %v597 = vpop.f32.mrf.mxu0
        %v598 = vadd.f32 %v316, %v597
        %v599 = vpop.f32.mrf.mxu0
        %v600 = vadd.f32 %v316, %v599
        %601 = vdwg.mxu0
        %602 = vmatpush.bf16.msra.mxu0 %v537
        %603 = vmatpush.bf16.msra.mxu0 %v534
        %604 = vmatpush.bf16.msra.mxu0 %v531
        %605 = vmatpush.bf16.msra.mxu0 %v528
        %606 = vmatpush.bf16.msra.mxu0 %v525
        %607 = vmatpush.bf16.msra.mxu0 %v522
        %608 = vmatpush.bf16.msra.mxu0 %v519
        %609 = vmatpush.bf16.msra.mxu0 %v516
        %610 = vmatmul.bf16.gmra.mxu0 %v329
        %v611 = vpop.f32.mrf.mxu0
        %v612 = vadd.f32 %v598, %v611
        %v613 = vpop.f32.mrf.mxu0
        %v614 = vadd.f32 %v600, %v613
        %615 = vdwg.mxu0
        %616 = vmatpush.bf16.msra.mxu0 %v514
        %617 = vmatpush.bf16.msra.mxu0 %v511
        %618 = vmatpush.bf16.msra.mxu0 %v508
        %619 = vmatpush.bf16.msra.mxu0 %v505
        %620 = vmatpush.bf16.msra.mxu0 %v502
        %621 = vmatpush.bf16.msra.mxu0 %v499
        %622 = vmatpush.bf16.msra.mxu0 %v496
        %623 = vmatpush.bf16.msra.mxu0 %v493
        %624 = vmatmul.bf16.gmra.mxu0 %v328
        %v625 = vpop.f32.mrf.mxu0
        %v626 = vadd.f32 %v317, %v625
        %v627 = vpop.f32.mrf.mxu0
        %v628 = vadd.f32 %v317, %v627
        %629 = vdwg.mxu0
        %630 = vmatpush.bf16.msra.mxu0 %v538
        %631 = vmatpush.bf16.msra.mxu0 %v535
        %632 = vmatpush.bf16.msra.mxu0 %v532
        %633 = vmatpush.bf16.msra.mxu0 %v529
        %634 = vmatpush.bf16.msra.mxu0 %v526
        %635 = vmatpush.bf16.msra.mxu0 %v523
        %636 = vmatpush.bf16.msra.mxu0 %v520
        %637 = vmatpush.bf16.msra.mxu0 %v517
        %638 = vmatmul.bf16.gmra.mxu0 %v329
        %v639 = vpop.f32.mrf.mxu0
        %v640 = vadd.f32 %v626, %v639
        %v641 = vpop.f32.mrf.mxu0
        %v642 = vadd.f32 %v628, %v641
        %643 = vdwg.mxu0
        %644 = vmatpush.bf16.msra.mxu0 %v515
        %645 = vmatpush.bf16.msra.mxu0 %v512
        %646 = vmatpush.bf16.msra.mxu0 %v509
        %647 = vmatpush.bf16.msra.mxu0 %v506
        %648 = vmatpush.bf16.msra.mxu0 %v503
        %649 = vmatpush.bf16.msra.mxu0 %v500
        %650 = vmatpush.bf16.msra.mxu0 %v497
        %651 = vmatpush.bf16.msra.mxu0 %v494
        %652 = vmatmul.bf16.gmra.mxu0 %v328
        %v653 = vpop.f32.mrf.mxu0
        %v654 = vadd.f32 %v318, %v653
        %v655 = vpop.f32.mrf.mxu0
        %v656 = vadd.f32 %v318, %v655
        %657 = vdwg.mxu0
        %658 = vmatpush.bf16.msra.mxu0 %v539
        %659 = vmatpush.bf16.msra.mxu0 %v536
        %660 = vmatpush.bf16.msra.mxu0 %v533
        %661 = vmatpush.bf16.msra.mxu0 %v530
        %662 = vmatpush.bf16.msra.mxu0 %v527
        %663 = vmatpush.bf16.msra.mxu0 %v524
        %664 = vmatpush.bf16.msra.mxu0 %v521
        %665 = vmatpush.bf16.msra.mxu0 %v518
        %666 = vmatmul.bf16.gmra.mxu0 %v329
        %v667 = vpop.f32.mrf.mxu0
        %v668 = vadd.f32 %v654, %v667
        %v669 = vpop.f32.mrf.mxu0
        %v670 = vadd.f32 %v656, %v669
        %671 = vdwg.mxu0
        %v672 = vpack.c.bf16 %v640, %v612
        %v673 = vpack.c.bf16 %v668, %v668
        %v674 = vpack.c.bf16 %v642, %v614
        %v675 = vpack.c.bf16 %v670, %v670
        %676 = vst [vmem:[%s232] sm:$0xff] %v672
        %677 = vst [vmem:[%s232 + $0x8] sm:$0xf] %v673
        %678 = vst [vmem:[%s232 + $0xc] sm:$0xff] %v674
        %679 = vst [vmem:[%s232 + $0x14] sm:$0xf] %v675
        %s680 = sand.u32 %s117, 1
        %s681 = sand.u32 %s117, 1
        %s682 = smul.addr %s681, 24
        %s683 = scalar_lea.vmem [#allocation4], %s682
        // Predicated region
        $region37: #{poetry_model_forward.9} parent=31 // pred_check
          %p684 = pneg %p127
        $region38: #{poetry_model_forward.9} parent=31 // pred_check_branch
          %686 = sbr.rel (%p684) target = $region40
        $region39: #{poetry_model_forward.9} parent=31 // pred_region
          %s687 = smul.u32 2, %s21
          %s688 = smul.u32 3, %s22
          %s689 = smul.addr %s687, 6
          %s690 = sadd.s32 %s688, %s689
          %s691 = smul.addr %s690, 4
          %s692 = scalar_lea.vmem %s3, %s691
          // Predicated region
          $region41: #{poetry_model_forward.9} parent=39 // pred_check
            _
          $region42: #{poetry_model_forward.9} parent=39 // pred_check_branch
            %694 = sbr.rel (0) target = $region44
          $region43: #{poetry_model_forward.9} parent=39 // pred_region
            // Predicated region
            $region45: #{poetry_model_forward.9} parent=43 // pred_check
              _
            $region46: #{poetry_model_forward.9} parent=43 // pred_check_branch
              %696 = sbr.rel (0) target = $region48
            $region47: #{poetry_model_forward.9} parent=43 // pred_region
              %s697 = scalar_lea.vmem %s683, 8 [#allocation4]
              %s698 = scalar_lea.vmem %s692, 8
              loop: start=0, step=1, limit=1
              $region49: #{poetry_model_forward.9} parent=47 // loop_pre_header
                _
              $region50: #{poetry_model_forward.9} parent=47 // loop_header
                %s700 = sphi 0, %s704
                %p701 = scmp.ge.s32.totalorder %s700, 1
                %s705 = sphi %s683, %s683
                %s706 = sphi %s692, %s692
              $region51: #{poetry_model_forward.9} parent=47 // loop_header_branch
                %703 = sbr.rel (%p701) target = $region55
              $region52: #{poetry_model_forward.9} parent=47 // loop_body
                %v707 = vld [vmem:[%s705] sm:$0xff]
                %708 = vst [vmem:[%s706] sm:$0xff] %v707
                %v709 = vld [vmem:[%s705 + $0xc] sm:$0xff]
                %710 = vst [vmem:[%s706 + $0x18] sm:$0xff] %v709
              $region53: #{poetry_model_forward.9} parent=47 // loop_footer
                %s704 = sadd.s32 1, %s700
              $region54: #{poetry_model_forward.9} parent=47 // loop_footer_branch
                %699 = sbr.rel target = $region50
              $region55: #{poetry_model_forward.9} parent=47 // loop_exit
                _
              %s712 = ssub.s32 16, 1
              loop: start=0, step=1, limit=1
              $region56: #{poetry_model_forward.9} parent=47 // loop_pre_header
                _
              $region57: #{poetry_model_forward.9} parent=47 // loop_header
                %s714 = sphi 0, %s718
                %p715 = scmp.ge.s32.totalorder %s714, 1
                %s719 = sphi %s697, %s697
                %s720 = sphi %s698, %s698
              $region58: #{poetry_model_forward.9} parent=47 // loop_header_branch
                %717 = sbr.rel (%p715) target = $region62
              $region59: #{poetry_model_forward.9} parent=47 // loop_body
                %v721 = vld [vmem:[%s719] sm:%s712]
                %722 = vst [vmem:[%s720] sm:%s712] %v721
                %v723 = vld [vmem:[%s719 + $0xc] sm:%s712]
                %724 = vst [vmem:[%s720 + $0x18] sm:%s712] %v723
              $region60: #{poetry_model_forward.9} parent=47 // loop_footer
                %s718 = sadd.s32 1, %s714
              $region61: #{poetry_model_forward.9} parent=47 // loop_footer_branch
                %713 = sbr.rel target = $region57
              $region62: #{poetry_model_forward.9} parent=47 // loop_exit
                _
            $region48: #{poetry_model_forward.9} parent=43 // pred_fallthru
              _
          $region44: #{poetry_model_forward.9} parent=39 // pred_fallthru
            _
          %725 = vnop
        $region40: #{poetry_model_forward.9} parent=31 // pred_fallthru
          _
      $region32: #{poetry_model_forward.9} parent=5 // pred_fallthru
        _
      %p726 = scmp.le.s32.totalorder 2, %s12
      // Predicated region
      $region63: #{poetry_model_forward.9} parent=5 // pred_check
        %p727 = pneg %p726
      $region64: #{poetry_model_forward.9} parent=5 // pred_check_branch
        %729 = sbr.rel (%p727) target = $region66
      $region65: #{poetry_model_forward.9} parent=5 // pred_region
        %s730 = ssub.s32 %s12, 2
        // Predicated region
        $region67: #{poetry_model_forward.9} parent=65 // pred_check
          %p731 = pneg %p133
        $region68: #{poetry_model_forward.9} parent=65 // pred_check_branch
          %733 = sbr.rel (%p731) target = $region70
        $region69: #{poetry_model_forward.9} parent=65 // pred_region
          %s734 = sand.u32 %s118, 1
          %s735 = sand.u32 %s118, 1
          %s736 = smul.addr %s735, 24
          %s737 = scalar_lea.vmem [#allocation4], %s736
        $region70: #{poetry_model_forward.9} parent=65 // pred_fallthru
          _
      $region66: #{poetry_model_forward.9} parent=5 // pred_fallthru
        _
    $region6: #{poetry_model_forward.9} parent=1 // loop_footer
      %s16 = sadd.s32 1, %s12
    $region7: #{poetry_model_forward.9} parent=1 // loop_footer_branch
      %11 = sbr.rel target = $region3
    $region8: #{poetry_model_forward.9} parent=1 // loop_exit
      _
    %738 = vsyncpa [#allocation3], 1
    %s739 = scalar_lea.sflag [#allocation3], 1
    %740 = vsyncpa %s739, 1

// kernel: poetry_model_forward.12
$region0: #{poetry_model_forward.12}
  #allocation0 [shape = 'u32[]', space=smem, size = 0x4, offset = 0x4, fixed_abs, tag = 'smem constant byte address 0x4 - core index']
  #allocation1 [shape = 'u32[72,128]{1,0:T(1,128)}', space=vmem, size = 0x9000, scoped, tag = 'internal scratch']
  %s0 = inlined_call_operand.vmem [shape: bf16[16,256], index: 0, kind: input, shape index: {}]
  %s1 = inlined_call_operand.hbm [shape: bf16[256,512], index: 1, kind: input, shape index: {}]
  %s2 = inlined_call_operand.vmem [shape: f32[1,512], index: 2, kind: input, shape index: {}]
  %s3 = inlined_call_operand.hbm [shape: bf16[512,256], index: 3, kind: input, shape index: {}]
  %s4 = inlined_call_operand.vmem [shape: f32[1,256], index: 4, kind: input, shape index: {}]
  %s5 = inlined_call_operand.vmem [shape: f32[1,256], index: 5, kind: input, shape index: {}]
  %s6 = inlined_call_operand.vmem [shape: f32[1,256], index: 6, kind: input, shape index: {}]
  %s7 = inlined_call_operand.vmem [shape: bf16[16,256], index: 7, kind: output, shape index: {}]
  %s8 = sld [smem:[#allocation0]]
  $region46: #{poetry_model_forward.12} parent=0
    _
  %s10 = ssub.s32 1, %s8
  %s11 = scalar_select 0, %s10, %s8
  $region1: #{poetry_model_forward.12} parent=0
    #allocation2 [shape = 'u8[262144]{0}', space=vmem, size = 0x40000, scoped, tag = 'input window, operand 1, single buffered']
    #allocation3 [shape = 's32[1]{0}', space=sflag, size = 0x4, scoped, tag = 'scoped memory for poetry_model_forward.12']
    #allocation4 [shape = 'u8[262144]{0}', space=vmem, size = 0x40000, scoped, tag = 'input window, operand 3, single buffered']
    #allocation5 [shape = 's32[1]{0}', space=sflag, size = 0x4, scoped, tag = 'scoped memory for poetry_model_forward.12']
    %12 = vsyncpa [#allocation3], 0
    %13 = vsyncpa [#allocation5], 0
    // Predicated region
    $region2: #{poetry_model_forward.12} parent=1 // pred_check
      _
    $region3: #{poetry_model_forward.12} parent=1 // pred_check_branch
      %15 = sbr.rel (0) target = $region5
    $region4: #{poetry_model_forward.12} parent=1 // pred_region
      _
    $region5: #{poetry_model_forward.12} parent=1 // pred_fallthru
      _
    // Predicated region
    $region6: #{poetry_model_forward.12} parent=1 // pred_check
      _
    $region7: #{poetry_model_forward.12} parent=1 // pred_check_branch
      %17 = sbr.rel (0) target = $region9
    $region8: #{poetry_model_forward.12} parent=1 // pred_region
      %19 = vsyncadd [#allocation3], 0
      %s20 = sshll.u32 %s1, 4
      %s21 = int_to_ptr.hbm [resolvable:$true] %s20
      %s22 = sshll.u32 [#allocation2], 4
      %s23 = int_to_ptr.vmem [resolvable:$true] %s22
      %28 = dma.hbm_to_vmem [thread:$0]  %s21, 8192, %s23, [#allocation3], 256, 256, 16
    $region9: #{poetry_model_forward.12} parent=1 // pred_fallthru
      _
    // Predicated region
    $region10: #{poetry_model_forward.12} parent=1 // pred_check
      _
    $region11: #{poetry_model_forward.12} parent=1 // pred_check_branch
      %30 = sbr.rel (0) target = $region13
    $region12: #{poetry_model_forward.12} parent=1 // pred_region
      _
    $region13: #{poetry_model_forward.12} parent=1 // pred_fallthru
      _
    // Predicated region
    $region14: #{poetry_model_forward.12} parent=1 // pred_check
      _
    $region15: #{poetry_model_forward.12} parent=1 // pred_check_branch
      %32 = sbr.rel (0) target = $region17
    $region16: #{poetry_model_forward.12} parent=1 // pred_region
      %34 = vsyncadd [#allocation5], 0
      %s35 = sshll.u32 %s3, 4
      %s36 = int_to_ptr.hbm [resolvable:$true] %s35
      %s37 = sshll.u32 [#allocation4], 4
      %s38 = int_to_ptr.vmem [resolvable:$true] %s37
      %43 = dma.hbm_to_vmem [thread:$0]  %s36, 8192, %s38, [#allocation5], 128, 128, 8
    $region17: #{poetry_model_forward.12} parent=1 // pred_fallthru
      _
    // Predicated region
    $region18: #{poetry_model_forward.12} parent=1 // pred_check
      _
    $region19: #{poetry_model_forward.12} parent=1 // pred_check_branch
      %45 = sbr.rel (0) target = $region21
    $region20: #{poetry_model_forward.12} parent=1 // pred_region
      _
    $region21: #{poetry_model_forward.12} parent=1 // pred_fallthru
      _
    // Predicated region
    $region22: #{poetry_model_forward.12} parent=1 // pred_check
      _
    $region23: #{poetry_model_forward.12} parent=1 // pred_check_branch
      %47 = sbr.rel (0) target = $region25
    $region24: #{poetry_model_forward.12} parent=1 // pred_region
      _
    $region25: #{poetry_model_forward.12} parent=1 // pred_fallthru
      _
    // Predicated region
    $region26: #{poetry_model_forward.12} parent=1 // pred_check
      _
    $region27: #{poetry_model_forward.12} parent=1 // pred_check_branch
      %49 = sbr.rel (0) target = $region29
    $region28: #{poetry_model_forward.12} parent=1 // pred_region
      _
    $region29: #{poetry_model_forward.12} parent=1 // pred_fallthru
      _
    // Predicated region
    $region30: #{poetry_model_forward.12} parent=1 // pred_check
      _
    $region31: #{poetry_model_forward.12} parent=1 // pred_check_branch
      %51 = sbr.rel (0) target = $region33
    $region32: #{poetry_model_forward.12} parent=1 // pred_region
      %53 = dma.done [#allocation3], 8192
    $region33: #{poetry_model_forward.12} parent=1 // pred_fallthru
      _
    // Predicated region
    $region34: #{poetry_model_forward.12} parent=1 // pred_check
      _
    $region35: #{poetry_model_forward.12} parent=1 // pred_check_branch
      %55 = sbr.rel (0) target = $region37
    $region36: #{poetry_model_forward.12} parent=1 // pred_region
      %57 = dma.done [#allocation5], 8192
    $region37: #{poetry_model_forward.12} parent=1 // pred_fallthru
      _
    %v58 = vld [vmem:[%s0] sm:$0xff]
    %v59 = vld [vmem:[%s0 + $0x8] sm:$0xff]
    %v60 = vld [vmem:[#allocation2] sm:$0xff]
    %v61 = vld [vmem:[#allocation2 + $0x8] sm:$0xff]
    %v62 = vld [vmem:[#allocation2 + $0x10] sm:$0xff]
    %v63 = vld [vmem:[#allocation2 + $0x18] sm:$0xff]
    %v64 = vld [vmem:[#allocation2 + $0x20] sm:$0xff]
    %v65 = vld [vmem:[#allocation2 + $0x28] sm:$0xff]
    %v66 = vld [vmem:[#allocation2 + $0x30] sm:$0xff]
    %v67 = vld [vmem:[#allocation2 + $0x38] sm:$0xff]
    %v68 = vld [vmem:[#allocation2 + $0x40] sm:$0xff]
    %v69 = vld [vmem:[#allocation2 + $0x48] sm:$0xff]
    %v70 = vld [vmem:[#allocation2 + $0x50] sm:$0xff]
    %v71 = vld [vmem:[#allocation2 + $0x58] sm:$0xff]
    %v72 = vld [vmem:[#allocation2 + $0x60] sm:$0xff]
    %v73 = vld [vmem:[#allocation2 + $0x68] sm:$0xff]
    %v74 = vld [vmem:[#allocation2 + $0x70] sm:$0xff]
    %v75 = vld [vmem:[#allocation2 + $0x78] sm:$0xff]
    %v76 = vld [vmem:[#allocation2 + $0x80] sm:$0xff]
    %v77 = vld [vmem:[#allocation2 + $0x88] sm:$0xff]
    %v78 = vld [vmem:[#allocation2 + $0x90] sm:$0xff]
    %v79 = vld [vmem:[#allocation2 + $0x98] sm:$0xff]
    %v80 = vld [vmem:[#allocation2 + $0xa0] sm:$0xff]
    %v81 = vld [vmem:[#allocation2 + $0xa8] sm:$0xff]
    %v82 = vld [vmem:[#allocation2 + $0xb0] sm:$0xff]
    %v83 = vld [vmem:[#allocation2 + $0xb8] sm:$0xff]
    %v84 = vld [vmem:[#allocation2 + $0xc0] sm:$0xff]
    %v85 = vld [vmem:[#allocation2 + $0xc8] sm:$0xff]
    %v86 = vld [vmem:[#allocation2 + $0xd0] sm:$0xff]
    %v87 = vld [vmem:[#allocation2 + $0xd8] sm:$0xff]
    %v88 = vld [vmem:[#allocation2 + $0xe0] sm:$0xff]
    %v89 = vld [vmem:[#allocation2 + $0xe8] sm:$0xff]
    %v90 = vld [vmem:[#allocation2 + $0xf0] sm:$0xff]
    %v91 = vld [vmem:[#allocation2 + $0xf8] sm:$0xff]
    %v92 = vld [vmem:[#allocation2 + $0x100] sm:$0xff]
    %v93 = vld [vmem:[#allocation2 + $0x108] sm:$0xff]
    %v94 = vld [vmem:[#allocation2 + $0x110] sm:$0xff]
    %v95 = vld [vmem:[#allocation2 + $0x118] sm:$0xff]
    %v96 = vld [vmem:[#allocation2 + $0x120] sm:$0xff]
    %v97 = vld [vmem:[#allocation2 + $0x128] sm:$0xff]
    %v98 = vld [vmem:[#allocation2 + $0x130] sm:$0xff]
    %v99 = vld [vmem:[#allocation2 + $0x138] sm:$0xff]
    %v100 = vld [vmem:[#allocation2 + $0x140] sm:$0xff]
    %v101 = vld [vmem:[#allocation2 + $0x148] sm:$0xff]
    %v102 = vld [vmem:[#allocation2 + $0x150] sm:$0xff]
    %v103 = vld [vmem:[#allocation2 + $0x158] sm:$0xff]
    %v104 = vld [vmem:[#allocation2 + $0x160] sm:$0xff]
    %v105 = vld [vmem:[#allocation2 + $0x168] sm:$0xff]
    %v106 = vld [vmem:[#allocation2 + $0x170] sm:$0xff]
    %v107 = vld [vmem:[#allocation2 + $0x178] sm:$0xff]
    %v108 = vld [vmem:[#allocation2 + $0x180] sm:$0xff]
    %v109 = vld [vmem:[#allocation2 + $0x188] sm:$0xff]
    %v110 = vld [vmem:[#allocation2 + $0x190] sm:$0xff]
    %v111 = vld [vmem:[#allocation2 + $0x198] sm:$0xff]
    %v112 = vld [vmem:[#allocation2 + $0x1a0] sm:$0xff]
    %v113 = vld [vmem:[#allocation2 + $0x1a8] sm:$0xff]
    %v114 = vld [vmem:[#allocation2 + $0x1b0] sm:$0xff]
    %v115 = vld [vmem:[#allocation2 + $0x1b8] sm:$0xff]
    %v116 = vld [vmem:[#allocation2 + $0x1c0] sm:$0xff]
    %v117 = vld [vmem:[#allocation2 + $0x1c8] sm:$0xff]
    %v118 = vld [vmem:[#allocation2 + $0x1d0] sm:$0xff]
    %v119 = vld [vmem:[#allocation2 + $0x1d8] sm:$0xff]
    %v120 = vld [vmem:[#allocation2 + $0x1e0] sm:$0xff]
    %v121 = vld [vmem:[#allocation2 + $0x1e8] sm:$0xff]
    %v122 = vld [vmem:[#allocation2 + $0x1f0] sm:$0xff]
    %v123 = vld [vmem:[#allocation2 + $0x1f8] sm:$0xff]
    %v124 = vld [vmem:[%s2] sm:$0xf]
    %v126 = vperm.slane %v124, 0
    %v127 = vperm.slane %v124, 1
    %v128 = vperm.slane %v124, 2
    %v129 = vperm.slane %v124, 3
    %v136 = vunpack.c.l.b16 %v58
    %v137 = vunpack.c.h.b16 %v58
    %v138 = vunpack.c.l.b16 %v59
    %v139 = vunpack.c.h.b16 %v59
    %v140 = vpack.c.b16 %v138, %v136
    %v141 = vpack.c.b16 %v139, %v137
    %v208 = vunpack.c.l.b16 %v60
    %v209 = vunpack.c.h.b16 %v60
    %v210 = vunpack.c.l.b16 %v61
    %v211 = vunpack.c.h.b16 %v61
    %v212 = vunpack.c.l.b16 %v62
    %v213 = vunpack.c.h.b16 %v62
    %v214 = vunpack.c.l.b16 %v63
    %v215 = vunpack.c.h.b16 %v63
    %v216 = vunpack.c.l.b16 %v64
    %v217 = vunpack.c.h.b16 %v64
    %v218 = vunpack.c.l.b16 %v65
    %v219 = vunpack.c.h.b16 %v65
    %v220 = vunpack.c.l.b16 %v66
    %v221 = vunpack.c.h.b16 %v66
    %v222 = vunpack.c.l.b16 %v67
    %v223 = vunpack.c.h.b16 %v67
    %v224 = vunpack.c.l.b16 %v68
    %v225 = vunpack.c.h.b16 %v68
    %v226 = vunpack.c.l.b16 %v69
    %v227 = vunpack.c.h.b16 %v69
    %v228 = vunpack.c.l.b16 %v70
    %v229 = vunpack.c.h.b16 %v70
    %v230 = vunpack.c.l.b16 %v71
    %v231 = vunpack.c.h.b16 %v71
    %v232 = vunpack.c.l.b16 %v72
    %v233 = vunpack.c.h.b16 %v72
    %v234 = vunpack.c.l.b16 %v73
    %v235 = vunpack.c.h.b16 %v73
    %v236 = vunpack.c.l.b16 %v74
    %v237 = vunpack.c.h.b16 %v74
    %v238 = vunpack.c.l.b16 %v75
    %v239 = vunpack.c.h.b16 %v75
    %v240 = vunpack.c.l.b16 %v76
    %v241 = vunpack.c.h.b16 %v76
    %v242 = vunpack.c.l.b16 %v77
    %v243 = vunpack.c.h.b16 %v77
    %v244 = vunpack.c.l.b16 %v78
    %v245 = vunpack.c.h.b16 %v78
    %v246 = vunpack.c.l.b16 %v79
    %v247 = vunpack.c.h.b16 %v79
    %v248 = vunpack.c.l.b16 %v80
    %v249 = vunpack.c.h.b16 %v80
    %v250 = vunpack.c.l.b16 %v81
    %v251 = vunpack.c.h.b16 %v81
    %v252 = vunpack.c.l.b16 %v82
    %v253 = vunpack.c.h.b16 %v82
    %v254 = vunpack.c.l.b16 %v83
    %v255 = vunpack.c.h.b16 %v83
    %v256 = vunpack.c.l.b16 %v84
    %v257 = vunpack.c.h.b16 %v84
    %v258 = vunpack.c.l.b16 %v85
    %v259 = vunpack.c.h.b16 %v85
    %v260 = vunpack.c.l.b16 %v86
    %v261 = vunpack.c.h.b16 %v86
    %v262 = vunpack.c.l.b16 %v87
    %v263 = vunpack.c.h.b16 %v87
    %v264 = vunpack.c.l.b16 %v88
    %v265 = vunpack.c.h.b16 %v88
    %v266 = vunpack.c.l.b16 %v89
    %v267 = vunpack.c.h.b16 %v89
    %v268 = vunpack.c.l.b16 %v90
    %v269 = vunpack.c.h.b16 %v90
    %v270 = vunpack.c.l.b16 %v91
    %v271 = vunpack.c.h.b16 %v91
    %v272 = vunpack.c.l.b16 %v92
    %v273 = vunpack.c.h.b16 %v92
    %v274 = vunpack.c.l.b16 %v93
    %v275 = vunpack.c.h.b16 %v93
    %v276 = vunpack.c.l.b16 %v94
    %v277 = vunpack.c.h.b16 %v94
    %v278 = vunpack.c.l.b16 %v95
    %v279 = vunpack.c.h.b16 %v95
    %v280 = vunpack.c.l.b16 %v96
    %v281 = vunpack.c.h.b16 %v96
    %v282 = vunpack.c.l.b16 %v97
    %v283 = vunpack.c.h.b16 %v97
    %v284 = vunpack.c.l.b16 %v98
    %v285 = vunpack.c.h.b16 %v98
    %v286 = vunpack.c.l.b16 %v99
    %v287 = vunpack.c.h.b16 %v99
    %v288 = vunpack.c.l.b16 %v100
    %v289 = vunpack.c.h.b16 %v100
    %v290 = vunpack.c.l.b16 %v101
    %v291 = vunpack.c.h.b16 %v101
    %v292 = vunpack.c.l.b16 %v102
    %v293 = vunpack.c.h.b16 %v102
    %v294 = vunpack.c.l.b16 %v103
    %v295 = vunpack.c.h.b16 %v103
    %v296 = vunpack.c.l.b16 %v104
    %v297 = vunpack.c.h.b16 %v104
    %v298 = vunpack.c.l.b16 %v105
    %v299 = vunpack.c.h.b16 %v105
    %v300 = vunpack.c.l.b16 %v106
    %v301 = vunpack.c.h.b16 %v106
    %v302 = vunpack.c.l.b16 %v107
    %v303 = vunpack.c.h.b16 %v107
    %v304 = vunpack.c.l.b16 %v108
    %v305 = vunpack.c.h.b16 %v108
    %v306 = vunpack.c.l.b16 %v109
    %v307 = vunpack.c.h.b16 %v109
    %v308 = vunpack.c.l.b16 %v110
    %v309 = vunpack.c.h.b16 %v110
    %v310 = vunpack.c.l.b16 %v111
    %v311 = vunpack.c.h.b16 %v111
    %v312 = vunpack.c.l.b16 %v112
    %v313 = vunpack.c.h.b16 %v112
    %v314 = vunpack.c.l.b16 %v113
    %v315 = vunpack.c.h.b16 %v113
    %v316 = vunpack.c.l.b16 %v114
    %v317 = vunpack.c.h.b16 %v114
    %v318 = vunpack.c.l.b16 %v115
    %v319 = vunpack.c.h.b16 %v115
    %v320 = vunpack.c.l.b16 %v116
    %v321 = vunpack.c.h.b16 %v116
    %v322 = vunpack.c.l.b16 %v117
    %v323 = vunpack.c.h.b16 %v117
    %v324 = vunpack.c.l.b16 %v118
    %v325 = vunpack.c.h.b16 %v118
    %v326 = vunpack.c.l.b16 %v119
    %v327 = vunpack.c.h.b16 %v119
    %v328 = vunpack.c.l.b16 %v120
    %v329 = vunpack.c.h.b16 %v120
    %v330 = vunpack.c.l.b16 %v121
    %v331 = vunpack.c.h.b16 %v121
    %v332 = vunpack.c.l.b16 %v122
    %v333 = vunpack.c.h.b16 %v122
    %v334 = vunpack.c.l.b16 %v123
    %v335 = vunpack.c.h.b16 %v123
    %v336 = vpack.c.b16 %v212, %v208
    %v337 = vpack.c.b16 %v213, %v209
    %v338 = vpack.c.b16 %v214, %v210
    %v339 = vpack.c.b16 %v215, %v211
    %v340 = vpack.c.b16 %v220, %v216
    %v341 = vpack.c.b16 %v221, %v217
    %v342 = vpack.c.b16 %v222, %v218
    %v343 = vpack.c.b16 %v223, %v219
    %v344 = vpack.c.b16 %v228, %v224
    %v345 = vpack.c.b16 %v229, %v225
    %v346 = vpack.c.b16 %v230, %v226
    %v347 = vpack.c.b16 %v231, %v227
    %v348 = vpack.c.b16 %v236, %v232
    %v349 = vpack.c.b16 %v237, %v233
    %v350 = vpack.c.b16 %v238, %v234
    %v351 = vpack.c.b16 %v239, %v235
    %v352 = vpack.c.b16 %v244, %v240
    %v353 = vpack.c.b16 %v245, %v241
    %v354 = vpack.c.b16 %v246, %v242
    %v355 = vpack.c.b16 %v247, %v243
    %v356 = vpack.c.b16 %v252, %v248
    %v357 = vpack.c.b16 %v253, %v249
    %v358 = vpack.c.b16 %v254, %v250
    %v359 = vpack.c.b16 %v255, %v251
    %v360 = vpack.c.b16 %v260, %v256
    %v361 = vpack.c.b16 %v261, %v257
    %v362 = vpack.c.b16 %v262, %v258
    %v363 = vpack.c.b16 %v263, %v259
    %v364 = vpack.c.b16 %v268, %v264
    %v365 = vpack.c.b16 %v269, %v265
    %v366 = vpack.c.b16 %v270, %v266
    %v367 = vpack.c.b16 %v271, %v267
    %v368 = vpack.c.b16 %v276, %v272
    %v369 = vpack.c.b16 %v277, %v273
    %v370 = vpack.c.b16 %v278, %v274
    %v371 = vpack.c.b16 %v279, %v275
    %v372 = vpack.c.b16 %v284, %v280
    %v373 = vpack.c.b16 %v285, %v281
    %v374 = vpack.c.b16 %v286, %v282
    %v375 = vpack.c.b16 %v287, %v283
    %v376 = vpack.c.b16 %v292, %v288
    %v377 = vpack.c.b16 %v293, %v289
    %v378 = vpack.c.b16 %v294, %v290
    %v379 = vpack.c.b16 %v295, %v291
    %v380 = vpack.c.b16 %v300, %v296
    %v381 = vpack.c.b16 %v301, %v297
    %v382 = vpack.c.b16 %v302, %v298
    %v383 = vpack.c.b16 %v303, %v299
    %v384 = vpack.c.b16 %v308, %v304
    %v385 = vpack.c.b16 %v309, %v305
    %v386 = vpack.c.b16 %v310, %v306
    %v387 = vpack.c.b16 %v311, %v307
    %v388 = vpack.c.b16 %v316, %v312
    %v389 = vpack.c.b16 %v317, %v313
    %v390 = vpack.c.b16 %v318, %v314
    %v391 = vpack.c.b16 %v319, %v315
    %v392 = vpack.c.b16 %v324, %v320
    %v393 = vpack.c.b16 %v325, %v321
    %v394 = vpack.c.b16 %v326, %v322
    %v395 = vpack.c.b16 %v327, %v323
    %v396 = vpack.c.b16 %v332, %v328
    %v397 = vpack.c.b16 %v333, %v329
    %v398 = vpack.c.b16 %v334, %v330
    %v399 = vpack.c.b16 %v335, %v331
    %464 = vmatpush.bf16.msra.mxu0 %v364
    %465 = vmatpush.bf16.msra.mxu0 %v360
    %466 = vmatpush.bf16.msra.mxu0 %v356
    %467 = vmatpush.bf16.msra.mxu0 %v352
    %468 = vmatpush.bf16.msra.mxu0 %v348
    %469 = vmatpush.bf16.msra.mxu0 %v344
    %470 = vmatpush.bf16.msra.mxu0 %v340
    %471 = vmatpush.bf16.msra.mxu0 %v336
    %472 = vmatmul.bf16.gmra.mxu0 %v140
    %v473 = vpop.f32.mrf.mxu0
    %v474 = vadd.f32 %v126, %v473
    %v475 = vpop.f32.mrf.mxu0
    %v476 = vadd.f32 %v126, %v475
    %477 = vdwg.mxu0
    %478 = vmatpush.bf16.msra.mxu0 %v396
    %479 = vmatpush.bf16.msra.mxu0 %v392
    %480 = vmatpush.bf16.msra.mxu0 %v388
    %481 = vmatpush.bf16.msra.mxu0 %v384
    %482 = vmatpush.bf16.msra.mxu0 %v380
    %483 = vmatpush.bf16.msra.mxu0 %v376
    %484 = vmatpush.bf16.msra.mxu0 %v372
    %485 = vmatpush.bf16.msra.mxu0 %v368
    %486 = vmatmul.bf16.gmra.mxu0 %v141
    %v487 = vpop.f32.mrf.mxu0
    %v488 = vadd.f32 %v474, %v487
    %v489 = vpop.f32.mrf.mxu0
    %v490 = vadd.f32 %v476, %v489
    %491 = vdwg.mxu0
    %492 = vmatpush.bf16.msra.mxu0 %v365
    %493 = vmatpush.bf16.msra.mxu0 %v361
    %494 = vmatpush.bf16.msra.mxu0 %v357
    %495 = vmatpush.bf16.msra.mxu0 %v353
    %496 = vmatpush.bf16.msra.mxu0 %v349
    %497 = vmatpush.bf16.msra.mxu0 %v345
    %498 = vmatpush.bf16.msra.mxu0 %v341
    %499 = vmatpush.bf16.msra.mxu0 %v337
    %500 = vmatmul.bf16.gmra.mxu0 %v140
    %v501 = vpop.f32.mrf.mxu0
    %v502 = vadd.f32 %v127, %v501
    %v503 = vpop.f32.mrf.mxu0
    %v504 = vadd.f32 %v127, %v503
    %505 = vdwg.mxu0
    %506 = vmatpush.bf16.msra.mxu0 %v397
    %507 = vmatpush.bf16.msra.mxu0 %v393
    %508 = vmatpush.bf16.msra.mxu0 %v389
    %509 = vmatpush.bf16.msra.mxu0 %v385
    %510 = vmatpush.bf16.msra.mxu0 %v381
    %511 = vmatpush.bf16.msra.mxu0 %v377
    %512 = vmatpush.bf16.msra.mxu0 %v373
    %513 = vmatpush.bf16.msra.mxu0 %v369
    %514 = vmatmul.bf16.gmra.mxu0 %v141
    %v515 = vpop.f32.mrf.mxu0
    %v516 = vadd.f32 %v502, %v515
    %v517 = vpop.f32.mrf.mxu0
    %v518 = vadd.f32 %v504, %v517
    %519 = vdwg.mxu0
    %520 = vmatpush.bf16.msra.mxu0 %v366
    %521 = vmatpush.bf16.msra.mxu0 %v362
    %522 = vmatpush.bf16.msra.mxu0 %v358
    %523 = vmatpush.bf16.msra.mxu0 %v354
    %524 = vmatpush.bf16.msra.mxu0 %v350
    %525 = vmatpush.bf16.msra.mxu0 %v346
    %526 = vmatpush.bf16.msra.mxu0 %v342
    %527 = vmatpush.bf16.msra.mxu0 %v338
    %528 = vmatmul.bf16.gmra.mxu0 %v140
    %v529 = vpop.f32.mrf.mxu0
    %v530 = vadd.f32 %v128, %v529
    %v531 = vpop.f32.mrf.mxu0
    %v532 = vadd.f32 %v128, %v531
    %533 = vdwg.mxu0
    %534 = vmatpush.bf16.msra.mxu0 %v398
    %535 = vmatpush.bf16.msra.mxu0 %v394
    %536 = vmatpush.bf16.msra.mxu0 %v390
    %537 = vmatpush.bf16.msra.mxu0 %v386
    %538 = vmatpush.bf16.msra.mxu0 %v382
    %539 = vmatpush.bf16.msra.mxu0 %v378
    %540 = vmatpush.bf16.msra.mxu0 %v374
    %541 = vmatpush.bf16.msra.mxu0 %v370
    %542 = vmatmul.bf16.gmra.mxu0 %v141
    %v543 = vpop.f32.mrf.mxu0
    %v544 = vadd.f32 %v530, %v543
    %v545 = vpop.f32.mrf.mxu0
    %v546 = vadd.f32 %v532, %v545
    %547 = vdwg.mxu0
    %548 = vmatpush.bf16.msra.mxu0 %v367
    %549 = vmatpush.bf16.msra.mxu0 %v363
    %550 = vmatpush.bf16.msra.mxu0 %v359
    %551 = vmatpush.bf16.msra.mxu0 %v355
    %552 = vmatpush.bf16.msra.mxu0 %v351
    %553 = vmatpush.bf16.msra.mxu0 %v347
    %554 = vmatpush.bf16.msra.mxu0 %v343
    %555 = vmatpush.bf16.msra.mxu0 %v339
    %556 = vmatmul.bf16.gmra.mxu0 %v140
    %v557 = vpop.f32.mrf.mxu0
    %v558 = vadd.f32 %v129, %v557
    %v559 = vpop.f32.mrf.mxu0
    %v560 = vadd.f32 %v129, %v559
    %561 = vdwg.mxu0
    %562 = vmatpush.bf16.msra.mxu0 %v399
    %563 = vmatpush.bf16.msra.mxu0 %v395
    %564 = vmatpush.bf16.msra.mxu0 %v391
    %565 = vmatpush.bf16.msra.mxu0 %v387
    %566 = vmatpush.bf16.msra.mxu0 %v383
    %567 = vmatpush.bf16.msra.mxu0 %v379
    %568 = vmatpush.bf16.msra.mxu0 %v375
    %569 = vmatpush.bf16.msra.mxu0 %v371
    %570 = vmatmul.bf16.gmra.mxu0 %v141
    %v571 = vpop.f32.mrf.mxu0
    %v572 = vadd.f32 %v558, %v571
    %v573 = vpop.f32.mrf.mxu0
    %v574 = vadd.f32 %v560, %v573
    %575 = vdwg.mxu0
    %v576 = vmax.f32 %v488, 0.0
    %v577 = vmax.f32 %v516, 0.0
    %v578 = vmax.f32 %v544, 0.0
    %v579 = vmax.f32 %v572, 0.0
    %v580 = vmax.f32 %v490, 0.0
    %v581 = vmax.f32 %v518, 0.0
    %v582 = vmax.f32 %v546, 0.0
    %v583 = vmax.f32 %v574, 0.0
    %v584 = vpack.c.bf16 %v580, %v576
    %v585 = vpack.c.bf16 %v581, %v577
    %v586 = vpack.c.bf16 %v582, %v578
    %v587 = vpack.c.bf16 %v583, %v579
    %v588 = vld [vmem:[#allocation4] sm:$0xff]
    %v589 = vld [vmem:[#allocation4 + $0x8] sm:$0xff]
    %v590 = vld [vmem:[#allocation4 + $0x10] sm:$0xff]
    %v591 = vld [vmem:[#allocation4 + $0x18] sm:$0xff]
    %v592 = vld [vmem:[#allocation4 + $0x20] sm:$0xff]
    %v593 = vld [vmem:[#allocation4 + $0x28] sm:$0xff]
    %v594 = vld [vmem:[#allocation4 + $0x30] sm:$0xff]
    %v595 = vld [vmem:[#allocation4 + $0x38] sm:$0xff]
    %v596 = vld [vmem:[#allocation4 + $0x40] sm:$0xff]
    %v597 = vld [vmem:[#allocation4 + $0x48] sm:$0xff]
    %v598 = vld [vmem:[#allocation4 + $0x50] sm:$0xff]
    %v599 = vld [vmem:[#allocation4 + $0x58] sm:$0xff]
    %v600 = vld [vmem:[#allocation4 + $0x60] sm:$0xff]
    %v601 = vld [vmem:[#allocation4 + $0x68] sm:$0xff]
    %v602 = vld [vmem:[#allocation4 + $0x70] sm:$0xff]
    %v603 = vld [vmem:[#allocation4 + $0x78] sm:$0xff]
    %v604 = vld [vmem:[#allocation4 + $0x80] sm:$0xff]
    %v605 = vld [vmem:[#allocation4 + $0x88] sm:$0xff]
    %v606 = vld [vmem:[#allocation4 + $0x90] sm:$0xff]
    %v607 = vld [vmem:[#allocation4 + $0x98] sm:$0xff]
    %v608 = vld [vmem:[#allocation4 + $0xa0] sm:$0xff]
    %v609 = vld [vmem:[#allocation4 + $0xa8] sm:$0xff]
    %v610 = vld [vmem:[#allocation4 + $0xb0] sm:$0xff]
    %v611 = vld [vmem:[#allocation4 + $0xb8] sm:$0xff]
    %v612 = vld [vmem:[#allocation4 + $0xc0] sm:$0xff]
    %v613 = vld [vmem:[#allocation4 + $0xc8] sm:$0xff]
    %v614 = vld [vmem:[#allocation4 + $0xd0] sm:$0xff]
    %v615 = vld [vmem:[#allocation4 + $0xd8] sm:$0xff]
    %v616 = vld [vmem:[#allocation4 + $0xe0] sm:$0xff]
    %v617 = vld [vmem:[#allocation4 + $0xe8] sm:$0xff]
    %v618 = vld [vmem:[#allocation4 + $0xf0] sm:$0xff]
    %v619 = vld [vmem:[#allocation4 + $0xf8] sm:$0xff]
    %v620 = vld [vmem:[#allocation4 + $0x100] sm:$0xff]
    %v621 = vld [vmem:[#allocation4 + $0x108] sm:$0xff]
    %v622 = vld [vmem:[#allocation4 + $0x110] sm:$0xff]
    %v623 = vld [vmem:[#allocation4 + $0x118] sm:$0xff]
    %v624 = vld [vmem:[#allocation4 + $0x120] sm:$0xff]
    %v625 = vld [vmem:[#allocation4 + $0x128] sm:$0xff]
    %v626 = vld [vmem:[#allocation4 + $0x130] sm:$0xff]
    %v627 = vld [vmem:[#allocation4 + $0x138] sm:$0xff]
    %v628 = vld [vmem:[#allocation4 + $0x140] sm:$0xff]
    %v629 = vld [vmem:[#allocation4 + $0x148] sm:$0xff]
    %v630 = vld [vmem:[#allocation4 + $0x150] sm:$0xff]
    %v631 = vld [vmem:[#allocation4 + $0x158] sm:$0xff]
    %v632 = vld [vmem:[#allocation4 + $0x160] sm:$0xff]
    %v633 = vld [vmem:[#allocation4 + $0x168] sm:$0xff]
    %v634 = vld [vmem:[#allocation4 + $0x170] sm:$0xff]
    %v635 = vld [vmem:[#allocation4 + $0x178] sm:$0xff]
    %v636 = vld [vmem:[#allocation4 + $0x180] sm:$0xff]
    %v637 = vld [vmem:[#allocation4 + $0x188] sm:$0xff]
    %v638 = vld [vmem:[#allocation4 + $0x190] sm:$0xff]
    %v639 = vld [vmem:[#allocation4 + $0x198] sm:$0xff]
    %v640 = vld [vmem:[#allocation4 + $0x1a0] sm:$0xff]
    %v641 = vld [vmem:[#allocation4 + $0x1a8] sm:$0xff]
    %v642 = vld [vmem:[#allocation4 + $0x1b0] sm:$0xff]
    %v643 = vld [vmem:[#allocation4 + $0x1b8] sm:$0xff]
    %v644 = vld [vmem:[#allocation4 + $0x1c0] sm:$0xff]
    %v645 = vld [vmem:[#allocation4 + $0x1c8] sm:$0xff]
    %v646 = vld [vmem:[#allocation4 + $0x1d0] sm:$0xff]
    %v647 = vld [vmem:[#allocation4 + $0x1d8] sm:$0xff]
    %v648 = vld [vmem:[#allocation4 + $0x1e0] sm:$0xff]
    %v649 = vld [vmem:[#allocation4 + $0x1e8] sm:$0xff]
    %v650 = vld [vmem:[#allocation4 + $0x1f0] sm:$0xff]
    %v651 = vld [vmem:[#allocation4 + $0x1f8] sm:$0xff]
    %v652 = vld [vmem:[%s4] sm:$0x3]
    %v654 = vperm.slane %v652, 0
    %v655 = vperm.slane %v652, 1
    %v722 = vunpack.c.l.b16 %v588
    %v723 = vunpack.c.h.b16 %v588
    %v724 = vunpack.c.l.b16 %v589
    %v725 = vunpack.c.h.b16 %v589
    %v726 = vunpack.c.l.b16 %v590
    %v727 = vunpack.c.h.b16 %v590
    %v728 = vunpack.c.l.b16 %v591
    %v729 = vunpack.c.h.b16 %v591
    %v730 = vunpack.c.l.b16 %v592
    %v731 = vunpack.c.h.b16 %v592
    %v732 = vunpack.c.l.b16 %v593
    %v733 = vunpack.c.h.b16 %v593
    %v734 = vunpack.c.l.b16 %v594
    %v735 = vunpack.c.h.b16 %v594
    %v736 = vunpack.c.l.b16 %v595
    %v737 = vunpack.c.h.b16 %v595
    %v738 = vunpack.c.l.b16 %v596
    %v739 = vunpack.c.h.b16 %v596
    %v740 = vunpack.c.l.b16 %v597
    %v741 = vunpack.c.h.b16 %v597
    %v742 = vunpack.c.l.b16 %v598
    %v743 = vunpack.c.h.b16 %v598
    %v744 = vunpack.c.l.b16 %v599
    %v745 = vunpack.c.h.b16 %v599
    %v746 = vunpack.c.l.b16 %v600
    %v747 = vunpack.c.h.b16 %v600
    %v748 = vunpack.c.l.b16 %v601
    %v749 = vunpack.c.h.b16 %v601
    %v750 = vunpack.c.l.b16 %v602
    %v751 = vunpack.c.h.b16 %v602
    %v752 = vunpack.c.l.b16 %v603
    %v753 = vunpack.c.h.b16 %v603
    %v754 = vunpack.c.l.b16 %v604
    %v755 = vunpack.c.h.b16 %v604
    %v756 = vunpack.c.l.b16 %v605
    %v757 = vunpack.c.h.b16 %v605
    %v758 = vunpack.c.l.b16 %v606
    %v759 = vunpack.c.h.b16 %v606
    %v760 = vunpack.c.l.b16 %v607
    %v761 = vunpack.c.h.b16 %v607
    %v762 = vunpack.c.l.b16 %v608
    %v763 = vunpack.c.h.b16 %v608
    %v764 = vunpack.c.l.b16 %v609
    %v765 = vunpack.c.h.b16 %v609
    %v766 = vunpack.c.l.b16 %v610
    %v767 = vunpack.c.h.b16 %v610
    %v768 = vunpack.c.l.b16 %v611
    %v769 = vunpack.c.h.b16 %v611
    %v770 = vunpack.c.l.b16 %v612
    %v771 = vunpack.c.h.b16 %v612
    %v772 = vunpack.c.l.b16 %v613
    %v773 = vunpack.c.h.b16 %v613
    %v774 = vunpack.c.l.b16 %v614
    %v775 = vunpack.c.h.b16 %v614
    %v776 = vunpack.c.l.b16 %v615
    %v777 = vunpack.c.h.b16 %v615
    %v778 = vunpack.c.l.b16 %v616
    %v779 = vunpack.c.h.b16 %v616
    %v780 = vunpack.c.l.b16 %v617
    %v781 = vunpack.c.h.b16 %v617
    %v782 = vunpack.c.l.b16 %v618
    %v783 = vunpack.c.h.b16 %v618
    %v784 = vunpack.c.l.b16 %v619
    %v785 = vunpack.c.h.b16 %v619
    %v786 = vunpack.c.l.b16 %v620
    %v787 = vunpack.c.h.b16 %v620
    %v788 = vunpack.c.l.b16 %v621
    %v789 = vunpack.c.h.b16 %v621
    %v790 = vunpack.c.l.b16 %v622
    %v791 = vunpack.c.h.b16 %v622
    %v792 = vunpack.c.l.b16 %v623
    %v793 = vunpack.c.h.b16 %v623
    %v794 = vunpack.c.l.b16 %v624
    %v795 = vunpack.c.h.b16 %v624
    %v796 = vunpack.c.l.b16 %v625
    %v797 = vunpack.c.h.b16 %v625
    %v798 = vunpack.c.l.b16 %v626
    %v799 = vunpack.c.h.b16 %v626
    %v800 = vunpack.c.l.b16 %v627
    %v801 = vunpack.c.h.b16 %v627
    %v802 = vunpack.c.l.b16 %v628
    %v803 = vunpack.c.h.b16 %v628
    %v804 = vunpack.c.l.b16 %v629
    %v805 = vunpack.c.h.b16 %v629
    %v806 = vunpack.c.l.b16 %v630
    %v807 = vunpack.c.h.b16 %v630
    %v808 = vunpack.c.l.b16 %v631
    %v809 = vunpack.c.h.b16 %v631
    %v810 = vunpack.c.l.b16 %v632
    %v811 = vunpack.c.h.b16 %v632
    %v812 = vunpack.c.l.b16 %v633
    %v813 = vunpack.c.h.b16 %v633
    %v814 = vunpack.c.l.b16 %v634
    %v815 = vunpack.c.h.b16 %v634
    %v816 = vunpack.c.l.b16 %v635
    %v817 = vunpack.c.h.b16 %v635
    %v818 = vunpack.c.l.b16 %v636
    %v819 = vunpack.c.h.b16 %v636
    %v820 = vunpack.c.l.b16 %v637
    %v821 = vunpack.c.h.b16 %v637
    %v822 = vunpack.c.l.b16 %v638
    %v823 = vunpack.c.h.b16 %v638
    %v824 = vunpack.c.l.b16 %v639
    %v825 = vunpack.c.h.b16 %v639
    %v826 = vunpack.c.l.b16 %v640
    %v827 = vunpack.c.h.b16 %v640
    %v828 = vunpack.c.l.b16 %v641
    %v829 = vunpack.c.h.b16 %v641
    %v830 = vunpack.c.l.b16 %v642
    %v831 = vunpack.c.h.b16 %v642
    %v832 = vunpack.c.l.b16 %v643
    %v833 = vunpack.c.h.b16 %v643
    %v834 = vunpack.c.l.b16 %v644
    %v835 = vunpack.c.h.b16 %v644
    %v836 = vunpack.c.l.b16 %v645
    %v837 = vunpack.c.h.b16 %v645
    %v838 = vunpack.c.l.b16 %v646
    %v839 = vunpack.c.h.b16 %v646
    %v840 = vunpack.c.l.b16 %v647
    %v841 = vunpack.c.h.b16 %v647
    %v842 = vunpack.c.l.b16 %v648
    %v843 = vunpack.c.h.b16 %v648
    %v844 = vunpack.c.l.b16 %v649
    %v845 = vunpack.c.h.b16 %v649
    %v846 = vunpack.c.l.b16 %v650
    %v847 = vunpack.c.h.b16 %v650
    %v848 = vunpack.c.l.b16 %v651
    %v849 = vunpack.c.h.b16 %v651
    %v850 = vpack.c.b16 %v724, %v722
    %v851 = vpack.c.b16 %v725, %v723
    %v852 = vpack.c.b16 %v728, %v726
    %v853 = vpack.c.b16 %v729, %v727
    %v854 = vpack.c.b16 %v732, %v730
    %v855 = vpack.c.b16 %v733, %v731
    %v856 = vpack.c.b16 %v736, %v734
    %v857 = vpack.c.b16 %v737, %v735
    %v858 = vpack.c.b16 %v740, %v738
    %v859 = vpack.c.b16 %v741, %v739
    %v860 = vpack.c.b16 %v744, %v742
    %v861 = vpack.c.b16 %v745, %v743
    %v862 = vpack.c.b16 %v748, %v746
    %v863 = vpack.c.b16 %v749, %v747
    %v864 = vpack.c.b16 %v752, %v750
    %v865 = vpack.c.b16 %v753, %v751
    %v866 = vpack.c.b16 %v756, %v754
    %v867 = vpack.c.b16 %v757, %v755
    %v868 = vpack.c.b16 %v760, %v758
    %v869 = vpack.c.b16 %v761, %v759
    %v870 = vpack.c.b16 %v764, %v762
    %v871 = vpack.c.b16 %v765, %v763
    %v872 = vpack.c.b16 %v768, %v766
    %v873 = vpack.c.b16 %v769, %v767
    %v874 = vpack.c.b16 %v772, %v770
    %v875 = vpack.c.b16 %v773, %v771
    %v876 = vpack.c.b16 %v776, %v774
    %v877 = vpack.c.b16 %v777, %v775
    %v878 = vpack.c.b16 %v780, %v778
    %v879 = vpack.c.b16 %v781, %v779
    %v880 = vpack.c.b16 %v784, %v782
    %v881 = vpack.c.b16 %v785, %v783
    %v882 = vpack.c.b16 %v788, %v786
    %v883 = vpack.c.b16 %v789, %v787
    %v884 = vpack.c.b16 %v792, %v790
    %v885 = vpack.c.b16 %v793, %v791
    %v886 = vpack.c.b16 %v796, %v794
    %v887 = vpack.c.b16 %v797, %v795
    %v888 = vpack.c.b16 %v800, %v798
    %v889 = vpack.c.b16 %v801, %v799
    %v890 = vpack.c.b16 %v804, %v802
    %v891 = vpack.c.b16 %v805, %v803
    %v892 = vpack.c.b16 %v808, %v806
    %v893 = vpack.c.b16 %v809, %v807
    %v894 = vpack.c.b16 %v812, %v810
    %v895 = vpack.c.b16 %v813, %v811
    %v896 = vpack.c.b16 %v816, %v814
    %v897 = vpack.c.b16 %v817, %v815
    %v898 = vpack.c.b16 %v820, %v818
    %v899 = vpack.c.b16 %v821, %v819
    %v900 = vpack.c.b16 %v824, %v822
    %v901 = vpack.c.b16 %v825, %v823
    %v902 = vpack.c.b16 %v828, %v826
    %v903 = vpack.c.b16 %v829, %v827
    %v904 = vpack.c.b16 %v832, %v830
    %v905 = vpack.c.b16 %v833, %v831
    %v906 = vpack.c.b16 %v836, %v834
    %v907 = vpack.c.b16 %v837, %v835
    %v908 = vpack.c.b16 %v840, %v838
    %v909 = vpack.c.b16 %v841, %v839
    %v910 = vpack.c.b16 %v844, %v842
    %v911 = vpack.c.b16 %v845, %v843
    %v912 = vpack.c.b16 %v848, %v846
    %v913 = vpack.c.b16 %v849, %v847
    %978 = vmatpush.bf16.msra.mxu0 %v864
    %979 = vmatpush.bf16.msra.mxu0 %v862
    %980 = vmatpush.bf16.msra.mxu0 %v860
    %981 = vmatpush.bf16.msra.mxu0 %v858
    %982 = vmatpush.bf16.msra.mxu0 %v856
    %983 = vmatpush.bf16.msra.mxu0 %v854
    %984 = vmatpush.bf16.msra.mxu0 %v852
    %985 = vmatpush.bf16.msra.mxu0 %v850
    %986 = vmatmul.bf16.gmra.mxu0 %v584
    %v987 = vpop.f32.mrf.mxu0
    %v988 = vadd.f32 %v654, %v987
    %v989 = vpop.f32.mrf.mxu0
    %v990 = vadd.f32 %v654, %v989
    %991 = vdwg.mxu0
    %992 = vmatpush.bf16.msra.mxu0 %v880
    %993 = vmatpush.bf16.msra.mxu0 %v878
    %994 = vmatpush.bf16.msra.mxu0 %v876
    %995 = vmatpush.bf16.msra.mxu0 %v874
    %996 = vmatpush.bf16.msra.mxu0 %v872
    %997 = vmatpush.bf16.msra.mxu0 %v870
    %998 = vmatpush.bf16.msra.mxu0 %v868
    %999 = vmatpush.bf16.msra.mxu0 %v866
    %1000 = vmatmul.bf16.gmra.mxu0 %v585
    %v1001 = vpop.f32.mrf.mxu0
    %v1002 = vadd.f32 %v988, %v1001
    %v1003 = vpop.f32.mrf.mxu0
    %v1004 = vadd.f32 %v990, %v1003
    %1005 = vdwg.mxu0
    %1006 = vmatpush.bf16.msra.mxu0 %v896
    %1007 = vmatpush.bf16.msra.mxu0 %v894
    %1008 = vmatpush.bf16.msra.mxu0 %v892
    %1009 = vmatpush.bf16.msra.mxu0 %v890
    %1010 = vmatpush.bf16.msra.mxu0 %v888
    %1011 = vmatpush.bf16.msra.mxu0 %v886
    %1012 = vmatpush.bf16.msra.mxu0 %v884
    %1013 = vmatpush.bf16.msra.mxu0 %v882
    %1014 = vmatmul.bf16.gmra.mxu0 %v586
    %v1015 = vpop.f32.mrf.mxu0
    %v1016 = vadd.f32 %v1002, %v1015
    %v1017 = vpop.f32.mrf.mxu0
    %v1018 = vadd.f32 %v1004, %v1017
    %1019 = vdwg.mxu0
    %1020 = vmatpush.bf16.msra.mxu0 %v912
    %1021 = vmatpush.bf16.msra.mxu0 %v910
    %1022 = vmatpush.bf16.msra.mxu0 %v908
    %1023 = vmatpush.bf16.msra.mxu0 %v906
    %1024 = vmatpush.bf16.msra.mxu0 %v904
    %1025 = vmatpush.bf16.msra.mxu0 %v902
    %1026 = vmatpush.bf16.msra.mxu0 %v900
    %1027 = vmatpush.bf16.msra.mxu0 %v898
    %1028 = vmatmul.bf16.gmra.mxu0 %v587
    %v1029 = vpop.f32.mrf.mxu0
    %v1030 = vadd.f32 %v1016, %v1029
    %v1031 = vpop.f32.mrf.mxu0
    %v1032 = vadd.f32 %v1018, %v1031
    %1033 = vdwg.mxu0
    %1034 = vmatpush.bf16.msra.mxu0 %v865
    %1035 = vmatpush.bf16.msra.mxu0 %v863
    %1036 = vmatpush.bf16.msra.mxu0 %v861
    %1037 = vmatpush.bf16.msra.mxu0 %v859
    %1038 = vmatpush.bf16.msra.mxu0 %v857
    %1039 = vmatpush.bf16.msra.mxu0 %v855
    %1040 = vmatpush.bf16.msra.mxu0 %v853
    %1041 = vmatpush.bf16.msra.mxu0 %v851
    %1042 = vmatmul.bf16.gmra.mxu0 %v584
    %v1043 = vpop.f32.mrf.mxu0
    %v1044 = vadd.f32 %v655, %v1043
    %v1045 = vpop.f32.mrf.mxu0
    %v1046 = vadd.f32 %v655, %v1045
    %1047 = vdwg.mxu0
    %1048 = vmatpush.bf16.msra.mxu0 %v881
    %1049 = vmatpush.bf16.msra.mxu0 %v879
    %1050 = vmatpush.bf16.msra.mxu0 %v877
    %1051 = vmatpush.bf16.msra.mxu0 %v875
    %1052 = vmatpush.bf16.msra.mxu0 %v873
    %1053 = vmatpush.bf16.msra.mxu0 %v871
    %1054 = vmatpush.bf16.msra.mxu0 %v869
    %1055 = vmatpush.bf16.msra.mxu0 %v867
    %1056 = vmatmul.bf16.gmra.mxu0 %v585
    %v1057 = vpop.f32.mrf.mxu0
    %v1058 = vadd.f32 %v1044, %v1057
    %v1059 = vpop.f32.mrf.mxu0
    %v1060 = vadd.f32 %v1046, %v1059
    %1061 = vdwg.mxu0
    %1062 = vmatpush.bf16.msra.mxu0 %v897
    %1063 = vmatpush.bf16.msra.mxu0 %v895
    %1064 = vmatpush.bf16.msra.mxu0 %v893
    %1065 = vmatpush.bf16.msra.mxu0 %v891
    %1066 = vmatpush.bf16.msra.mxu0 %v889
    %1067 = vmatpush.bf16.msra.mxu0 %v887
    %1068 = vmatpush.bf16.msra.mxu0 %v885
    %1069 = vmatpush.bf16.msra.mxu0 %v883
    %1070 = vmatmul.bf16.gmra.mxu0 %v586
    %v1071 = vpop.f32.mrf.mxu0
    %v1072 = vadd.f32 %v1058, %v1071
    %v1073 = vpop.f32.mrf.mxu0
    %v1074 = vadd.f32 %v1060, %v1073
    %1075 = vdwg.mxu0
    %1076 = vmatpush.bf16.msra.mxu0 %v913
    %1077 = vmatpush.bf16.msra.mxu0 %v911
    %1078 = vmatpush.bf16.msra.mxu0 %v909
    %1079 = vmatpush.bf16.msra.mxu0 %v907
    %1080 = vmatpush.bf16.msra.mxu0 %v905
    %1081 = vmatpush.bf16.msra.mxu0 %v903
    %1082 = vmatpush.bf16.msra.mxu0 %v901
    %1083 = vmatpush.bf16.msra.mxu0 %v899
    %1084 = vmatmul.bf16.gmra.mxu0 %v587
    %v1085 = vpop.f32.mrf.mxu0
    %v1086 = vadd.f32 %v1072, %v1085
    %v1087 = vpop.f32.mrf.mxu0
    %v1088 = vadd.f32 %v1074, %v1087
    %1089 = vdwg.mxu0
    %v1090 = vunpack.c.l.bf16 %v58
    %v1091 = vunpack.c.h.bf16 %v58
    %v1092 = vunpack.c.l.bf16 %v59
    %v1093 = vunpack.c.h.bf16 %v59
    %v1094 = vadd.f32 %v1030, %v1090
    %v1095 = vadd.f32 %v1086, %v1091
    %v1096 = vadd.f32 %v1032, %v1092
    %v1097 = vadd.f32 %v1088, %v1093
    %v1098 = vld [vmem:[%s5] sm:$0x3]
    %v1099 = vld [vmem:[%s6] sm:$0x3]
    %v1100 = vadd.f32 %v1094, %v1095
    %1101 = vadd.xlane.f32.xlu0 %v1100
    %v1102 = vpop.xlane.xlu0 %1101
    %v1103 = vadd.f32 %v1096, %v1097
    %1104 = vadd.xlane.f32.xlu0 %v1103
    %v1105 = vpop.xlane.xlu0 %1104
    %v1106 = vrcp.pop 256.0
    %v1107 = vmul.f32 256.0, %v1106
    %v1108 = vsub.f32 1.0, %v1107
    %v1109 = vmul.f32 %v1106, %v1108
    %v1110 = vadd.f32 %v1106, %v1109
    %vm1111 = vweird.f32 %v1106
    %v1112 = vsel %vm1111, %v1106, %v1110
    %v1113 = vmul.f32 %v1102, %v1112
    %v1114 = vmul.f32 %v1105, %v1112
    %v1115 = vsub.f32 %v1094, %v1113
    %v1116 = vsub.f32 %v1095, %v1113
    %v1117 = vsub.f32 %v1096, %v1114
    %v1118 = vsub.f32 %v1097, %v1114
    %v1119 = vmul.f32 %v1115, %v1115
    %v1120 = vmul.f32 %v1116, %v1116
    %v1121 = vmul.f32 %v1117, %v1117
    %v1122 = vmul.f32 %v1118, %v1118
    %v1123 = vadd.f32 %v1119, %v1120
    %1124 = vadd.xlane.f32.xlu0 %v1123
    %v1125 = vpop.xlane.xlu0 %1124
    %v1126 = vadd.f32 %v1121, %v1122
    %1127 = vadd.xlane.f32.xlu0 %v1126
    %v1128 = vpop.xlane.xlu0 %1127
    %v1129 = vmul.f32 %v1125, %v1112
    %v1130 = vmul.f32 %v1128, %v1112
    %v1131 = vadd.f32 %v1129, 1e-05
    %v1132 = vadd.f32 %v1130, 1e-05
    %v1133 = vrsqrt.pop %v1131
    %v1134 = vmul.f32 %v1133, %v1131
    %v1135 = vmul.f32 %v1134, %v1133
    %v1136 = vmul.f32 0.5, %v1135
    %v1137 = vsub.f32 1.5, %v1136
    %v1138 = vmul.f32 %v1133, %v1137
    %vm1139 = vweird.f32 %v1131
    %vm1140 = vweird.f32 %v1133
    %vm1141 = vmor %vm1139, %vm1140
    %v1142 = vsel %vm1141, %v1133, %v1138
    %v1143 = vrsqrt.pop %v1132
    %v1144 = vmul.f32 %v1143, %v1132
    %v1145 = vmul.f32 %v1144, %v1143
    %v1146 = vmul.f32 0.5, %v1145
    %v1147 = vsub.f32 1.5, %v1146
    %v1148 = vmul.f32 %v1143, %v1147
    %vm1149 = vweird.f32 %v1132
    %vm1150 = vweird.f32 %v1143
    %vm1151 = vmor %vm1149, %vm1150
    %v1152 = vsel %vm1151, %v1143, %v1148
    %v1153 = vmul.f32 %v1115, %v1142
    %v1154 = vmul.f32 %v1116, %v1142
    %v1155 = vmul.f32 %v1117, %v1152
    %v1156 = vmul.f32 %v1118, %v1152
    %v1158 = vperm.slane %v1098, 0
    %v1159 = vperm.slane %v1098, 1
    %v1162 = vmul.f32 %v1153, %v1158
    %v1163 = vmul.f32 %v1154, %v1159
    %v1164 = vmul.f32 %v1155, %v1158
    %v1165 = vmul.f32 %v1156, %v1159
    %v1167 = vperm.slane %v1099, 0
    %v1168 = vperm.slane %v1099, 1
    %v1171 = vadd.f32 %v1162, %v1167
    %v1172 = vadd.f32 %v1163, %v1168
    %v1173 = vadd.f32 %v1164, %v1167
    %v1174 = vadd.f32 %v1165, %v1168
    %v1175 = vpack.c.bf16 %v1172, %v1171
    %v1176 = vpack.c.bf16 %v1174, %v1173
    %1177 = vst [vmem:[%s7] sm:$0xff] %v1175
    %1178 = vst [vmem:[%s7 + $0x8] sm:$0xff] %v1176
    // Predicated region
    $region38: #{poetry_model_forward.12} parent=1 // pred_check
      _
    $region39: #{poetry_model_forward.12} parent=1 // pred_check_branch
      %1180 = sbr.rel (0) target = $region41
    $region40: #{poetry_model_forward.12} parent=1 // pred_region
      _
    $region41: #{poetry_model_forward.12} parent=1 // pred_fallthru
      _
    // Predicated region
    $region42: #{poetry_model_forward.12} parent=1 // pred_check
      _
    $region43: #{poetry_model_forward.12} parent=1 // pred_check_branch
      %1182 = sbr.rel (0) target = $region45
    $region44: #{poetry_model_forward.12} parent=1 // pred_region
      _
    $region45: #{poetry_model_forward.12} parent=1 // pred_fallthru
      _
    %1183 = vsyncpa [#allocation3], 1
    %1184 = vsyncpa [#allocation5], 1

// kernel: poetry_model_forward.17
$region0: #{poetry_model_forward.17}
  #allocation0 [shape = 'u32[]', space=smem, size = 0x4, offset = 0x4, fixed_abs, tag = 'smem constant byte address 0x4 - core index']
  #allocation1 [shape = 'u32[72,128]{1,0:T(1,128)}', space=vmem, size = 0x9000, scoped, tag = 'internal scratch']
  %s0 = inlined_call_operand.vmem [shape: bf16[16,256], index: 0, kind: input, shape index: {}]
  %s1 = inlined_call_operand.vmem [shape: bf16[256,128], index: 1, kind: input, shape index: {}]
  %s2 = inlined_call_operand.vmem [shape: f32[1,128], index: 2, kind: input, shape index: {}]
  %s3 = inlined_call_operand.vmem [shape: f32[16,128], index: 3, kind: output, shape index: {}]
  %s4 = sld [smem:[#allocation0]]
  $region22: #{poetry_model_forward.17} parent=0
    _
  %s6 = ssub.s32 1, %s4
  %s7 = scalar_select 0, %s6, %s4
  // Predicated region
  $region2: #{poetry_model_forward.17} parent=0 // pred_check
    _
  $region3: #{poetry_model_forward.17} parent=0 // pred_check_branch
    %9 = sbr.rel (0) target = $region5
  $region4: #{poetry_model_forward.17} parent=0 // pred_region
    _
  $region5: #{poetry_model_forward.17} parent=0 // pred_fallthru
    _
  // Predicated region
  $region6: #{poetry_model_forward.17} parent=0 // pred_check
    _
  $region7: #{poetry_model_forward.17} parent=0 // pred_check_branch
    %11 = sbr.rel (0) target = $region9
  $region8: #{poetry_model_forward.17} parent=0 // pred_region
    _
  $region9: #{poetry_model_forward.17} parent=0 // pred_fallthru
    _
  // Predicated region
  $region10: #{poetry_model_forward.17} parent=0 // pred_check
    _
  $region11: #{poetry_model_forward.17} parent=0 // pred_check_branch
    %13 = sbr.rel (0) target = $region13
  $region12: #{poetry_model_forward.17} parent=0 // pred_region
    _
  $region13: #{poetry_model_forward.17} parent=0 // pred_fallthru
    _
  %v14 = vld [vmem:[%s0] sm:$0xff]
  %v15 = vld [vmem:[%s0 + $0x8] sm:$0xff]
  %v16 = vld [vmem:[%s1] sm:$0xf]
  %v17 = vld [vmem:[%s1 + $0x4] sm:$0xf]
  %v18 = vld [vmem:[%s1 + $0x8] sm:$0xf]
  %v19 = vld [vmem:[%s1 + $0xc] sm:$0xf]
  %v20 = vld [vmem:[%s1 + $0x10] sm:$0xf]
  %v21 = vld [vmem:[%s1 + $0x14] sm:$0xf]
  %v22 = vld [vmem:[%s1 + $0x18] sm:$0xf]
  %v23 = vld [vmem:[%s1 + $0x1c] sm:$0xf]
  %v24 = vld [vmem:[%s1 + $0x20] sm:$0xf]
  %v25 = vld [vmem:[%s1 + $0x24] sm:$0xf]
  %v26 = vld [vmem:[%s1 + $0x28] sm:$0xf]
  %v27 = vld [vmem:[%s1 + $0x2c] sm:$0xf]
  %v28 = vld [vmem:[%s1 + $0x30] sm:$0xf]
  %v29 = vld [vmem:[%s1 + $0x34] sm:$0xf]
  %v30 = vld [vmem:[%s1 + $0x38] sm:$0xf]
  %v31 = vld [vmem:[%s1 + $0x3c] sm:$0xf]
  %v32 = vld [vmem:[%s1 + $0x40] sm:$0xf]
  %v33 = vld [vmem:[%s1 + $0x44] sm:$0xf]
  %v34 = vld [vmem:[%s1 + $0x48] sm:$0xf]
  %v35 = vld [vmem:[%s1 + $0x4c] sm:$0xf]
  %v36 = vld [vmem:[%s1 + $0x50] sm:$0xf]
  %v37 = vld [vmem:[%s1 + $0x54] sm:$0xf]
  %v38 = vld [vmem:[%s1 + $0x58] sm:$0xf]
  %v39 = vld [vmem:[%s1 + $0x5c] sm:$0xf]
  %v40 = vld [vmem:[%s1 + $0x60] sm:$0xf]
  %v41 = vld [vmem:[%s1 + $0x64] sm:$0xf]
  %v42 = vld [vmem:[%s1 + $0x68] sm:$0xf]
  %v43 = vld [vmem:[%s1 + $0x6c] sm:$0xf]
  %v44 = vld [vmem:[%s1 + $0x70] sm:$0xf]
  %v45 = vld [vmem:[%s1 + $0x74] sm:$0xf]
  %v46 = vld [vmem:[%s1 + $0x78] sm:$0xf]
  %v47 = vld [vmem:[%s1 + $0x7c] sm:$0xf]
  %v48 = vld [vmem:[%s2] sm:$0x1]
  %v50 = vperm.slane %v48, 0
  %v54 = vunpack.c.l.b16 %v14
  %v55 = vunpack.c.h.b16 %v14
  %v56 = vunpack.c.l.b16 %v15
  %v57 = vunpack.c.h.b16 %v15
  %v58 = vpack.c.b16 %v56, %v54
  %v59 = vpack.c.b16 %v57, %v55
  %v94 = vunpack.c.l.b16 %v16
  %v95 = vunpack.c.l.b16 %v17
  %v96 = vunpack.c.l.b16 %v18
  %v97 = vunpack.c.l.b16 %v19
  %v98 = vunpack.c.l.b16 %v20
  %v99 = vunpack.c.l.b16 %v21
  %v100 = vunpack.c.l.b16 %v22
  %v101 = vunpack.c.l.b16 %v23
  %v102 = vunpack.c.l.b16 %v24
  %v103 = vunpack.c.l.b16 %v25
  %v104 = vunpack.c.l.b16 %v26
  %v105 = vunpack.c.l.b16 %v27
  %v106 = vunpack.c.l.b16 %v28
  %v107 = vunpack.c.l.b16 %v29
  %v108 = vunpack.c.l.b16 %v30
  %v109 = vunpack.c.l.b16 %v31
  %v110 = vunpack.c.l.b16 %v32
  %v111 = vunpack.c.l.b16 %v33
  %v112 = vunpack.c.l.b16 %v34
  %v113 = vunpack.c.l.b16 %v35
  %v114 = vunpack.c.l.b16 %v36
  %v115 = vunpack.c.l.b16 %v37
  %v116 = vunpack.c.l.b16 %v38
  %v117 = vunpack.c.l.b16 %v39
  %v118 = vunpack.c.l.b16 %v40
  %v119 = vunpack.c.l.b16 %v41
  %v120 = vunpack.c.l.b16 %v42
  %v121 = vunpack.c.l.b16 %v43
  %v122 = vunpack.c.l.b16 %v44
  %v123 = vunpack.c.l.b16 %v45
  %v124 = vunpack.c.l.b16 %v46
  %v125 = vunpack.c.l.b16 %v47
  %v126 = vpack.c.b16 %v95, %v94
  %v127 = vpack.c.b16 %v97, %v96
  %v128 = vpack.c.b16 %v99, %v98
  %v129 = vpack.c.b16 %v101, %v100
  %v130 = vpack.c.b16 %v103, %v102
  %v131 = vpack.c.b16 %v105, %v104
  %v132 = vpack.c.b16 %v107, %v106
  %v133 = vpack.c.b16 %v109, %v108
  %v134 = vpack.c.b16 %v111, %v110
  %v135 = vpack.c.b16 %v113, %v112
  %v136 = vpack.c.b16 %v115, %v114
  %v137 = vpack.c.b16 %v117, %v116
  %v138 = vpack.c.b16 %v119, %v118
  %v139 = vpack.c.b16 %v121, %v120
  %v140 = vpack.c.b16 %v123, %v122
  %v141 = vpack.c.b16 %v125, %v124
  %158 = vmatpush.bf16.msra.mxu0 %v133
  %159 = vmatpush.bf16.msra.mxu0 %v132
  %160 = vmatpush.bf16.msra.mxu0 %v131
  %161 = vmatpush.bf16.msra.mxu0 %v130
  %162 = vmatpush.bf16.msra.mxu0 %v129
  %163 = vmatpush.bf16.msra.mxu0 %v128
  %164 = vmatpush.bf16.msra.mxu0 %v127
  %165 = vmatpush.bf16.msra.mxu0 %v126
  %166 = vmatmul.bf16.gmra.mxu0 %v58
  %v167 = vpop.f32.mrf.mxu0
  %v168 = vadd.f32 %v50, %v167
  %v169 = vpop.f32.mrf.mxu0
  %v170 = vadd.f32 %v50, %v169
  %171 = vdwg.mxu0
  %172 = vmatpush.bf16.msra.mxu0 %v141
  %173 = vmatpush.bf16.msra.mxu0 %v140
  %174 = vmatpush.bf16.msra.mxu0 %v139
  %175 = vmatpush.bf16.msra.mxu0 %v138
  %176 = vmatpush.bf16.msra.mxu0 %v137
  %177 = vmatpush.bf16.msra.mxu0 %v136
  %178 = vmatpush.bf16.msra.mxu0 %v135
  %179 = vmatpush.bf16.msra.mxu0 %v134
  %180 = vmatmul.bf16.gmra.mxu0 %v59
  %v181 = vpop.f32.mrf.mxu0
  %v182 = vadd.f32 %v168, %v181
  %v183 = vpop.f32.mrf.mxu0
  %v184 = vadd.f32 %v170, %v183
  %185 = vdwg.mxu0
  %186 = vst [vmem:[%s3] sm:$0xff] %v182
  %187 = vst [vmem:[%s3 + $0x8] sm:$0xff] %v184
  // Predicated region
  $region14: #{poetry_model_forward.17} parent=0 // pred_check
    _
  $region15: #{poetry_model_forward.17} parent=0 // pred_check_branch
    %189 = sbr.rel (0) target = $region17
  $region16: #{poetry_model_forward.17} parent=0 // pred_region
    _
  $region17: #{poetry_model_forward.17} parent=0 // pred_fallthru
    _
  // Predicated region
  $region18: #{poetry_model_forward.17} parent=0 // pred_check
    _
  $region19: #{poetry_model_forward.17} parent=0 // pred_check_branch
    %191 = sbr.rel (0) target = $region21
  $region20: #{poetry_model_forward.17} parent=0 // pred_region
    _
  $region21: #{poetry_model_forward.17} parent=0 // pred_fallthru
    _

// kernel: poetry_model_forward.15
$region0: #{poetry_model_forward.15}
  #allocation0 [shape = 'u32[]', space=smem, size = 0x4, offset = 0x4, fixed_abs, tag = 'smem constant byte address 0x4 - core index']
  #allocation1 [shape = 'u32[72,128]{1,0:T(1,128)}', space=vmem, size = 0x9000, scoped, tag = 'internal scratch']
  %s0 = inlined_call_operand.vmem [shape: bf16[16,256], index: 0, kind: input, shape index: {}]
  %s1 = inlined_call_operand.hbm [shape: bf16[256,256], index: 1, kind: input, shape index: {}]
  %s2 = inlined_call_operand.vmem [shape: f32[1,256], index: 2, kind: input, shape index: {}]
  %s3 = inlined_call_operand.vmem [shape: bf16[16,256], index: 3, kind: input, shape index: {}]
  %s4 = inlined_call_operand.vmem [shape: f32[1,256], index: 4, kind: input, shape index: {}]
  %s5 = inlined_call_operand.vmem [shape: f32[1,256], index: 5, kind: input, shape index: {}]
  %s6 = inlined_call_operand.vmem [shape: bf16[16,256], index: 6, kind: output, shape index: {}]
  %s7 = sld [smem:[#allocation0]]
  $region38: #{poetry_model_forward.15} parent=0
    _
  %s9 = ssub.s32 1, %s7
  %s10 = scalar_select 0, %s9, %s7
  $region1: #{poetry_model_forward.15} parent=0
    #allocation2 [shape = 'u8[131072]{0}', space=vmem, size = 0x20000, scoped, tag = 'input window, operand 1, single buffered']
    #allocation3 [shape = 's32[1]{0}', space=sflag, size = 0x4, scoped, tag = 'scoped memory for poetry_model_forward.15']
    %11 = vsyncpa [#allocation3], 0
    // Predicated region
    $region2: #{poetry_model_forward.15} parent=1 // pred_check
      _
    $region3: #{poetry_model_forward.15} parent=1 // pred_check_branch
      %13 = sbr.rel (0) target = $region5
    $region4: #{poetry_model_forward.15} parent=1 // pred_region
      _
    $region5: #{poetry_model_forward.15} parent=1 // pred_fallthru
      _
    // Predicated region
    $region6: #{poetry_model_forward.15} parent=1 // pred_check
      _
    $region7: #{poetry_model_forward.15} parent=1 // pred_check_branch
      %15 = sbr.rel (0) target = $region9
    $region8: #{poetry_model_forward.15} parent=1 // pred_region
      %17 = vsyncadd [#allocation3], 0
      %s18 = sshll.u32 %s1, 4
      %s19 = int_to_ptr.hbm [resolvable:$true] %s18
      %s20 = sshll.u32 [#allocation2], 4
      %s21 = int_to_ptr.vmem [resolvable:$true] %s20
      %26 = dma.hbm_to_vmem [thread:$0]  %s19, 4096, %s21, [#allocation3], 128, 128, 8
    $region9: #{poetry_model_forward.15} parent=1 // pred_fallthru
      _
    // Predicated region
    $region10: #{poetry_model_forward.15} parent=1 // pred_check
      _
    $region11: #{poetry_model_forward.15} parent=1 // pred_check_branch
      %28 = sbr.rel (0) target = $region13
    $region12: #{poetry_model_forward.15} parent=1 // pred_region
      _
    $region13: #{poetry_model_forward.15} parent=1 // pred_fallthru
      _
    // Predicated region
    $region14: #{poetry_model_forward.15} parent=1 // pred_check
      _
    $region15: #{poetry_model_forward.15} parent=1 // pred_check_branch
      %30 = sbr.rel (0) target = $region17
    $region16: #{poetry_model_forward.15} parent=1 // pred_region
      _
    $region17: #{poetry_model_forward.15} parent=1 // pred_fallthru
      _
    // Predicated region
    $region18: #{poetry_model_forward.15} parent=1 // pred_check
      _
    $region19: #{poetry_model_forward.15} parent=1 // pred_check_branch
      %32 = sbr.rel (0) target = $region21
    $region20: #{poetry_model_forward.15} parent=1 // pred_region
      _
    $region21: #{poetry_model_forward.15} parent=1 // pred_fallthru
      _
    // Predicated region
    $region22: #{poetry_model_forward.15} parent=1 // pred_check
      _
    $region23: #{poetry_model_forward.15} parent=1 // pred_check_branch
      %34 = sbr.rel (0) target = $region25
    $region24: #{poetry_model_forward.15} parent=1 // pred_region
      _
    $region25: #{poetry_model_forward.15} parent=1 // pred_fallthru
      _
    // Predicated region
    $region26: #{poetry_model_forward.15} parent=1 // pred_check
      _
    $region27: #{poetry_model_forward.15} parent=1 // pred_check_branch
      %36 = sbr.rel (0) target = $region29
    $region28: #{poetry_model_forward.15} parent=1 // pred_region
      %38 = dma.done [#allocation3], 4096
    $region29: #{poetry_model_forward.15} parent=1 // pred_fallthru
      _
    %v39 = vld [vmem:[%s0] sm:$0xff]
    %v40 = vld [vmem:[%s0 + $0x8] sm:$0xff]
    %v41 = vld [vmem:[#allocation2] sm:$0xff]
    %v42 = vld [vmem:[#allocation2 + $0x8] sm:$0xff]
    %v43 = vld [vmem:[#allocation2 + $0x10] sm:$0xff]
    %v44 = vld [vmem:[#allocation2 + $0x18] sm:$0xff]
    %v45 = vld [vmem:[#allocation2 + $0x20] sm:$0xff]
    %v46 = vld [vmem:[#allocation2 + $0x28] sm:$0xff]
    %v47 = vld [vmem:[#allocation2 + $0x30] sm:$0xff]
    %v48 = vld [vmem:[#allocation2 + $0x38] sm:$0xff]
    %v49 = vld [vmem:[#allocation2 + $0x40] sm:$0xff]
    %v50 = vld [vmem:[#allocation2 + $0x48] sm:$0xff]
    %v51 = vld [vmem:[#allocation2 + $0x50] sm:$0xff]
    %v52 = vld [vmem:[#allocation2 + $0x58] sm:$0xff]
    %v53 = vld [vmem:[#allocation2 + $0x60] sm:$0xff]
    %v54 = vld [vmem:[#allocation2 + $0x68] sm:$0xff]
    %v55 = vld [vmem:[#allocation2 + $0x70] sm:$0xff]
    %v56 = vld [vmem:[#allocation2 + $0x78] sm:$0xff]
    %v57 = vld [vmem:[#allocation2 + $0x80] sm:$0xff]
    %v58 = vld [vmem:[#allocation2 + $0x88] sm:$0xff]
    %v59 = vld [vmem:[#allocation2 + $0x90] sm:$0xff]
    %v60 = vld [vmem:[#allocation2 + $0x98] sm:$0xff]
    %v61 = vld [vmem:[#allocation2 + $0xa0] sm:$0xff]
    %v62 = vld [vmem:[#allocation2 + $0xa8] sm:$0xff]
    %v63 = vld [vmem:[#allocation2 + $0xb0] sm:$0xff]
    %v64 = vld [vmem:[#allocation2 + $0xb8] sm:$0xff]
    %v65 = vld [vmem:[#allocation2 + $0xc0] sm:$0xff]
    %v66 = vld [vmem:[#allocation2 + $0xc8] sm:$0xff]
    %v67 = vld [vmem:[#allocation2 + $0xd0] sm:$0xff]
    %v68 = vld [vmem:[#allocation2 + $0xd8] sm:$0xff]
    %v69 = vld [vmem:[#allocation2 + $0xe0] sm:$0xff]
    %v70 = vld [vmem:[#allocation2 + $0xe8] sm:$0xff]
    %v71 = vld [vmem:[#allocation2 + $0xf0] sm:$0xff]
    %v72 = vld [vmem:[#allocation2 + $0xf8] sm:$0xff]
    %v73 = vld [vmem:[%s2] sm:$0x3]
    %v75 = vperm.slane %v73, 0
    %v76 = vperm.slane %v73, 1
    %v81 = vunpack.c.l.b16 %v39
    %v82 = vunpack.c.h.b16 %v39
    %v83 = vunpack.c.l.b16 %v40
    %v84 = vunpack.c.h.b16 %v40
    %v85 = vpack.c.b16 %v83, %v81
    %v86 = vpack.c.b16 %v84, %v82
    %v121 = vunpack.c.l.b16 %v41
    %v122 = vunpack.c.h.b16 %v41
    %v123 = vunpack.c.l.b16 %v42
    %v124 = vunpack.c.h.b16 %v42
    %v125 = vunpack.c.l.b16 %v43
    %v126 = vunpack.c.h.b16 %v43
    %v127 = vunpack.c.l.b16 %v44
    %v128 = vunpack.c.h.b16 %v44
    %v129 = vunpack.c.l.b16 %v45
    %v130 = vunpack.c.h.b16 %v45
    %v131 = vunpack.c.l.b16 %v46
    %v132 = vunpack.c.h.b16 %v46
    %v133 = vunpack.c.l.b16 %v47
    %v134 = vunpack.c.h.b16 %v47
    %v135 = vunpack.c.l.b16 %v48
    %v136 = vunpack.c.h.b16 %v48
    %v137 = vunpack.c.l.b16 %v49
    %v138 = vunpack.c.h.b16 %v49
    %v139 = vunpack.c.l.b16 %v50
    %v140 = vunpack.c.h.b16 %v50
    %v141 = vunpack.c.l.b16 %v51
    %v142 = vunpack.c.h.b16 %v51
    %v143 = vunpack.c.l.b16 %v52
    %v144 = vunpack.c.h.b16 %v52
    %v145 = vunpack.c.l.b16 %v53
    %v146 = vunpack.c.h.b16 %v53
    %v147 = vunpack.c.l.b16 %v54
    %v148 = vunpack.c.h.b16 %v54
    %v149 = vunpack.c.l.b16 %v55
    %v150 = vunpack.c.h.b16 %v55
    %v151 = vunpack.c.l.b16 %v56
    %v152 = vunpack.c.h.b16 %v56
    %v153 = vunpack.c.l.b16 %v57
    %v154 = vunpack.c.h.b16 %v57
    %v155 = vunpack.c.l.b16 %v58
    %v156 = vunpack.c.h.b16 %v58
    %v157 = vunpack.c.l.b16 %v59
    %v158 = vunpack.c.h.b16 %v59
    %v159 = vunpack.c.l.b16 %v60
    %v160 = vunpack.c.h.b16 %v60
    %v161 = vunpack.c.l.b16 %v61
    %v162 = vunpack.c.h.b16 %v61
    %v163 = vunpack.c.l.b16 %v62
    %v164 = vunpack.c.h.b16 %v62
    %v165 = vunpack.c.l.b16 %v63
    %v166 = vunpack.c.h.b16 %v63
    %v167 = vunpack.c.l.b16 %v64
    %v168 = vunpack.c.h.b16 %v64
    %v169 = vunpack.c.l.b16 %v65
    %v170 = vunpack.c.h.b16 %v65
    %v171 = vunpack.c.l.b16 %v66
    %v172 = vunpack.c.h.b16 %v66
    %v173 = vunpack.c.l.b16 %v67
    %v174 = vunpack.c.h.b16 %v67
    %v175 = vunpack.c.l.b16 %v68
    %v176 = vunpack.c.h.b16 %v68
    %v177 = vunpack.c.l.b16 %v69
    %v178 = vunpack.c.h.b16 %v69
    %v179 = vunpack.c.l.b16 %v70
    %v180 = vunpack.c.h.b16 %v70
    %v181 = vunpack.c.l.b16 %v71
    %v182 = vunpack.c.h.b16 %v71
    %v183 = vunpack.c.l.b16 %v72
    %v184 = vunpack.c.h.b16 %v72
    %v185 = vpack.c.b16 %v123, %v121
    %v186 = vpack.c.b16 %v124, %v122
    %v187 = vpack.c.b16 %v127, %v125
    %v188 = vpack.c.b16 %v128, %v126
    %v189 = vpack.c.b16 %v131, %v129
    %v190 = vpack.c.b16 %v132, %v130
    %v191 = vpack.c.b16 %v135, %v133
    %v192 = vpack.c.b16 %v136, %v134
    %v193 = vpack.c.b16 %v139, %v137
    %v194 = vpack.c.b16 %v140, %v138
    %v195 = vpack.c.b16 %v143, %v141
    %v196 = vpack.c.b16 %v144, %v142
    %v197 = vpack.c.b16 %v147, %v145
    %v198 = vpack.c.b16 %v148, %v146
    %v199 = vpack.c.b16 %v151, %v149
    %v200 = vpack.c.b16 %v152, %v150
    %v201 = vpack.c.b16 %v155, %v153
    %v202 = vpack.c.b16 %v156, %v154
    %v203 = vpack.c.b16 %v159, %v157
    %v204 = vpack.c.b16 %v160, %v158
    %v205 = vpack.c.b16 %v163, %v161
    %v206 = vpack.c.b16 %v164, %v162
    %v207 = vpack.c.b16 %v167, %v165
    %v208 = vpack.c.b16 %v168, %v166
    %v209 = vpack.c.b16 %v171, %v169
    %v210 = vpack.c.b16 %v172, %v170
    %v211 = vpack.c.b16 %v175, %v173
    %v212 = vpack.c.b16 %v176, %v174
    %v213 = vpack.c.b16 %v179, %v177
    %v214 = vpack.c.b16 %v180, %v178
    %v215 = vpack.c.b16 %v183, %v181
    %v216 = vpack.c.b16 %v184, %v182
    %249 = vmatpush.bf16.msra.mxu0 %v199
    %250 = vmatpush.bf16.msra.mxu0 %v197
    %251 = vmatpush.bf16.msra.mxu0 %v195
    %252 = vmatpush.bf16.msra.mxu0 %v193
    %253 = vmatpush.bf16.msra.mxu0 %v191
    %254 = vmatpush.bf16.msra.mxu0 %v189
    %255 = vmatpush.bf16.msra.mxu0 %v187
    %256 = vmatpush.bf16.msra.mxu0 %v185
    %257 = vmatmul.bf16.gmra.mxu0 %v85
    %v258 = vpop.f32.mrf.mxu0
    %v259 = vadd.f32 %v75, %v258
    %v260 = vpop.f32.mrf.mxu0
    %v261 = vadd.f32 %v75, %v260
    %262 = vdwg.mxu0
    %263 = vmatpush.bf16.msra.mxu0 %v215
    %264 = vmatpush.bf16.msra.mxu0 %v213
    %265 = vmatpush.bf16.msra.mxu0 %v211
    %266 = vmatpush.bf16.msra.mxu0 %v209
    %267 = vmatpush.bf16.msra.mxu0 %v207
    %268 = vmatpush.bf16.msra.mxu0 %v205
    %269 = vmatpush.bf16.msra.mxu0 %v203
    %270 = vmatpush.bf16.msra.mxu0 %v201
    %271 = vmatmul.bf16.gmra.mxu0 %v86
    %v272 = vpop.f32.mrf.mxu0
    %v273 = vadd.f32 %v259, %v272
    %v274 = vpop.f32.mrf.mxu0
    %v275 = vadd.f32 %v261, %v274
    %276 = vdwg.mxu0
    %277 = vmatpush.bf16.msra.mxu0 %v200
    %278 = vmatpush.bf16.msra.mxu0 %v198
    %279 = vmatpush.bf16.msra.mxu0 %v196
    %280 = vmatpush.bf16.msra.mxu0 %v194
    %281 = vmatpush.bf16.msra.mxu0 %v192
    %282 = vmatpush.bf16.msra.mxu0 %v190
    %283 = vmatpush.bf16.msra.mxu0 %v188
    %284 = vmatpush.bf16.msra.mxu0 %v186
    %285 = vmatmul.bf16.gmra.mxu0 %v85
    %v286 = vpop.f32.mrf.mxu0
    %v287 = vadd.f32 %v76, %v286
    %v288 = vpop.f32.mrf.mxu0
    %v289 = vadd.f32 %v76, %v288
    %290 = vdwg.mxu0
    %291 = vmatpush.bf16.msra.mxu0 %v216
    %292 = vmatpush.bf16.msra.mxu0 %v214
    %293 = vmatpush.bf16.msra.mxu0 %v212
    %294 = vmatpush.bf16.msra.mxu0 %v210
    %295 = vmatpush.bf16.msra.mxu0 %v208
    %296 = vmatpush.bf16.msra.mxu0 %v206
    %297 = vmatpush.bf16.msra.mxu0 %v204
    %298 = vmatpush.bf16.msra.mxu0 %v202
    %299 = vmatmul.bf16.gmra.mxu0 %v86
    %v300 = vpop.f32.mrf.mxu0
    %v301 = vadd.f32 %v287, %v300
    %v302 = vpop.f32.mrf.mxu0
    %v303 = vadd.f32 %v289, %v302
    %304 = vdwg.mxu0
    %v305 = vld [vmem:[%s3] sm:$0xff]
    %v306 = vld [vmem:[%s3 + $0x8] sm:$0xff]
    %v307 = vunpack.c.l.bf16 %v305
    %v308 = vunpack.c.h.bf16 %v305
    %v309 = vunpack.c.l.bf16 %v306
    %v310 = vunpack.c.h.bf16 %v306
    %v311 = vadd.f32 %v273, %v307
    %v312 = vadd.f32 %v301, %v308
    %v313 = vadd.f32 %v275, %v309
    %v314 = vadd.f32 %v303, %v310
    %v315 = vld [vmem:[%s4] sm:$0x3]
    %v316 = vld [vmem:[%s5] sm:$0x3]
    %v317 = vadd.f32 %v311, %v312
    %318 = vadd.xlane.f32.xlu0 %v317
    %v319 = vpop.xlane.xlu0 %318
    %v320 = vadd.f32 %v313, %v314
    %321 = vadd.xlane.f32.xlu0 %v320
    %v322 = vpop.xlane.xlu0 %321
    %v323 = vrcp.pop 256.0
    %v324 = vmul.f32 256.0, %v323
    %v325 = vsub.f32 1.0, %v324
    %v326 = vmul.f32 %v323, %v325
    %v327 = vadd.f32 %v323, %v326
    %vm328 = vweird.f32 %v323
    %v329 = vsel %vm328, %v323, %v327
    %v330 = vmul.f32 %v319, %v329
    %v331 = vmul.f32 %v322, %v329
    %v332 = vsub.f32 %v311, %v330
    %v333 = vsub.f32 %v312, %v330
    %v334 = vsub.f32 %v313, %v331
    %v335 = vsub.f32 %v314, %v331
    %v336 = vmul.f32 %v332, %v332
    %v337 = vmul.f32 %v333, %v333
    %v338 = vmul.f32 %v334, %v334
    %v339 = vmul.f32 %v335, %v335
    %v340 = vadd.f32 %v336, %v337
    %341 = vadd.xlane.f32.xlu0 %v340
    %v342 = vpop.xlane.xlu0 %341
    %v343 = vadd.f32 %v338, %v339
    %344 = vadd.xlane.f32.xlu0 %v343
    %v345 = vpop.xlane.xlu0 %344
    %v346 = vmul.f32 %v342, %v329
    %v347 = vmul.f32 %v345, %v329
    %v348 = vadd.f32 %v346, 1e-05
    %v349 = vadd.f32 %v347, 1e-05
    %v350 = vrsqrt.pop %v348
    %v351 = vmul.f32 %v350, %v348
    %v352 = vmul.f32 %v351, %v350
    %v353 = vmul.f32 0.5, %v352
    %v354 = vsub.f32 1.5, %v353
    %v355 = vmul.f32 %v350, %v354
    %vm356 = vweird.f32 %v348
    %vm357 = vweird.f32 %v350
    %vm358 = vmor %vm356, %vm357
    %v359 = vsel %vm358, %v350, %v355
    %v360 = vrsqrt.pop %v349
    %v361 = vmul.f32 %v360, %v349
    %v362 = vmul.f32 %v361, %v360
    %v363 = vmul.f32 0.5, %v362
    %v364 = vsub.f32 1.5, %v363
    %v365 = vmul.f32 %v360, %v364
    %vm366 = vweird.f32 %v349
    %vm367 = vweird.f32 %v360
    %vm368 = vmor %vm366, %vm367
    %v369 = vsel %vm368, %v360, %v365
    %v370 = vmul.f32 %v332, %v359
    %v371 = vmul.f32 %v333, %v359
    %v372 = vmul.f32 %v334, %v369
    %v373 = vmul.f32 %v335, %v369
    %v375 = vperm.slane %v315, 0
    %v376 = vperm.slane %v315, 1
    %v379 = vmul.f32 %v370, %v375
    %v380 = vmul.f32 %v371, %v376
    %v381 = vmul.f32 %v372, %v375
    %v382 = vmul.f32 %v373, %v376
    %v384 = vperm.slane %v316, 0
    %v385 = vperm.slane %v316, 1
    %v388 = vadd.f32 %v379, %v384
    %v389 = vadd.f32 %v380, %v385
    %v390 = vadd.f32 %v381, %v384
    %v391 = vadd.f32 %v382, %v385
    %v392 = vpack.c.bf16 %v389, %v388
    %v393 = vpack.c.bf16 %v391, %v390
    %394 = vst [vmem:[%s6] sm:$0xff] %v392
    %395 = vst [vmem:[%s6 + $0x8] sm:$0xff] %v393
    // Predicated region
    $region30: #{poetry_model_forward.15} parent=1 // pred_check
      _
    $region31: #{poetry_model_forward.15} parent=1 // pred_check_branch
      %397 = sbr.rel (0) target = $region33
    $region32: #{poetry_model_forward.15} parent=1 // pred_region
      _
    $region33: #{poetry_model_forward.15} parent=1 // pred_fallthru
      _
    // Predicated region
    $region34: #{poetry_model_forward.15} parent=1 // pred_check
      _
    $region35: #{poetry_model_forward.15} parent=1 // pred_check_branch
      %399 = sbr.rel (0) target = $region37
    $region36: #{poetry_model_forward.15} parent=1 // pred_region
      _
    $region37: #{poetry_model_forward.15} parent=1 // pred_fallthru
      _
    %400 = vsyncpa [#allocation3], 1

</llo_original>
